<compile_context>
chip_gen: v6e
topology: v6e:2x2x1
jax: 0.10.0
libtpu: 0.0.40
codegen_flags: <defaults>
</compile_context>

<pallas_src>
import jax
import jax.numpy as jnp
from jax.experimental import pallas as pl
from jax.experimental.pallas import tpu as pltpu


# --------------------------------------------------------------------------
# fused kernel
# --------------------------------------------------------------------------
def _fused_vgae_kernel(a_ref, xw_ref, b1_ref, wcat_ref, bcat_ref,
                       out_ref, hw_ref):
    """grid = (stage, row_tile).

    stage 0: hw[i*tm:(i+1)*tm] = relu(A[i] @ XW + b1) @ [Wmu|Wls|0]   (bf16)
    stage 1: out[i]            = A[i] @ hw + [bmu|bls|0]              (f32)
    """
    stage = pl.program_id(0)
    i = pl.program_id(1)
    tm = out_ref.shape[0]

    @pl.when(stage == 0)
    def _():
        h = jnp.dot(a_ref[...], xw_ref[...],
                    preferred_element_type=jnp.float32)
        h = jnp.maximum(h + b1_ref[...], 0.0)
        hw = jnp.dot(h.astype(jnp.bfloat16), wcat_ref[...],
                     preferred_element_type=jnp.float32)
        row0 = pl.multiple_of(i * tm, tm)
        hw_ref[pl.ds(row0, tm), :] = hw.astype(hw_ref.dtype)

    @pl.when(stage == 1)
    def _():
        out = jnp.dot(a_ref[...], hw_ref[...],
                      preferred_element_type=jnp.float32)
        out_ref[...] = out + bcat_ref[...]


# --------------------------------------------------------------------------
# wrapper
# --------------------------------------------------------------------------
def _pick_row_tile(n, *, target=256, a_budget_bytes=24 << 20):
    """Largest multiple-of-16 row tile <= target that divides n and whose
    double-buffered bf16 A tile (2 * tm * n * 2B) fits the VMEM budget."""
    cap = max(16, (a_budget_bytes // (4 * n)) // 16 * 16)
    t = min(target, cap, n)
    t -= t % 16
    while t >= 16:
        if n % t == 0:
            return t
        t -= 16
    return n  # tiny graphs: single full-height block


def vgae_encoder(a_hat, x, params, *, row_tile=256):
    """Fused VGAE encoder forward pass (one streaming pallas_call)."""
    n = x.shape[0]
    w1, b1 = params["w1"], params["b1"]
    wmu, bmu = params["wmu"], params["bmu"]
    wls, bls = params["wls"], params["bls"]
    hidden = w1.shape[1]
    out_ch = wmu.shape[1]

    # A should already be bf16 (built once by the caller); cast only if not.
    a = a_hat if a_hat.dtype == jnp.bfloat16 else a_hat.astype(jnp.bfloat16)

    # Hoisted: XW = X @ W1 is tiny and identical for every row tile.
    xw = jnp.dot(x, w1, precision=jax.lax.Precision.HIGHEST
                 ).astype(jnp.bfloat16)

    # Fuse conv_mu / conv_logstd; lane-pad the fused width to >= 128 so hw and
    # the output are lane-dense (unmasked vst, dense stage-2 matmul RHS).
    width = max(128, ((2 * out_ch + 127) // 128) * 128)
    wcat = jnp.zeros((hidden, width), jnp.bfloat16)
    wcat = wcat.at[:, :out_ch].set(wmu.astype(jnp.bfloat16))
    wcat = wcat.at[:, out_ch:2 * out_ch].set(wls.astype(jnp.bfloat16))
    bcat = jnp.zeros((1, width), jnp.float32)
    bcat = bcat.at[:, :out_ch].set(bmu)
    bcat = bcat.at[:, out_ch:2 * out_ch].set(bls)

    tm = _pick_row_tile(n, target=row_tile)
    nt = n // tm
    grid = (2, nt)  # (stage, row tile): stage 1 needs all of stage 0's hw

    def resident(shape):
        zeros = (0,) * len(shape)
        return pl.BlockSpec(shape, lambda s, i: zeros)

    a_spec = pl.BlockSpec((tm, n), lambda s, i: (i, 0))
    # Stage 0 never writes the output: pin its block index to 0 so no
    # writebacks happen until stage 1 produces real data.
    out_spec = pl.BlockSpec((tm, width), lambda s, i: (i * s, 0))

    # VMEM footprint estimate -> explicit scoped-VMEM limit (with headroom).
    est = (4 * tm * n               # A bf16 tile, double-buffered
           + 8 * tm * width         # f32 out block, double-buffered
           + 4 * n * hidden         # xw resident (x2 slack)
           + 2 * n * width          # hw scratch (bf16)
           + (2 << 20))             # weights / biases / misc slack
    vmem_limit = int(min(max(est + (8 << 20), 16 << 20), 60 << 20))

    cparams = pltpu.CompilerParams(
        dimension_semantics=("arbitrary", "arbitrary"),
        vmem_limit_bytes=vmem_limit,
    )

    out = pl.pallas_call(
        _fused_vgae_kernel,
        grid=grid,
        in_specs=[a_spec, resident(xw.shape), resident(b1.shape),
                  resident(wcat.shape), resident(bcat.shape)],
        out_specs=out_spec,
        out_shape=jax.ShapeDtypeStruct((n, width), jnp.float32),
        scratch_shapes=[pltpu.VMEM((n, width), jnp.bfloat16)],
        compiler_params=cparams,
    )(a, xw, b1, wcat, bcat)

    return out[:, :out_ch], out[:, out_ch:2 * out_ch]


# --------------------------------------------------------------------------
# glue: dense GCN normalization + params + references
# --------------------------------------------------------------------------
def gcn_normalized_adjacency(edge_index, num_nodes):
    """Dense A_hat = D^-1/2 (A + I) D^-1/2 as used by pyg_nn.GCNConv (f32)."""
    a = jnp.zeros((num_nodes, num_nodes), jnp.float32)
    a = a.at[edge_index[0], edge_index[1]].set(1.0)
    a = jnp.maximum(a, jnp.eye(num_nodes, dtype=jnp.float32))
    deg = a.sum(axis=1)
    d_inv_sqrt = jnp.where(deg > 0, 1.0 / jnp.sqrt(deg), 0.0)
    return d_inv_sqrt[:, None] * a * d_inv_sqrt[None, :]


def glorot(key, shape):
    fan_in, fan_out = shape
    limit = jnp.sqrt(6.0 / (fan_in + fan_out))
    return jax.random.uniform(key, shape, jnp.float32, -limit, limit)


def make_params(key, in_channels, out_channels):
    hidden = 2 * out_channels
    k1, k2, k3, k4, k5, k6 = jax.random.split(key, 6)
    return {
        "w1": glorot(k1, (in_channels, hidden)),
        "b1": 0.1 * jax.random.normal(k4, (1, hidden), jnp.float32),
        "wmu": glorot(k2, (hidden, out_channels)),
        "bmu": 0.1 * jax.random.normal(k5, (1, out_channels), jnp.float32),
        "wls": glorot(k3, (hidden, out_channels)),
        "bls": 0.1 * jax.random.normal(k6, (1, out_channels), jnp.float32),
    }


def reference_f32(a_hat, x, params):
    h = jnp.maximum(a_hat @ (x @ params["w1"]) + params["b1"], 0.0)
    mu = a_hat @ (h @ params["wmu"]) + params["bmu"]
    ls = a_hat @ (h @ params["wls"]) + params["bls"]
    return mu, ls


def reference_bf16_matched(a_bf16, x, params):
    """Same math/quantization as the kernel (bf16 A/xw/h/hw, f32 acc)."""
    hi = jax.lax.Precision.HIGHEST
    xw = jnp.dot(x, params["w1"], precision=hi).astype(jnp.bfloat16)
    h = jnp.dot(a_bf16, xw, preferred_element_type=jnp.float32) + params["b1"]
    h = jnp.maximum(h, 0.0)
    wcat = jnp.concatenate([params["wmu"], params["wls"]],
                           axis=1).astype(jnp.bfloat16)
    hw = jnp.dot(h.astype(jnp.bfloat16), wcat,
                 preferred_element_type=jnp.float32).astype(jnp.bfloat16)
    bcat = jnp.concatenate([params["bmu"], params["bls"]], axis=1)
    out = jnp.dot(a_bf16, hw, preferred_element_type=jnp.float32) + bcat
    oc = params["wmu"].shape[1]
    return out[:, :oc], out[:, oc:]


if __name__ == "__main__":
    key = jax.random.PRNGKey(0)
    k_x, k_p, k_e = jax.random.split(key, 3)

    num_nodes = 1024
    in_channels = 16
    out_channels = 32

    # Deterministic node features.
    x = jax.random.normal(k_x, (num_nodes, in_channels), jnp.float32)

    # Deterministic graph: bidirectional ring + offset chords (both directions).
    ring_src = jnp.arange(num_nodes, dtype=jnp.int32)
    ring_dst = (ring_src + 1) % num_nodes
    chord_src = jax.random.randint(k_e, (num_nodes,), 0, num_nodes,
                                   dtype=jnp.int32)
    chord_dst = (chord_src + 37) % num_nodes
    src = jnp.concatenate([ring_src, ring_dst, chord_src, chord_dst])
    dst = jnp.concatenate([ring_dst, ring_src, chord_dst, chord_src])
    edge_index = jnp.stack([src, dst], axis=0)

    # TODO(synk): pyg GCNConv's scatter-based sparse aggregation is densified
    # to A_hat in plain JAX glue; only the dense message passing runs in-kernel.
    a_hat_f32 = gcn_normalized_adjacency(edge_index, num_nodes)
    a_hat_bf16 = a_hat_f32.astype(jnp.bfloat16)   # built/cached once, not per call
    params = make_params(k_p, in_channels, out_channels)

    mu, logstd = vgae_encoder(a_hat_bf16, x, params)
    jax.block_until_ready((mu, logstd))

    # Exact-math (quantization-matched) check.
    mu_m, ls_m = reference_bf16_matched(a_hat_bf16, x, params)
    assert jnp.allclose(mu, mu_m, atol=2e-2, rtol=2e-2), \
        float(jnp.max(jnp.abs(mu - mu_m)))
    assert jnp.allclose(logstd, ls_m, atol=2e-2, rtol=2e-2), \
        float(jnp.max(jnp.abs(logstd - ls_m)))

    # Loose sanity check against the pure-f32 reference.
    mu_f, ls_f = reference_f32(a_hat_f32, x, params)
    assert jnp.allclose(mu, mu_f, atol=1e-1, rtol=1e-1)
    assert jnp.allclose(logstd, ls_f, atol=1e-1, rtol=1e-1)

    print("KERNEL_OK")
</pallas_src>

<mosaic_0001>
module attributes {stable_mosaic.version = 11 : i64} {
  func.func @_fused_vgae_kernel(%arg0: i32, %arg1: i32, %arg2: memref<256x1024xbf16, #tpu.memory_space<vmem>>, %arg3: memref<1024x64xbf16, #tpu.memory_space<vmem>>, %arg4: memref<1x64xf32, #tpu.memory_space<vmem>>, %arg5: memref<64x128xbf16, #tpu.memory_space<vmem>>, %arg6: memref<1x128xf32, #tpu.memory_space<vmem>>, %arg7: memref<256x128xf32, #tpu.memory_space<vmem>>, %arg8: memref<1024x128xbf16, #tpu.memory_space<vmem>>) attributes {dimension_semantics = [#tpu.dimension_semantics<arbitrary>, #tpu.dimension_semantics<arbitrary>], iteration_bounds = array<i64: 2, 4>, scalar_prefetch = 0 : i64, scratch_operands = 1 : i64, tpu.core_type = #tpu.core_type<tc>, window_params = [{transform_indices = @transform_0, window_bounds = array<i64: 256, 1024>}, {pipeline_mode = #tpu.pipeline_mode<synchronous>, transform_indices = @transform_1, window_bounds = array<i64: 1024, 64>}, {pipeline_mode = #tpu.pipeline_mode<synchronous>, transform_indices = @transform_2, window_bounds = array<i64: 1, 64>}, {pipeline_mode = #tpu.pipeline_mode<synchronous>, transform_indices = @transform_3, window_bounds = array<i64: 64, 128>}, {pipeline_mode = #tpu.pipeline_mode<synchronous>, transform_indices = @transform_4, window_bounds = array<i64: 1, 128>}, {transform_indices = @transform_5, window_bounds = array<i64: 256, 128>}]} {
    %c0_i32 = arith.constant 0 : i32
    %0 = arith.cmpi eq, %arg0, %c0_i32 : i32
    %1 = arith.extui %0 : i1 to i32
    %c0_i32_0 = arith.constant 0 : i32
    %2 = arith.cmpi ne, %1, %c0_i32_0 : i32
    scf.if %2 {
      %c0 = arith.constant 0 : index
      %c0_2 = arith.constant 0 : index
      %6 = vector.load %arg2[%c0, %c0_2] : memref<256x1024xbf16, #tpu.memory_space<vmem>>, vector<256x1024xbf16>
      %c0_3 = arith.constant 0 : index
      %c0_4 = arith.constant 0 : index
      %7 = vector.load %arg3[%c0_3, %c0_4] : memref<1024x64xbf16, #tpu.memory_space<vmem>>, vector<1024x64xbf16>
      %cst = arith.constant dense<0.000000e+00> : vector<256x64xf32>
      %8 = tpu.matmul %6, %7, %cst {dimension_numbers = #tpu.dot_dimension_numbers<[1], [0], [0], [1], [0, 0, 1, 1], [], []>} : vector<256x1024xbf16>, vector<1024x64xbf16>, vector<256x64xf32> -> vector<256x64xf32>
      %c0_5 = arith.constant 0 : index
      %c0_6 = arith.constant 0 : index
      %9 = vector.load %arg4[%c0_5, %c0_6] : memref<1x64xf32, #tpu.memory_space<vmem>>, vector<1x64xf32>
      %10 = vector.broadcast %9 : vector<1x64xf32> to vector<256x64xf32>
      %11 = arith.addf %8, %10 : vector<256x64xf32>
      %cst_7 = arith.constant 0.000000e+00 : f32
      %12 = vector.broadcast %cst_7 : f32 to vector<256x64xf32>
      %13 = arith.maximumf %11, %12 : vector<256x64xf32>
      %14 = arith.truncf %13 : vector<256x64xf32> to vector<256x64xbf16>
      %c0_8 = arith.constant 0 : index
      %c0_9 = arith.constant 0 : index
      %15 = vector.load %arg5[%c0_8, %c0_9] : memref<64x128xbf16, #tpu.memory_space<vmem>>, vector<64x128xbf16>
      %cst_10 = arith.constant dense<0.000000e+00> : vector<256x128xf32>
      %16 = tpu.matmul %14, %15, %cst_10 {dimension_numbers = #tpu.dot_dimension_numbers<[1], [0], [0], [1], [0, 0, 1, 1], [], []>} : vector<256x64xbf16>, vector<64x128xbf16>, vector<256x128xf32> -> vector<256x128xf32>
      %c256_i32 = arith.constant 256 : i32
      %17 = arith.muli %arg1, %c256_i32 : i32
      %18 = tpu.assume_multiple %17, 256 : i32
      %19 = arith.truncf %16 : vector<256x128xf32> to vector<256x128xbf16>
      %20 = arith.index_cast %18 : i32 to index
      %c0_11 = arith.constant 0 : index
      %21 = vector.load %arg8[%20, %c0_11] : memref<1024x128xbf16, #tpu.memory_space<vmem>>, vector<256x128xbf16>
      tpu.vector_store %arg8[%20, %c0_11], %19 {strides = array<i32>} : memref<1024x128xbf16, #tpu.memory_space<vmem>>, vector<256x128xbf16>,
    } else {
    }
    %c1_i32 = arith.constant 1 : i32
    %3 = arith.cmpi eq, %arg0, %c1_i32 : i32
    %4 = arith.extui %3 : i1 to i32
    %c0_i32_1 = arith.constant 0 : i32
    %5 = arith.cmpi ne, %4, %c0_i32_1 : i32
    scf.if %5 {
      %c0 = arith.constant 0 : index
      %c0_2 = arith.constant 0 : index
      %6 = vector.load %arg2[%c0, %c0_2] : memref<256x1024xbf16, #tpu.memory_space<vmem>>, vector<256x1024xbf16>
      %c0_3 = arith.constant 0 : index
      %c0_4 = arith.constant 0 : index
      %7 = vector.load %arg8[%c0_3, %c0_4] : memref<1024x128xbf16, #tpu.memory_space<vmem>>, vector<1024x128xbf16>
      %cst = arith.constant dense<0.000000e+00> : vector<256x128xf32>
      %8 = tpu.matmul %6, %7, %cst {dimension_numbers = #tpu.dot_dimension_numbers<[1], [0], [0], [1], [0, 0, 1, 1], [], []>} : vector<256x1024xbf16>, vector<1024x128xbf16>, vector<256x128xf32> -> vector<256x128xf32>
      %c0_5 = arith.constant 0 : index
      %c0_6 = arith.constant 0 : index
      %9 = vector.load %arg6[%c0_5, %c0_6] : memref<1x128xf32, #tpu.memory_space<vmem>>, vector<1x128xf32>
      %10 = vector.broadcast %9 : vector<1x128xf32> to vector<256x128xf32>
      %11 = arith.addf %8, %10 : vector<256x128xf32>
      %c0_7 = arith.constant 0 : index
      %c0_8 = arith.constant 0 : index
      %12 = vector.load %arg7[%c0_7, %c0_8] : memref<256x128xf32, #tpu.memory_space<vmem>>, vector<256x128xf32>
      tpu.vector_store %arg7[%c0_7, %c0_8], %11 {strides = array<i32>} : memref<256x128xf32, #tpu.memory_space<vmem>>, vector<256x128xf32>,
    } else {
    }
    return
  }
  func.func @transform_0(%arg0: i32, %arg1: i32) -> (i32, i32) {
    %c0_i32 = arith.constant 0 : i32
    %c0_i32_0 = arith.constant 0 : i32
    return %arg1, %c0_i32 : i32, i32
  }
  func.func @transform_1(%arg0: i32, %arg1: i32) -> (i32, i32) {
    %c0_i32 = arith.constant 0 : i32
    %c0_i32_0 = arith.constant 0 : i32
    %c0_i32_1 = arith.constant 0 : i32
    return %c0_i32, %c0_i32_0 : i32, i32
  }
  func.func @transform_2(%arg0: i32, %arg1: i32) -> (i32, i32) {
    %c0_i32 = arith.constant 0 : i32
    %c0_i32_0 = arith.constant 0 : i32
    %c0_i32_1 = arith.constant 0 : i32
    return %c0_i32, %c0_i32_0 : i32, i32
  }
  func.func @transform_3(%arg0: i32, %arg1: i32) -> (i32, i32) {
    %c0_i32 = arith.constant 0 : i32
    %c0_i32_0 = arith.constant 0 : i32
    %c0_i32_1 = arith.constant 0 : i32
    return %c0_i32, %c0_i32_0 : i32, i32
  }
  func.func @transform_4(%arg0: i32, %arg1: i32) -> (i32, i32) {
    %c0_i32 = arith.constant 0 : i32
    %c0_i32_0 = arith.constant 0 : i32
    %c0_i32_1 = arith.constant 0 : i32
    return %c0_i32, %c0_i32_0 : i32, i32
  }
  func.func @transform_5(%arg0: i32, %arg1: i32) -> (i32, i32) {
    %0 = arith.muli %arg1, %arg0 : i32
    %c0_i32 = arith.constant 0 : i32
    %c0_i32_0 = arith.constant 0 : i32
    return %0, %c0_i32 : i32, i32
  }
}

</mosaic_0001>

<llo_original>
// kernel: tpu_custom_call.1
$region0: #{tpu_custom_call.1}
  #allocation0 [shape = 'u32[]', space=smem, size = 0x4, offset = 0x4, fixed_abs, tag = 'smem constant byte address 0x4 - core index']
  #allocation1 [shape = 'u32[144,128]{1,0:T(1,128)}', space=vmem, size = 0x12000, scoped, tag = 'internal scratch']
  #allocation2 [shape = 'bf16[1024,128]{1,0:T(8,128)(2,1)}', space=vmem, size = 0x40000, scoped, tag = 'scratch operand']
  %s0 = inlined_call_operand.hbm [shape: bf16[1024,1024], index: 0, kind: input, shape index: {}]
  %s1 = inlined_call_operand.vmem [shape: bf16[1024,64], index: 1, kind: input, shape index: {}]
  %s2 = inlined_call_operand.hbm [shape: f32[1,64], index: 2, kind: input, shape index: {}]
  %s3 = inlined_call_operand.hbm [shape: bf16[64,128], index: 3, kind: input, shape index: {}]
  %s4 = inlined_call_operand.hbm [shape: f32[1,128], index: 4, kind: input, shape index: {}]
  %s5 = inlined_call_operand.hbm [shape: f32[1024,128], index: 5, kind: output, shape index: {}]
  %s6 = sld [smem:[#allocation0]]
  $region77: #{tpu_custom_call.1} parent=0
    _
  %s8 = ssub.s32 1, %s6
  %s9 = scalar_select 0, %s8, %s6
  $region1: #{tpu_custom_call.1} parent=0
    #allocation3 [shape = 'u8[1048576]{0}', space=vmem, size = 0x100000, scoped, tag = 'input window, operand 0']
    #allocation4 [shape = 's32[2]{0}', space=sflag, size = 0x8, scoped, tag = 'scoped memory for tpu_custom_call.1']
    #allocation5 [shape = 's32[2]{0}', space=sflag, size = 0x8, scoped, tag = 'scoped memory for tpu_custom_call.1']
    #allocation6 [shape = 'u8[512]{0}', space=vmem, size = 0x400, scoped, tag = 'input window, operand 2, single buffered']
    #allocation7 [shape = 's32[1]{0}', space=sflag, size = 0x4, scoped, tag = 'scoped memory for tpu_custom_call.1']
    #allocation8 [shape = 'u8[16384]{0}', space=vmem, size = 0x4000, scoped, tag = 'input window, operand 3, single buffered']
    #allocation9 [shape = 'u8[512]{0}', space=vmem, size = 0x400, scoped, tag = 'input window, operand 4, single buffered']
    #allocation10 [shape = 's32[1]{0}', space=sflag, size = 0x4, scoped, tag = 'scoped memory for tpu_custom_call.1']
    #allocation11 [shape = 'u8[262144]{0}', space=vmem, size = 0x40000, scoped, tag = 'output window, operand 0']
    %10 = vsyncpa [#allocation4], 0
    %s11 = scalar_lea.sflag [#allocation4], 1
    %12 = vsyncpa %s11, 0
    %13 = vsyncpa [#allocation7], 0
    %14 = vsyncpa [#allocation10], 0
    %15 = vsyncpa [#allocation5], 0
    %s16 = scalar_lea.sflag [#allocation5], 1
    %17 = vsyncpa %s16, 0
    loop: start=0, step=1, limit=10
    $region2: #{tpu_custom_call.1} parent=1 // loop_pre_header
      _
    $region3: #{tpu_custom_call.1} parent=1 // loop_header
      %s19 = sphi 0, %s23
      %p20 = scmp.ge.s32.totalorder %s19, 10
      %s26 = sphi 0, %s38
      %s27 = sphi 0, %s34
      %s28 = sphi 0, %s26
      %s29 = sphi 0, %s27
      %s30 = sphi 0, %s28
      %s31 = sphi 0, %s29
      %s41 = sphi 0, %s43
      %s44 = sphi 0, %s41
      %s45 = sphi 0, %s44
      %s61 = sphi 0, %s45
      %s65 = sphi 0, %s65
      %s67 = sphi 0, %s65
      %s68 = sphi 0, %s67
      %s82 = sphi 0, %s68
      %s86 = sphi 0, %s86
      %s88 = sphi 0, %s86
      %s89 = sphi 0, %s88
      %s103 = sphi 0, %s89
      %s107 = sphi 0, %s107
      %s109 = sphi 0, %s107
      %s110 = sphi 0, %s109
      %s124 = sphi 0, %s110
      %s128 = sphi 0, %s128
      %s130 = sphi 0, %s128
      %s131 = sphi 0, %s130
      %s145 = sphi 0, %s131
      %s153 = sphi 0, %s155
      %s156 = sphi 0, %s153
      %s157 = sphi 0, %s156
      %s173 = sphi 0, %s157
    $region4: #{tpu_custom_call.1} parent=1 // loop_header_branch
      %22 = sbr.rel (%p20) target = $region8
    $region5: #{tpu_custom_call.1} parent=1 // loop_body
      %s24 = ssub.s32 %s19, 1
      %s25 = ssub.s32 %s19, 2
      %s32 = sadd.s32 1, %s27
      %p33 = scmp.ge.s32.totalorder %s32, 4
      %s34 = scalar_select %p33, 0, %s32
      %s35 = sadd.s32 1, %s26
      %s36 = scalar_select %p33, %s35, %s26
      %p37 = scmp.ge.s32.totalorder %s36, 2
      %s38 = scalar_select %p37, 0, %s36
      %s39 = ssub.s32 %s27, %s34
      %p40 = scmp.eq.s32.totalorder %s39, 0
      %s42 = sadd.s32 %s41, 1
      %s43 = scalar_select %p40, %s41, %s42
      %p46 = pneg %p40
      %p47 = scmp.eq.s32.totalorder %s19, 7
      %p48 = por %p46, %p47
      %p49 = scmp.ne.s32.totalorder %s41, %s44
      %p50 = scmp.eq.s32.totalorder %s19, 0
      %p51 = por %p49, %p50
      %p52 = scmp.ne.s32.totalorder %s41, %s44
      %p53 = scmp.eq.s32.totalorder %s24, 7
      %p54 = por %p52, %p53
      %p55 = scmp.ne.s32.totalorder %s44, %s45
      %p56 = scmp.eq.s32.totalorder %s24, 0
      %p57 = por %p55, %p56
      %p58 = scmp.ne.s32.totalorder %s44, %s45
      %p59 = scmp.eq.s32.totalorder %s25, 7
      %p60 = por %p58, %p59
      %p62 = scmp.ne.s32.totalorder %s45, %s61
      %p63 = scmp.eq.s32.totalorder %s25, 0
      %p64 = por %p62, %p63
      %s66 = sadd.s32 %s65, 1
      %p69 = scmp.eq.s32.totalorder %s19, 7
      %p70 = scmp.ne.s32.totalorder %s65, %s67
      %p71 = scmp.eq.s32.totalorder %s19, 0
      %p72 = por %p70, %p71
      %p73 = scmp.ne.s32.totalorder %s65, %s67
      %p74 = scmp.eq.s32.totalorder %s24, 7
      %p75 = por %p73, %p74
      %p76 = scmp.ne.s32.totalorder %s67, %s68
      %p77 = scmp.eq.s32.totalorder %s24, 0
      %p78 = por %p76, %p77
      %p79 = scmp.ne.s32.totalorder %s67, %s68
      %p80 = scmp.eq.s32.totalorder %s25, 7
      %p81 = por %p79, %p80
      %p83 = scmp.ne.s32.totalorder %s68, %s82
      %p84 = scmp.eq.s32.totalorder %s25, 0
      %p85 = por %p83, %p84
      %s87 = sadd.s32 %s86, 1
      %p90 = scmp.eq.s32.totalorder %s19, 7
      %p91 = scmp.ne.s32.totalorder %s86, %s88
      %p92 = scmp.eq.s32.totalorder %s19, 0
      %p93 = por %p91, %p92
      %p94 = scmp.ne.s32.totalorder %s86, %s88
      %p95 = scmp.eq.s32.totalorder %s24, 7
      %p96 = por %p94, %p95
      %p97 = scmp.ne.s32.totalorder %s88, %s89
      %p98 = scmp.eq.s32.totalorder %s24, 0
      %p99 = por %p97, %p98
      %p100 = scmp.ne.s32.totalorder %s88, %s89
      %p101 = scmp.eq.s32.totalorder %s25, 7
      %p102 = por %p100, %p101
      %p104 = scmp.ne.s32.totalorder %s89, %s103
      %p105 = scmp.eq.s32.totalorder %s25, 0
      %p106 = por %p104, %p105
      %s108 = sadd.s32 %s107, 1
      %p111 = scmp.eq.s32.totalorder %s19, 7
      %p112 = scmp.ne.s32.totalorder %s107, %s109
      %p113 = scmp.eq.s32.totalorder %s19, 0
      %p114 = por %p112, %p113
      %p115 = scmp.ne.s32.totalorder %s107, %s109
      %p116 = scmp.eq.s32.totalorder %s24, 7
      %p117 = por %p115, %p116
      %p118 = scmp.ne.s32.totalorder %s109, %s110
      %p119 = scmp.eq.s32.totalorder %s24, 0
      %p120 = por %p118, %p119
      %p121 = scmp.ne.s32.totalorder %s109, %s110
      %p122 = scmp.eq.s32.totalorder %s25, 7
      %p123 = por %p121, %p122
      %p125 = scmp.ne.s32.totalorder %s110, %s124
      %p126 = scmp.eq.s32.totalorder %s25, 0
      %p127 = por %p125, %p126
      %s129 = sadd.s32 %s128, 1
      %p132 = scmp.eq.s32.totalorder %s19, 7
      %p133 = scmp.ne.s32.totalorder %s128, %s130
      %p134 = scmp.eq.s32.totalorder %s19, 0
      %p135 = por %p133, %p134
      %p136 = scmp.ne.s32.totalorder %s128, %s130
      %p137 = scmp.eq.s32.totalorder %s24, 7
      %p138 = por %p136, %p137
      %p139 = scmp.ne.s32.totalorder %s130, %s131
      %p140 = scmp.eq.s32.totalorder %s24, 0
      %p141 = por %p139, %p140
      %p142 = scmp.ne.s32.totalorder %s130, %s131
      %p143 = scmp.eq.s32.totalorder %s25, 7
      %p144 = por %p142, %p143
      %p146 = scmp.ne.s32.totalorder %s131, %s145
      %p147 = scmp.eq.s32.totalorder %s25, 0
      %p148 = por %p146, %p147
      %s149 = smul.u32 %s27, %s26
      %s150 = smul.u32 %s34, %s38
      %s151 = ssub.s32 %s149, %s150
      %p152 = scmp.eq.s32.totalorder %s151, 0
      %s154 = sadd.s32 %s153, 1
      %s155 = scalar_select %p152, %s153, %s154
      %p158 = pneg %p152
      %p159 = scmp.eq.s32.totalorder %s19, 7
      %p160 = por %p158, %p159
      %p161 = scmp.ne.s32.totalorder %s153, %s156
      %p162 = scmp.eq.s32.totalorder %s19, 0
      %p163 = por %p161, %p162
      %p164 = scmp.ne.s32.totalorder %s153, %s156
      %p165 = scmp.eq.s32.totalorder %s24, 7
      %p166 = por %p164, %p165
      %p167 = scmp.ne.s32.totalorder %s156, %s157
      %p168 = scmp.eq.s32.totalorder %s24, 0
      %p169 = por %p167, %p168
      %p170 = scmp.ne.s32.totalorder %s156, %s157
      %p171 = scmp.eq.s32.totalorder %s25, 7
      %p172 = por %p170, %p171
      %p174 = scmp.ne.s32.totalorder %s157, %s173
      %p175 = scmp.eq.s32.totalorder %s25, 0
      %p176 = por %p174, %p175
      %p177 = scmp.le.s32.totalorder 1, %s19
      %p178 = scmp.lt.s32.totalorder %s19, 9
      %p179 = pnand %p177, %p178
      %p180 = pneg %p179
      // Predicated region
      $region9: #{tpu_custom_call.1} parent=5 // pred_check
        _
      $region10: #{tpu_custom_call.1} parent=5 // pred_check_branch
        %182 = sbr.rel (%p179) target = $region12
      $region11: #{tpu_custom_call.1} parent=5 // pred_region
        %s183 = ssub.s32 %s19, 1
        // Predicated region
        $region13: #{tpu_custom_call.1} parent=11 // pred_check
          %p184 = pneg %p78
        $region14: #{tpu_custom_call.1} parent=11 // pred_check_branch
          %186 = sbr.rel (%p184) target = $region16
        $region15: #{tpu_custom_call.1} parent=11 // pred_region
          _
        $region16: #{tpu_custom_call.1} parent=11 // pred_fallthru
          _
        // Predicated region
        $region17: #{tpu_custom_call.1} parent=11 // pred_check
          %p187 = pneg %p99
        $region18: #{tpu_custom_call.1} parent=11 // pred_check_branch
          %189 = sbr.rel (%p187) target = $region20
        $region19: #{tpu_custom_call.1} parent=11 // pred_region
          %s191 = ssub.s32 16, 16
          %192 = vsyncadd [#allocation7], %s191
          %s194 = sshll.u32 [#allocation6], 4
          %s195 = int_to_ptr.vmem [resolvable:$true] %s194
          %197 = dma.hbm_to_vmem [thread:$0]  %s2, 16, %s195, [#allocation7]
        $region20: #{tpu_custom_call.1} parent=11 // pred_fallthru
          _
        // Predicated region
        $region21: #{tpu_custom_call.1} parent=11 // pred_check
          %p198 = pneg %p120
        $region22: #{tpu_custom_call.1} parent=11 // pred_check_branch
          %200 = sbr.rel (%p198) target = $region24
        $region23: #{tpu_custom_call.1} parent=11 // pred_region
          %s202 = ssub.s32 512, 512
          %203 = vsyncadd [#allocation7], %s202
          %s204 = sshll.u32 [#allocation8], 4
          %s205 = int_to_ptr.vmem [resolvable:$true] %s204
          %210 = dma.hbm_to_vmem [thread:$0]  %s3, 512, %s205, [#allocation7], 64, 64, 4
        $region24: #{tpu_custom_call.1} parent=11 // pred_fallthru
          _
        // Predicated region
        $region25: #{tpu_custom_call.1} parent=11 // pred_check
          %p211 = pneg %p141
        $region26: #{tpu_custom_call.1} parent=11 // pred_check_branch
          %213 = sbr.rel (%p211) target = $region28
        $region27: #{tpu_custom_call.1} parent=11 // pred_region
          %s215 = ssub.s32 16, 16
          %216 = vsyncadd [#allocation10], %s215
          %s218 = sshll.u32 [#allocation9], 4
          %s219 = int_to_ptr.vmem [resolvable:$true] %s218
          %221 = dma.hbm_to_vmem [thread:$0]  %s4, 16, %s219, [#allocation10]
        $region28: #{tpu_custom_call.1} parent=11 // pred_fallthru
          _
      $region12: #{tpu_custom_call.1} parent=5 // pred_fallthru
        _
      %p222 = scmp.lt.s32.totalorder %s19, 8
      // Predicated region
      $region29: #{tpu_custom_call.1} parent=5 // pred_check
        %p223 = pneg %p222
      $region30: #{tpu_custom_call.1} parent=5 // pred_check_branch
        %225 = sbr.rel (%p223) target = $region32
      $region31: #{tpu_custom_call.1} parent=5 // pred_region
        // Predicated region
        $region33: #{tpu_custom_call.1} parent=31 // pred_check
          %p226 = pneg %p51
        $region34: #{tpu_custom_call.1} parent=31 // pred_check_branch
          %228 = sbr.rel (%p226) target = $region36
        $region35: #{tpu_custom_call.1} parent=31 // pred_region
          %s229 = sand.u32 %s41, 1
          %s230 = scalar_lea.sflag [#allocation4], %s229
          %s231 = sand.u32 %s41, 1
          %s232 = smul.addr %s231, 1024
          %s233 = scalar_lea.vmem [#allocation3], %s232
          %s234 = smul.u32 32, %s27
          %s236 = ssub.s32 16384, 16384
          %237 = vsyncadd %s230, %s236
          %s238 = smul.addr %s234, 8
          %s239 = smul.addr %s238, 64
          %s240 = scalar_lea.hbm %s0, %s239
          %s241 = sshll.u32 %s233, 4
          %s242 = int_to_ptr.vmem [resolvable:$true] %s241
          %247 = dma.hbm_to_vmem [thread:$0]  %s240, 16384, %s242, %s230, 512, 512, 32
        $region36: #{tpu_custom_call.1} parent=31 // pred_fallthru
          _
      $region32: #{tpu_custom_call.1} parent=5 // pred_fallthru
        _
      %p248 = scmp.le.s32.totalorder 1, %s19
      %p249 = scmp.lt.s32.totalorder %s19, 9
      %p250 = pnand %p248, %p249
      %p251 = pneg %p250
      // Predicated region
      $region37: #{tpu_custom_call.1} parent=5 // pred_check
        _
      $region38: #{tpu_custom_call.1} parent=5 // pred_check_branch
        %253 = sbr.rel (%p250) target = $region40
      $region39: #{tpu_custom_call.1} parent=5 // pred_region
        %s254 = ssub.s32 %s19, 1
        %s255 = sand.u32 %s44, 1
        %s256 = scalar_lea.sflag [#allocation4], %s255
        %s257 = sand.u32 %s44, 1
        %s258 = smul.addr %s257, 1024
        %s259 = scalar_lea.vmem [#allocation3], %s258
        // Predicated region
        $region41: #{tpu_custom_call.1} parent=39 // pred_check
          %p260 = pneg %p57
        $region42: #{tpu_custom_call.1} parent=39 // pred_check_branch
          %262 = sbr.rel (%p260) target = $region44
        $region43: #{tpu_custom_call.1} parent=39 // pred_region
          %263 = dma.done %s256, 16384
        $region44: #{tpu_custom_call.1} parent=39 // pred_fallthru
          _
        // Predicated region
        $region45: #{tpu_custom_call.1} parent=39 // pred_check
          %p264 = pneg %p99
        $region46: #{tpu_custom_call.1} parent=39 // pred_check_branch
          %266 = sbr.rel (%p264) target = $region48
        $region47: #{tpu_custom_call.1} parent=39 // pred_region
          %267 = dma.done [#allocation7], 16
        $region48: #{tpu_custom_call.1} parent=39 // pred_fallthru
          _
        // Predicated region
        $region49: #{tpu_custom_call.1} parent=39 // pred_check
          %p268 = pneg %p120
        $region50: #{tpu_custom_call.1} parent=39 // pred_check_branch
          %270 = sbr.rel (%p268) target = $region52
        $region51: #{tpu_custom_call.1} parent=39 // pred_region
          %271 = dma.done [#allocation7], 512
        $region52: #{tpu_custom_call.1} parent=39 // pred_fallthru
          _
        // Predicated region
        $region53: #{tpu_custom_call.1} parent=39 // pred_check
          %p272 = pneg %p141
        $region54: #{tpu_custom_call.1} parent=39 // pred_check_branch
          %274 = sbr.rel (%p272) target = $region56
        $region55: #{tpu_custom_call.1} parent=39 // pred_region
          %275 = dma.done [#allocation10], 16
        $region56: #{tpu_custom_call.1} parent=39 // pred_fallthru
          _
        %s276 = sand.u32 %s44, 1
        %s277 = scalar_lea.sflag [#allocation4], %s276
        %s278 = sand.u32 %s44, 1
        %s279 = smul.addr %s278, 1024
        %s280 = scalar_lea.vmem [#allocation3], %s279
        %p281 = pneg %p57
        %p282 = pneg %p54
        %p283 = pneg %p78
        %p284 = pneg %p75
        %p285 = pneg %p99
        %p286 = pneg %p96
        %p287 = pneg %p120
        %p288 = pneg %p117
        %p289 = pneg %p141
        %p290 = pneg %p138
        %p291 = pneg %p169
        %p292 = pneg %p166
        %s293 = sand.u32 %s156, 1
        %s294 = scalar_lea.sflag [#allocation5], %s293
        %s295 = sand.u32 %s156, 1
        %s296 = smul.addr %s295, 256
        %s297 = scalar_lea.vmem [#allocation11], %s296
        %s298 = smul.u32 32, %s29
        %s299 = smul.u32 %s29, %s28
        %s300 = smul.u32 32, %s299
        %p302 = scmp.eq.s32.totalorder %s28, 0
        // Predicated region
        $region57: #{tpu_custom_call.1} parent=39 // pred_check
          %p303 = pneg %p302
        $region58: #{tpu_custom_call.1} parent=39 // pred_check_branch
          %305 = sbr.rel (%p303) target = $region60
        $region59: #{tpu_custom_call.1} parent=39 // pred_region
          %v306 = vld [vmem:[%s259] sm:$0xff]
          %v307 = vld [vmem:[%s259 + $0x8] sm:$0xff]
          %v308 = vld [vmem:[%s259 + $0x10] sm:$0xff]
          %v309 = vld [vmem:[%s259 + $0x18] sm:$0xff]
          %v310 = vld [vmem:[%s259 + $0x20] sm:$0xff]
          %v311 = vld [vmem:[%s259 + $0x28] sm:$0xff]
          %v312 = vld [vmem:[%s259 + $0x30] sm:$0xff]
          %v313 = vld [vmem:[%s259 + $0x38] sm:$0xff]
          %v314 = vld [vmem:[%s259 + $0x40] sm:$0xff]
          %v315 = vld [vmem:[%s259 + $0x48] sm:$0xff]
          %v316 = vld [vmem:[%s259 + $0x50] sm:$0xff]
          %v317 = vld [vmem:[%s259 + $0x58] sm:$0xff]
          %v318 = vld [vmem:[%s259 + $0x60] sm:$0xff]
          %v319 = vld [vmem:[%s259 + $0x68] sm:$0xff]
          %v320 = vld [vmem:[%s259 + $0x70] sm:$0xff]
          %v321 = vld [vmem:[%s259 + $0x78] sm:$0xff]
          %v322 = vld [vmem:[%s259 + $0x80] sm:$0xff]
          %v323 = vld [vmem:[%s259 + $0x88] sm:$0xff]
          %v324 = vld [vmem:[%s259 + $0x90] sm:$0xff]
          %v325 = vld [vmem:[%s259 + $0x98] sm:$0xff]
          %v326 = vld [vmem:[%s259 + $0xa0] sm:$0xff]
          %v327 = vld [vmem:[%s259 + $0xa8] sm:$0xff]
          %v328 = vld [vmem:[%s259 + $0xb0] sm:$0xff]
          %v329 = vld [vmem:[%s259 + $0xb8] sm:$0xff]
          %v330 = vld [vmem:[%s259 + $0xc0] sm:$0xff]
          %v331 = vld [vmem:[%s259 + $0xc8] sm:$0xff]
          %v332 = vld [vmem:[%s259 + $0xd0] sm:$0xff]
          %v333 = vld [vmem:[%s259 + $0xd8] sm:$0xff]
          %v334 = vld [vmem:[%s259 + $0xe0] sm:$0xff]
          %v335 = vld [vmem:[%s259 + $0xe8] sm:$0xff]
          %v336 = vld [vmem:[%s259 + $0xf0] sm:$0xff]
          %v337 = vld [vmem:[%s259 + $0xf8] sm:$0xff]
          %v338 = vld [vmem:[%s259 + $0x100] sm:$0xff]
          %v339 = vld [vmem:[%s259 + $0x108] sm:$0xff]
          %v340 = vld [vmem:[%s259 + $0x110] sm:$0xff]
          %v341 = vld [vmem:[%s259 + $0x118] sm:$0xff]
          %v342 = vld [vmem:[%s259 + $0x120] sm:$0xff]
          %v343 = vld [vmem:[%s259 + $0x128] sm:$0xff]
          %v344 = vld [vmem:[%s259 + $0x130] sm:$0xff]
          %v345 = vld [vmem:[%s259 + $0x138] sm:$0xff]
          %v346 = vld [vmem:[%s259 + $0x140] sm:$0xff]
          %v347 = vld [vmem:[%s259 + $0x148] sm:$0xff]
          %v348 = vld [vmem:[%s259 + $0x150] sm:$0xff]
          %v349 = vld [vmem:[%s259 + $0x158] sm:$0xff]
          %v350 = vld [vmem:[%s259 + $0x160] sm:$0xff]
          %v351 = vld [vmem:[%s259 + $0x168] sm:$0xff]
          %v352 = vld [vmem:[%s259 + $0x170] sm:$0xff]
          %v353 = vld [vmem:[%s259 + $0x178] sm:$0xff]
          %v354 = vld [vmem:[%s259 + $0x180] sm:$0xff]
          %v355 = vld [vmem:[%s259 + $0x188] sm:$0xff]
          %v356 = vld [vmem:[%s259 + $0x190] sm:$0xff]
          %v357 = vld [vmem:[%s259 + $0x198] sm:$0xff]
          %v358 = vld [vmem:[%s259 + $0x1a0] sm:$0xff]
          %v359 = vld [vmem:[%s259 + $0x1a8] sm:$0xff]
          %v360 = vld [vmem:[%s259 + $0x1b0] sm:$0xff]
          %v361 = vld [vmem:[%s259 + $0x1b8] sm:$0xff]
          %v362 = vld [vmem:[%s259 + $0x1c0] sm:$0xff]
          %v363 = vld [vmem:[%s259 + $0x1c8] sm:$0xff]
          %v364 = vld [vmem:[%s259 + $0x1d0] sm:$0xff]
          %v365 = vld [vmem:[%s259 + $0x1d8] sm:$0xff]
          %v366 = vld [vmem:[%s259 + $0x1e0] sm:$0xff]
          %v367 = vld [vmem:[%s259 + $0x1e8] sm:$0xff]
          %v368 = vld [vmem:[%s259 + $0x1f0] sm:$0xff]
          %v369 = vld [vmem:[%s259 + $0x1f8] sm:$0xff]
          %v370 = vld [vmem:[%s259 + $0x200] sm:$0xff]
          %v371 = vld [vmem:[%s259 + $0x208] sm:$0xff]
          %v372 = vld [vmem:[%s259 + $0x210] sm:$0xff]
          %v373 = vld [vmem:[%s259 + $0x218] sm:$0xff]
          %v374 = vld [vmem:[%s259 + $0x220] sm:$0xff]
          %v375 = vld [vmem:[%s259 + $0x228] sm:$0xff]
          %v376 = vld [vmem:[%s259 + $0x230] sm:$0xff]
          %v377 = vld [vmem:[%s259 + $0x238] sm:$0xff]
          %v378 = vld [vmem:[%s259 + $0x240] sm:$0xff]
          %v379 = vld [vmem:[%s259 + $0x248] sm:$0xff]
          %v380 = vld [vmem:[%s259 + $0x250] sm:$0xff]
          %v381 = vld [vmem:[%s259 + $0x258] sm:$0xff]
          %v382 = vld [vmem:[%s259 + $0x260] sm:$0xff]
          %v383 = vld [vmem:[%s259 + $0x268] sm:$0xff]
          %v384 = vld [vmem:[%s259 + $0x270] sm:$0xff]
          %v385 = vld [vmem:[%s259 + $0x278] sm:$0xff]
          %v386 = vld [vmem:[%s259 + $0x280] sm:$0xff]
          %v387 = vld [vmem:[%s259 + $0x288] sm:$0xff]
          %v388 = vld [vmem:[%s259 + $0x290] sm:$0xff]
          %v389 = vld [vmem:[%s259 + $0x298] sm:$0xff]
          %v390 = vld [vmem:[%s259 + $0x2a0] sm:$0xff]
          %v391 = vld [vmem:[%s259 + $0x2a8] sm:$0xff]
          %v392 = vld [vmem:[%s259 + $0x2b0] sm:$0xff]
          %v393 = vld [vmem:[%s259 + $0x2b8] sm:$0xff]
          %v394 = vld [vmem:[%s259 + $0x2c0] sm:$0xff]
          %v395 = vld [vmem:[%s259 + $0x2c8] sm:$0xff]
          %v396 = vld [vmem:[%s259 + $0x2d0] sm:$0xff]
          %v397 = vld [vmem:[%s259 + $0x2d8] sm:$0xff]
          %v398 = vld [vmem:[%s259 + $0x2e0] sm:$0xff]
          %v399 = vld [vmem:[%s259 + $0x2e8] sm:$0xff]
          %v400 = vld [vmem:[%s259 + $0x2f0] sm:$0xff]
          %v401 = vld [vmem:[%s259 + $0x2f8] sm:$0xff]
          %v402 = vld [vmem:[%s259 + $0x300] sm:$0xff]
          %v403 = vld [vmem:[%s259 + $0x308] sm:$0xff]
          %v404 = vld [vmem:[%s259 + $0x310] sm:$0xff]
          %v405 = vld [vmem:[%s259 + $0x318] sm:$0xff]
          %v406 = vld [vmem:[%s259 + $0x320] sm:$0xff]
          %v407 = vld [vmem:[%s259 + $0x328] sm:$0xff]
          %v408 = vld [vmem:[%s259 + $0x330] sm:$0xff]
          %v409 = vld [vmem:[%s259 + $0x338] sm:$0xff]
          %v410 = vld [vmem:[%s259 + $0x340] sm:$0xff]
          %v411 = vld [vmem:[%s259 + $0x348] sm:$0xff]
          %v412 = vld [vmem:[%s259 + $0x350] sm:$0xff]
          %v413 = vld [vmem:[%s259 + $0x358] sm:$0xff]
          %v414 = vld [vmem:[%s259 + $0x360] sm:$0xff]
          %v415 = vld [vmem:[%s259 + $0x368] sm:$0xff]
          %v416 = vld [vmem:[%s259 + $0x370] sm:$0xff]
          %v417 = vld [vmem:[%s259 + $0x378] sm:$0xff]
          %v418 = vld [vmem:[%s259 + $0x380] sm:$0xff]
          %v419 = vld [vmem:[%s259 + $0x388] sm:$0xff]
          %v420 = vld [vmem:[%s259 + $0x390] sm:$0xff]
          %v421 = vld [vmem:[%s259 + $0x398] sm:$0xff]
          %v422 = vld [vmem:[%s259 + $0x3a0] sm:$0xff]
          %v423 = vld [vmem:[%s259 + $0x3a8] sm:$0xff]
          %v424 = vld [vmem:[%s259 + $0x3b0] sm:$0xff]
          %v425 = vld [vmem:[%s259 + $0x3b8] sm:$0xff]
          %v426 = vld [vmem:[%s259 + $0x3c0] sm:$0xff]
          %v427 = vld [vmem:[%s259 + $0x3c8] sm:$0xff]
          %v428 = vld [vmem:[%s259 + $0x3d0] sm:$0xff]
          %v429 = vld [vmem:[%s259 + $0x3d8] sm:$0xff]
          %v430 = vld [vmem:[%s259 + $0x3e0] sm:$0xff]
          %v431 = vld [vmem:[%s259 + $0x3e8] sm:$0xff]
          %v432 = vld [vmem:[%s259 + $0x3f0] sm:$0xff]
          %v433 = vld [vmem:[%s259 + $0x3f8] sm:$0xff]
          %v434 = vld [vmem:[%s1] sm:$0xf]
          %v435 = vld [vmem:[%s1 + $0x4] sm:$0xf]
          %v436 = vld [vmem:[%s1 + $0x8] sm:$0xf]
          %v437 = vld [vmem:[%s1 + $0xc] sm:$0xf]
          %v438 = vld [vmem:[%s1 + $0x10] sm:$0xf]
          %v439 = vld [vmem:[%s1 + $0x14] sm:$0xf]
          %v440 = vld [vmem:[%s1 + $0x18] sm:$0xf]
          %v441 = vld [vmem:[%s1 + $0x1c] sm:$0xf]
          %v442 = vld [vmem:[%s1 + $0x20] sm:$0xf]
          %v443 = vld [vmem:[%s1 + $0x24] sm:$0xf]
          %v444 = vld [vmem:[%s1 + $0x28] sm:$0xf]
          %v445 = vld [vmem:[%s1 + $0x2c] sm:$0xf]
          %v446 = vld [vmem:[%s1 + $0x30] sm:$0xf]
          %v447 = vld [vmem:[%s1 + $0x34] sm:$0xf]
          %v448 = vld [vmem:[%s1 + $0x38] sm:$0xf]
          %v449 = vld [vmem:[%s1 + $0x3c] sm:$0xf]
          %v450 = vld [vmem:[%s1 + $0x40] sm:$0xf]
          %v451 = vld [vmem:[%s1 + $0x44] sm:$0xf]
          %v452 = vld [vmem:[%s1 + $0x48] sm:$0xf]
          %v453 = vld [vmem:[%s1 + $0x4c] sm:$0xf]
          %v454 = vld [vmem:[%s1 + $0x50] sm:$0xf]
          %v455 = vld [vmem:[%s1 + $0x54] sm:$0xf]
          %v456 = vld [vmem:[%s1 + $0x58] sm:$0xf]
          %v457 = vld [vmem:[%s1 + $0x5c] sm:$0xf]
          %v458 = vld [vmem:[%s1 + $0x60] sm:$0xf]
          %v459 = vld [vmem:[%s1 + $0x64] sm:$0xf]
          %v460 = vld [vmem:[%s1 + $0x68] sm:$0xf]
          %v461 = vld [vmem:[%s1 + $0x6c] sm:$0xf]
          %v462 = vld [vmem:[%s1 + $0x70] sm:$0xf]
          %v463 = vld [vmem:[%s1 + $0x74] sm:$0xf]
          %v464 = vld [vmem:[%s1 + $0x78] sm:$0xf]
          %v465 = vld [vmem:[%s1 + $0x7c] sm:$0xf]
          %v466 = vld [vmem:[%s1 + $0x80] sm:$0xf]
          %v467 = vld [vmem:[%s1 + $0x84] sm:$0xf]
          %v468 = vld [vmem:[%s1 + $0x88] sm:$0xf]
          %v469 = vld [vmem:[%s1 + $0x8c] sm:$0xf]
          %v470 = vld [vmem:[%s1 + $0x90] sm:$0xf]
          %v471 = vld [vmem:[%s1 + $0x94] sm:$0xf]
          %v472 = vld [vmem:[%s1 + $0x98] sm:$0xf]
          %v473 = vld [vmem:[%s1 + $0x9c] sm:$0xf]
          %v474 = vld [vmem:[%s1 + $0xa0] sm:$0xf]
          %v475 = vld [vmem:[%s1 + $0xa4] sm:$0xf]
          %v476 = vld [vmem:[%s1 + $0xa8] sm:$0xf]
          %v477 = vld [vmem:[%s1 + $0xac] sm:$0xf]
          %v478 = vld [vmem:[%s1 + $0xb0] sm:$0xf]
          %v479 = vld [vmem:[%s1 + $0xb4] sm:$0xf]
          %v480 = vld [vmem:[%s1 + $0xb8] sm:$0xf]
          %v481 = vld [vmem:[%s1 + $0xbc] sm:$0xf]
          %v482 = vld [vmem:[%s1 + $0xc0] sm:$0xf]
          %v483 = vld [vmem:[%s1 + $0xc4] sm:$0xf]
          %v484 = vld [vmem:[%s1 + $0xc8] sm:$0xf]
          %v485 = vld [vmem:[%s1 + $0xcc] sm:$0xf]
          %v486 = vld [vmem:[%s1 + $0xd0] sm:$0xf]
          %v487 = vld [vmem:[%s1 + $0xd4] sm:$0xf]
          %v488 = vld [vmem:[%s1 + $0xd8] sm:$0xf]
          %v489 = vld [vmem:[%s1 + $0xdc] sm:$0xf]
          %v490 = vld [vmem:[%s1 + $0xe0] sm:$0xf]
          %v491 = vld [vmem:[%s1 + $0xe4] sm:$0xf]
          %v492 = vld [vmem:[%s1 + $0xe8] sm:$0xf]
          %v493 = vld [vmem:[%s1 + $0xec] sm:$0xf]
          %v494 = vld [vmem:[%s1 + $0xf0] sm:$0xf]
          %v495 = vld [vmem:[%s1 + $0xf4] sm:$0xf]
          %v496 = vld [vmem:[%s1 + $0xf8] sm:$0xf]
          %v497 = vld [vmem:[%s1 + $0xfc] sm:$0xf]
          %v498 = vld [vmem:[%s1 + $0x100] sm:$0xf]
          %v499 = vld [vmem:[%s1 + $0x104] sm:$0xf]
          %v500 = vld [vmem:[%s1 + $0x108] sm:$0xf]
          %v501 = vld [vmem:[%s1 + $0x10c] sm:$0xf]
          %v502 = vld [vmem:[%s1 + $0x110] sm:$0xf]
          %v503 = vld [vmem:[%s1 + $0x114] sm:$0xf]
          %v504 = vld [vmem:[%s1 + $0x118] sm:$0xf]
          %v505 = vld [vmem:[%s1 + $0x11c] sm:$0xf]
          %v506 = vld [vmem:[%s1 + $0x120] sm:$0xf]
          %v507 = vld [vmem:[%s1 + $0x124] sm:$0xf]
          %v508 = vld [vmem:[%s1 + $0x128] sm:$0xf]
          %v509 = vld [vmem:[%s1 + $0x12c] sm:$0xf]
          %v510 = vld [vmem:[%s1 + $0x130] sm:$0xf]
          %v511 = vld [vmem:[%s1 + $0x134] sm:$0xf]
          %v512 = vld [vmem:[%s1 + $0x138] sm:$0xf]
          %v513 = vld [vmem:[%s1 + $0x13c] sm:$0xf]
          %v514 = vld [vmem:[%s1 + $0x140] sm:$0xf]
          %v515 = vld [vmem:[%s1 + $0x144] sm:$0xf]
          %v516 = vld [vmem:[%s1 + $0x148] sm:$0xf]
          %v517 = vld [vmem:[%s1 + $0x14c] sm:$0xf]
          %v518 = vld [vmem:[%s1 + $0x150] sm:$0xf]
          %v519 = vld [vmem:[%s1 + $0x154] sm:$0xf]
          %v520 = vld [vmem:[%s1 + $0x158] sm:$0xf]
          %v521 = vld [vmem:[%s1 + $0x15c] sm:$0xf]
          %v522 = vld [vmem:[%s1 + $0x160] sm:$0xf]
          %v523 = vld [vmem:[%s1 + $0x164] sm:$0xf]
          %v524 = vld [vmem:[%s1 + $0x168] sm:$0xf]
          %v525 = vld [vmem:[%s1 + $0x16c] sm:$0xf]
          %v526 = vld [vmem:[%s1 + $0x170] sm:$0xf]
          %v527 = vld [vmem:[%s1 + $0x174] sm:$0xf]
          %v528 = vld [vmem:[%s1 + $0x178] sm:$0xf]
          %v529 = vld [vmem:[%s1 + $0x17c] sm:$0xf]
          %v530 = vld [vmem:[%s1 + $0x180] sm:$0xf]
          %v531 = vld [vmem:[%s1 + $0x184] sm:$0xf]
          %v532 = vld [vmem:[%s1 + $0x188] sm:$0xf]
          %v533 = vld [vmem:[%s1 + $0x18c] sm:$0xf]
          %v534 = vld [vmem:[%s1 + $0x190] sm:$0xf]
          %v535 = vld [vmem:[%s1 + $0x194] sm:$0xf]
          %v536 = vld [vmem:[%s1 + $0x198] sm:$0xf]
          %v537 = vld [vmem:[%s1 + $0x19c] sm:$0xf]
          %v538 = vld [vmem:[%s1 + $0x1a0] sm:$0xf]
          %v539 = vld [vmem:[%s1 + $0x1a4] sm:$0xf]
          %v540 = vld [vmem:[%s1 + $0x1a8] sm:$0xf]
          %v541 = vld [vmem:[%s1 + $0x1ac] sm:$0xf]
          %v542 = vld [vmem:[%s1 + $0x1b0] sm:$0xf]
          %v543 = vld [vmem:[%s1 + $0x1b4] sm:$0xf]
          %v544 = vld [vmem:[%s1 + $0x1b8] sm:$0xf]
          %v545 = vld [vmem:[%s1 + $0x1bc] sm:$0xf]
          %v546 = vld [vmem:[%s1 + $0x1c0] sm:$0xf]
          %v547 = vld [vmem:[%s1 + $0x1c4] sm:$0xf]
          %v548 = vld [vmem:[%s1 + $0x1c8] sm:$0xf]
          %v549 = vld [vmem:[%s1 + $0x1cc] sm:$0xf]
          %v550 = vld [vmem:[%s1 + $0x1d0] sm:$0xf]
          %v551 = vld [vmem:[%s1 + $0x1d4] sm:$0xf]
          %v552 = vld [vmem:[%s1 + $0x1d8] sm:$0xf]
          %v553 = vld [vmem:[%s1 + $0x1dc] sm:$0xf]
          %v554 = vld [vmem:[%s1 + $0x1e0] sm:$0xf]
          %v555 = vld [vmem:[%s1 + $0x1e4] sm:$0xf]
          %v556 = vld [vmem:[%s1 + $0x1e8] sm:$0xf]
          %v557 = vld [vmem:[%s1 + $0x1ec] sm:$0xf]
          %v558 = vld [vmem:[%s1 + $0x1f0] sm:$0xf]
          %v559 = vld [vmem:[%s1 + $0x1f4] sm:$0xf]
          %v560 = vld [vmem:[%s1 + $0x1f8] sm:$0xf]
          %v561 = vld [vmem:[%s1 + $0x1fc] sm:$0xf]
          %v562 = vld [vmem:[#allocation6] sm:$0x1]
          %v564 = vlaneseq
          %v565 = vshrl.u32 %v564, 7
          %v566 = vsub.s32 0, %v565
          %v567 = vrot.slane %v562, %v566
          %v697 = vunpack.c.l.b16 %v306
          %v698 = vunpack.c.h.b16 %v306
          %v699 = vunpack.c.l.b16 %v307
          %v700 = vunpack.c.h.b16 %v307
          %v701 = vunpack.c.l.b16 %v308
          %v702 = vunpack.c.h.b16 %v308
          %v703 = vunpack.c.l.b16 %v309
          %v704 = vunpack.c.h.b16 %v309
          %v705 = vunpack.c.l.b16 %v310
          %v706 = vunpack.c.h.b16 %v310
          %v707 = vunpack.c.l.b16 %v311
          %v708 = vunpack.c.h.b16 %v311
          %v709 = vunpack.c.l.b16 %v312
          %v710 = vunpack.c.h.b16 %v312
          %v711 = vunpack.c.l.b16 %v313
          %v712 = vunpack.c.h.b16 %v313
          %v713 = vunpack.c.l.b16 %v314
          %v714 = vunpack.c.h.b16 %v314
          %v715 = vunpack.c.l.b16 %v315
          %v716 = vunpack.c.h.b16 %v315
          %v717 = vunpack.c.l.b16 %v316
          %v718 = vunpack.c.h.b16 %v316
          %v719 = vunpack.c.l.b16 %v317
          %v720 = vunpack.c.h.b16 %v317
          %v721 = vunpack.c.l.b16 %v318
          %v722 = vunpack.c.h.b16 %v318
          %v723 = vunpack.c.l.b16 %v319
          %v724 = vunpack.c.h.b16 %v319
          %v725 = vunpack.c.l.b16 %v320
          %v726 = vunpack.c.h.b16 %v320
          %v727 = vunpack.c.l.b16 %v321
          %v728 = vunpack.c.h.b16 %v321
          %v729 = vunpack.c.l.b16 %v322
          %v730 = vunpack.c.h.b16 %v322
          %v731 = vunpack.c.l.b16 %v323
          %v732 = vunpack.c.h.b16 %v323
          %v733 = vunpack.c.l.b16 %v324
          %v734 = vunpack.c.h.b16 %v324
          %v735 = vunpack.c.l.b16 %v325
          %v736 = vunpack.c.h.b16 %v325
          %v737 = vunpack.c.l.b16 %v326
          %v738 = vunpack.c.h.b16 %v326
          %v739 = vunpack.c.l.b16 %v327
          %v740 = vunpack.c.h.b16 %v327
          %v741 = vunpack.c.l.b16 %v328
          %v742 = vunpack.c.h.b16 %v328
          %v743 = vunpack.c.l.b16 %v329
          %v744 = vunpack.c.h.b16 %v329
          %v745 = vunpack.c.l.b16 %v330
          %v746 = vunpack.c.h.b16 %v330
          %v747 = vunpack.c.l.b16 %v331
          %v748 = vunpack.c.h.b16 %v331
          %v749 = vunpack.c.l.b16 %v332
          %v750 = vunpack.c.h.b16 %v332
          %v751 = vunpack.c.l.b16 %v333
          %v752 = vunpack.c.h.b16 %v333
          %v753 = vunpack.c.l.b16 %v334
          %v754 = vunpack.c.h.b16 %v334
          %v755 = vunpack.c.l.b16 %v335
          %v756 = vunpack.c.h.b16 %v335
          %v757 = vunpack.c.l.b16 %v336
          %v758 = vunpack.c.h.b16 %v336
          %v759 = vunpack.c.l.b16 %v337
          %v760 = vunpack.c.h.b16 %v337
          %v761 = vunpack.c.l.b16 %v338
          %v762 = vunpack.c.h.b16 %v338
          %v763 = vunpack.c.l.b16 %v339
          %v764 = vunpack.c.h.b16 %v339
          %v765 = vunpack.c.l.b16 %v340
          %v766 = vunpack.c.h.b16 %v340
          %v767 = vunpack.c.l.b16 %v341
          %v768 = vunpack.c.h.b16 %v341
          %v769 = vunpack.c.l.b16 %v342
          %v770 = vunpack.c.h.b16 %v342
          %v771 = vunpack.c.l.b16 %v343
          %v772 = vunpack.c.h.b16 %v343
          %v773 = vunpack.c.l.b16 %v344
          %v774 = vunpack.c.h.b16 %v344
          %v775 = vunpack.c.l.b16 %v345
          %v776 = vunpack.c.h.b16 %v345
          %v777 = vunpack.c.l.b16 %v346
          %v778 = vunpack.c.h.b16 %v346
          %v779 = vunpack.c.l.b16 %v347
          %v780 = vunpack.c.h.b16 %v347
          %v781 = vunpack.c.l.b16 %v348
          %v782 = vunpack.c.h.b16 %v348
          %v783 = vunpack.c.l.b16 %v349
          %v784 = vunpack.c.h.b16 %v349
          %v785 = vunpack.c.l.b16 %v350
          %v786 = vunpack.c.h.b16 %v350
          %v787 = vunpack.c.l.b16 %v351
          %v788 = vunpack.c.h.b16 %v351
          %v789 = vunpack.c.l.b16 %v352
          %v790 = vunpack.c.h.b16 %v352
          %v791 = vunpack.c.l.b16 %v353
          %v792 = vunpack.c.h.b16 %v353
          %v793 = vunpack.c.l.b16 %v354
          %v794 = vunpack.c.h.b16 %v354
          %v795 = vunpack.c.l.b16 %v355
          %v796 = vunpack.c.h.b16 %v355
          %v797 = vunpack.c.l.b16 %v356
          %v798 = vunpack.c.h.b16 %v356
          %v799 = vunpack.c.l.b16 %v357
          %v800 = vunpack.c.h.b16 %v357
          %v801 = vunpack.c.l.b16 %v358
          %v802 = vunpack.c.h.b16 %v358
          %v803 = vunpack.c.l.b16 %v359
          %v804 = vunpack.c.h.b16 %v359
          %v805 = vunpack.c.l.b16 %v360
          %v806 = vunpack.c.h.b16 %v360
          %v807 = vunpack.c.l.b16 %v361
          %v808 = vunpack.c.h.b16 %v361
          %v809 = vunpack.c.l.b16 %v362
          %v810 = vunpack.c.h.b16 %v362
          %v811 = vunpack.c.l.b16 %v363
          %v812 = vunpack.c.h.b16 %v363
          %v813 = vunpack.c.l.b16 %v364
          %v814 = vunpack.c.h.b16 %v364
          %v815 = vunpack.c.l.b16 %v365
          %v816 = vunpack.c.h.b16 %v365
          %v817 = vunpack.c.l.b16 %v366
          %v818 = vunpack.c.h.b16 %v366
          %v819 = vunpack.c.l.b16 %v367
          %v820 = vunpack.c.h.b16 %v367
          %v821 = vunpack.c.l.b16 %v368
          %v822 = vunpack.c.h.b16 %v368
          %v823 = vunpack.c.l.b16 %v369
          %v824 = vunpack.c.h.b16 %v369
          %v825 = vunpack.c.l.b16 %v370
          %v826 = vunpack.c.h.b16 %v370
          %v827 = vunpack.c.l.b16 %v371
          %v828 = vunpack.c.h.b16 %v371
          %v829 = vunpack.c.l.b16 %v372
          %v830 = vunpack.c.h.b16 %v372
          %v831 = vunpack.c.l.b16 %v373
          %v832 = vunpack.c.h.b16 %v373
          %v833 = vunpack.c.l.b16 %v374
          %v834 = vunpack.c.h.b16 %v374
          %v835 = vunpack.c.l.b16 %v375
          %v836 = vunpack.c.h.b16 %v375
          %v837 = vunpack.c.l.b16 %v376
          %v838 = vunpack.c.h.b16 %v376
          %v839 = vunpack.c.l.b16 %v377
          %v840 = vunpack.c.h.b16 %v377
          %v841 = vunpack.c.l.b16 %v378
          %v842 = vunpack.c.h.b16 %v378
          %v843 = vunpack.c.l.b16 %v379
          %v844 = vunpack.c.h.b16 %v379
          %v845 = vunpack.c.l.b16 %v380
          %v846 = vunpack.c.h.b16 %v380
          %v847 = vunpack.c.l.b16 %v381
          %v848 = vunpack.c.h.b16 %v381
          %v849 = vunpack.c.l.b16 %v382
          %v850 = vunpack.c.h.b16 %v382
          %v851 = vunpack.c.l.b16 %v383
          %v852 = vunpack.c.h.b16 %v383
          %v853 = vunpack.c.l.b16 %v384
          %v854 = vunpack.c.h.b16 %v384
          %v855 = vunpack.c.l.b16 %v385
          %v856 = vunpack.c.h.b16 %v385
          %v857 = vunpack.c.l.b16 %v386
          %v858 = vunpack.c.h.b16 %v386
          %v859 = vunpack.c.l.b16 %v387
          %v860 = vunpack.c.h.b16 %v387
          %v861 = vunpack.c.l.b16 %v388
          %v862 = vunpack.c.h.b16 %v388
          %v863 = vunpack.c.l.b16 %v389
          %v864 = vunpack.c.h.b16 %v389
          %v865 = vunpack.c.l.b16 %v390
          %v866 = vunpack.c.h.b16 %v390
          %v867 = vunpack.c.l.b16 %v391
          %v868 = vunpack.c.h.b16 %v391
          %v869 = vunpack.c.l.b16 %v392
          %v870 = vunpack.c.h.b16 %v392
          %v871 = vunpack.c.l.b16 %v393
          %v872 = vunpack.c.h.b16 %v393
          %v873 = vunpack.c.l.b16 %v394
          %v874 = vunpack.c.h.b16 %v394
          %v875 = vunpack.c.l.b16 %v395
          %v876 = vunpack.c.h.b16 %v395
          %v877 = vunpack.c.l.b16 %v396
          %v878 = vunpack.c.h.b16 %v396
          %v879 = vunpack.c.l.b16 %v397
          %v880 = vunpack.c.h.b16 %v397
          %v881 = vunpack.c.l.b16 %v398
          %v882 = vunpack.c.h.b16 %v398
          %v883 = vunpack.c.l.b16 %v399
          %v884 = vunpack.c.h.b16 %v399
          %v885 = vunpack.c.l.b16 %v400
          %v886 = vunpack.c.h.b16 %v400
          %v887 = vunpack.c.l.b16 %v401
          %v888 = vunpack.c.h.b16 %v401
          %v889 = vunpack.c.l.b16 %v402
          %v890 = vunpack.c.h.b16 %v402
          %v891 = vunpack.c.l.b16 %v403
          %v892 = vunpack.c.h.b16 %v403
          %v893 = vunpack.c.l.b16 %v404
          %v894 = vunpack.c.h.b16 %v404
          %v895 = vunpack.c.l.b16 %v405
          %v896 = vunpack.c.h.b16 %v405
          %v897 = vunpack.c.l.b16 %v406
          %v898 = vunpack.c.h.b16 %v406
          %v899 = vunpack.c.l.b16 %v407
          %v900 = vunpack.c.h.b16 %v407
          %v901 = vunpack.c.l.b16 %v408
          %v902 = vunpack.c.h.b16 %v408
          %v903 = vunpack.c.l.b16 %v409
          %v904 = vunpack.c.h.b16 %v409
          %v905 = vunpack.c.l.b16 %v410
          %v906 = vunpack.c.h.b16 %v410
          %v907 = vunpack.c.l.b16 %v411
          %v908 = vunpack.c.h.b16 %v411
          %v909 = vunpack.c.l.b16 %v412
          %v910 = vunpack.c.h.b16 %v412
          %v911 = vunpack.c.l.b16 %v413
          %v912 = vunpack.c.h.b16 %v413
          %v913 = vunpack.c.l.b16 %v414
          %v914 = vunpack.c.h.b16 %v414
          %v915 = vunpack.c.l.b16 %v415
          %v916 = vunpack.c.h.b16 %v415
          %v917 = vunpack.c.l.b16 %v416
          %v918 = vunpack.c.h.b16 %v416
          %v919 = vunpack.c.l.b16 %v417
          %v920 = vunpack.c.h.b16 %v417
          %v921 = vunpack.c.l.b16 %v418
          %v922 = vunpack.c.h.b16 %v418
          %v923 = vunpack.c.l.b16 %v419
          %v924 = vunpack.c.h.b16 %v419
          %v925 = vunpack.c.l.b16 %v420
          %v926 = vunpack.c.h.b16 %v420
          %v927 = vunpack.c.l.b16 %v421
          %v928 = vunpack.c.h.b16 %v421
          %v929 = vunpack.c.l.b16 %v422
          %v930 = vunpack.c.h.b16 %v422
          %v931 = vunpack.c.l.b16 %v423
          %v932 = vunpack.c.h.b16 %v423
          %v933 = vunpack.c.l.b16 %v424
          %v934 = vunpack.c.h.b16 %v424
          %v935 = vunpack.c.l.b16 %v425
          %v936 = vunpack.c.h.b16 %v425
          %v937 = vunpack.c.l.b16 %v426
          %v938 = vunpack.c.h.b16 %v426
          %v939 = vunpack.c.l.b16 %v427
          %v940 = vunpack.c.h.b16 %v427
          %v941 = vunpack.c.l.b16 %v428
          %v942 = vunpack.c.h.b16 %v428
          %v943 = vunpack.c.l.b16 %v429
          %v944 = vunpack.c.h.b16 %v429
          %v945 = vunpack.c.l.b16 %v430
          %v946 = vunpack.c.h.b16 %v430
          %v947 = vunpack.c.l.b16 %v431
          %v948 = vunpack.c.h.b16 %v431
          %v949 = vunpack.c.l.b16 %v432
          %v950 = vunpack.c.h.b16 %v432
          %v951 = vunpack.c.l.b16 %v433
          %v952 = vunpack.c.h.b16 %v433
          %v953 = vpack.c.b16 %v705, %v697
          %v954 = vpack.c.b16 %v706, %v698
          %v955 = vpack.c.b16 %v707, %v699
          %v956 = vpack.c.b16 %v708, %v700
          %v957 = vpack.c.b16 %v709, %v701
          %v958 = vpack.c.b16 %v710, %v702
          %v959 = vpack.c.b16 %v711, %v703
          %v960 = vpack.c.b16 %v712, %v704
          %v961 = vpack.c.b16 %v721, %v713
          %v962 = vpack.c.b16 %v722, %v714
          %v963 = vpack.c.b16 %v723, %v715
          %v964 = vpack.c.b16 %v724, %v716
          %v965 = vpack.c.b16 %v725, %v717
          %v966 = vpack.c.b16 %v726, %v718
          %v967 = vpack.c.b16 %v727, %v719
          %v968 = vpack.c.b16 %v728, %v720
          %v969 = vpack.c.b16 %v737, %v729
          %v970 = vpack.c.b16 %v738, %v730
          %v971 = vpack.c.b16 %v739, %v731
          %v972 = vpack.c.b16 %v740, %v732
          %v973 = vpack.c.b16 %v741, %v733
          %v974 = vpack.c.b16 %v742, %v734
          %v975 = vpack.c.b16 %v743, %v735
          %v976 = vpack.c.b16 %v744, %v736
          %v977 = vpack.c.b16 %v753, %v745
          %v978 = vpack.c.b16 %v754, %v746
          %v979 = vpack.c.b16 %v755, %v747
          %v980 = vpack.c.b16 %v756, %v748
          %v981 = vpack.c.b16 %v757, %v749
          %v982 = vpack.c.b16 %v758, %v750
          %v983 = vpack.c.b16 %v759, %v751
          %v984 = vpack.c.b16 %v760, %v752
          %v985 = vpack.c.b16 %v769, %v761
          %v986 = vpack.c.b16 %v770, %v762
          %v987 = vpack.c.b16 %v771, %v763
          %v988 = vpack.c.b16 %v772, %v764
          %v989 = vpack.c.b16 %v773, %v765
          %v990 = vpack.c.b16 %v774, %v766
          %v991 = vpack.c.b16 %v775, %v767
          %v992 = vpack.c.b16 %v776, %v768
          %v993 = vpack.c.b16 %v785, %v777
          %v994 = vpack.c.b16 %v786, %v778
          %v995 = vpack.c.b16 %v787, %v779
          %v996 = vpack.c.b16 %v788, %v780
          %v997 = vpack.c.b16 %v789, %v781
          %v998 = vpack.c.b16 %v790, %v782
          %v999 = vpack.c.b16 %v791, %v783
          %v1000 = vpack.c.b16 %v792, %v784
          %v1001 = vpack.c.b16 %v801, %v793
          %v1002 = vpack.c.b16 %v802, %v794
          %v1003 = vpack.c.b16 %v803, %v795
          %v1004 = vpack.c.b16 %v804, %v796
          %v1005 = vpack.c.b16 %v805, %v797
          %v1006 = vpack.c.b16 %v806, %v798
          %v1007 = vpack.c.b16 %v807, %v799
          %v1008 = vpack.c.b16 %v808, %v800
          %v1009 = vpack.c.b16 %v817, %v809
          %v1010 = vpack.c.b16 %v818, %v810
          %v1011 = vpack.c.b16 %v819, %v811
          %v1012 = vpack.c.b16 %v820, %v812
          %v1013 = vpack.c.b16 %v821, %v813
          %v1014 = vpack.c.b16 %v822, %v814
          %v1015 = vpack.c.b16 %v823, %v815
          %v1016 = vpack.c.b16 %v824, %v816
          %v1017 = vpack.c.b16 %v833, %v825
          %v1018 = vpack.c.b16 %v834, %v826
          %v1019 = vpack.c.b16 %v835, %v827
          %v1020 = vpack.c.b16 %v836, %v828
          %v1021 = vpack.c.b16 %v837, %v829
          %v1022 = vpack.c.b16 %v838, %v830
          %v1023 = vpack.c.b16 %v839, %v831
          %v1024 = vpack.c.b16 %v840, %v832
          %v1025 = vpack.c.b16 %v849, %v841
          %v1026 = vpack.c.b16 %v850, %v842
          %v1027 = vpack.c.b16 %v851, %v843
          %v1028 = vpack.c.b16 %v852, %v844
          %v1029 = vpack.c.b16 %v853, %v845
          %v1030 = vpack.c.b16 %v854, %v846
          %v1031 = vpack.c.b16 %v855, %v847
          %v1032 = vpack.c.b16 %v856, %v848
          %v1033 = vpack.c.b16 %v865, %v857
          %v1034 = vpack.c.b16 %v866, %v858
          %v1035 = vpack.c.b16 %v867, %v859
          %v1036 = vpack.c.b16 %v868, %v860
          %v1037 = vpack.c.b16 %v869, %v861
          %v1038 = vpack.c.b16 %v870, %v862
          %v1039 = vpack.c.b16 %v871, %v863
          %v1040 = vpack.c.b16 %v872, %v864
          %v1041 = vpack.c.b16 %v881, %v873
          %v1042 = vpack.c.b16 %v882, %v874
          %v1043 = vpack.c.b16 %v883, %v875
          %v1044 = vpack.c.b16 %v884, %v876
          %v1045 = vpack.c.b16 %v885, %v877
          %v1046 = vpack.c.b16 %v886, %v878
          %v1047 = vpack.c.b16 %v887, %v879
          %v1048 = vpack.c.b16 %v888, %v880
          %v1049 = vpack.c.b16 %v897, %v889
          %v1050 = vpack.c.b16 %v898, %v890
          %v1051 = vpack.c.b16 %v899, %v891
          %v1052 = vpack.c.b16 %v900, %v892
          %v1053 = vpack.c.b16 %v901, %v893
          %v1054 = vpack.c.b16 %v902, %v894
          %v1055 = vpack.c.b16 %v903, %v895
          %v1056 = vpack.c.b16 %v904, %v896
          %v1057 = vpack.c.b16 %v913, %v905
          %v1058 = vpack.c.b16 %v914, %v906
          %v1059 = vpack.c.b16 %v915, %v907
          %v1060 = vpack.c.b16 %v916, %v908
          %v1061 = vpack.c.b16 %v917, %v909
          %v1062 = vpack.c.b16 %v918, %v910
          %v1063 = vpack.c.b16 %v919, %v911
          %v1064 = vpack.c.b16 %v920, %v912
          %v1065 = vpack.c.b16 %v929, %v921
          %v1066 = vpack.c.b16 %v930, %v922
          %v1067 = vpack.c.b16 %v931, %v923
          %v1068 = vpack.c.b16 %v932, %v924
          %v1069 = vpack.c.b16 %v933, %v925
          %v1070 = vpack.c.b16 %v934, %v926
          %v1071 = vpack.c.b16 %v935, %v927
          %v1072 = vpack.c.b16 %v936, %v928
          %v1073 = vpack.c.b16 %v945, %v937
          %v1074 = vpack.c.b16 %v946, %v938
          %v1075 = vpack.c.b16 %v947, %v939
          %v1076 = vpack.c.b16 %v948, %v940
          %v1077 = vpack.c.b16 %v949, %v941
          %v1078 = vpack.c.b16 %v950, %v942
          %v1079 = vpack.c.b16 %v951, %v943
          %v1080 = vpack.c.b16 %v952, %v944
          %v1337 = vunpack.c.l.b16 %v434
          %v1338 = vunpack.c.l.b16 %v435
          %v1339 = vunpack.c.l.b16 %v436
          %v1340 = vunpack.c.l.b16 %v437
          %v1341 = vunpack.c.l.b16 %v438
          %v1342 = vunpack.c.l.b16 %v439
          %v1343 = vunpack.c.l.b16 %v440
          %v1344 = vunpack.c.l.b16 %v441
          %v1345 = vunpack.c.l.b16 %v442
          %v1346 = vunpack.c.l.b16 %v443
          %v1347 = vunpack.c.l.b16 %v444
          %v1348 = vunpack.c.l.b16 %v445
          %v1349 = vunpack.c.l.b16 %v446
          %v1350 = vunpack.c.l.b16 %v447
          %v1351 = vunpack.c.l.b16 %v448
          %v1352 = vunpack.c.l.b16 %v449
          %v1353 = vunpack.c.l.b16 %v450
          %v1354 = vunpack.c.l.b16 %v451
          %v1355 = vunpack.c.l.b16 %v452
          %v1356 = vunpack.c.l.b16 %v453
          %v1357 = vunpack.c.l.b16 %v454
          %v1358 = vunpack.c.l.b16 %v455
          %v1359 = vunpack.c.l.b16 %v456
          %v1360 = vunpack.c.l.b16 %v457
          %v1361 = vunpack.c.l.b16 %v458
          %v1362 = vunpack.c.l.b16 %v459
          %v1363 = vunpack.c.l.b16 %v460
          %v1364 = vunpack.c.l.b16 %v461
          %v1365 = vunpack.c.l.b16 %v462
          %v1366 = vunpack.c.l.b16 %v463
          %v1367 = vunpack.c.l.b16 %v464
          %v1368 = vunpack.c.l.b16 %v465
          %v1369 = vunpack.c.l.b16 %v466
          %v1370 = vunpack.c.l.b16 %v467
          %v1371 = vunpack.c.l.b16 %v468
          %v1372 = vunpack.c.l.b16 %v469
          %v1373 = vunpack.c.l.b16 %v470
          %v1374 = vunpack.c.l.b16 %v471
          %v1375 = vunpack.c.l.b16 %v472
          %v1376 = vunpack.c.l.b16 %v473
          %v1377 = vunpack.c.l.b16 %v474
          %v1378 = vunpack.c.l.b16 %v475
          %v1379 = vunpack.c.l.b16 %v476
          %v1380 = vunpack.c.l.b16 %v477
          %v1381 = vunpack.c.l.b16 %v478
          %v1382 = vunpack.c.l.b16 %v479
          %v1383 = vunpack.c.l.b16 %v480
          %v1384 = vunpack.c.l.b16 %v481
          %v1385 = vunpack.c.l.b16 %v482
          %v1386 = vunpack.c.l.b16 %v483
          %v1387 = vunpack.c.l.b16 %v484
          %v1388 = vunpack.c.l.b16 %v485
          %v1389 = vunpack.c.l.b16 %v486
          %v1390 = vunpack.c.l.b16 %v487
          %v1391 = vunpack.c.l.b16 %v488
          %v1392 = vunpack.c.l.b16 %v489
          %v1393 = vunpack.c.l.b16 %v490
          %v1394 = vunpack.c.l.b16 %v491
          %v1395 = vunpack.c.l.b16 %v492
          %v1396 = vunpack.c.l.b16 %v493
          %v1397 = vunpack.c.l.b16 %v494
          %v1398 = vunpack.c.l.b16 %v495
          %v1399 = vunpack.c.l.b16 %v496
          %v1400 = vunpack.c.l.b16 %v497
          %v1401 = vunpack.c.l.b16 %v498
          %v1402 = vunpack.c.l.b16 %v499
          %v1403 = vunpack.c.l.b16 %v500
          %v1404 = vunpack.c.l.b16 %v501
          %v1405 = vunpack.c.l.b16 %v502
          %v1406 = vunpack.c.l.b16 %v503
          %v1407 = vunpack.c.l.b16 %v504
          %v1408 = vunpack.c.l.b16 %v505
          %v1409 = vunpack.c.l.b16 %v506
          %v1410 = vunpack.c.l.b16 %v507
          %v1411 = vunpack.c.l.b16 %v508
          %v1412 = vunpack.c.l.b16 %v509
          %v1413 = vunpack.c.l.b16 %v510
          %v1414 = vunpack.c.l.b16 %v511
          %v1415 = vunpack.c.l.b16 %v512
          %v1416 = vunpack.c.l.b16 %v513
          %v1417 = vunpack.c.l.b16 %v514
          %v1418 = vunpack.c.l.b16 %v515
          %v1419 = vunpack.c.l.b16 %v516
          %v1420 = vunpack.c.l.b16 %v517
          %v1421 = vunpack.c.l.b16 %v518
          %v1422 = vunpack.c.l.b16 %v519
          %v1423 = vunpack.c.l.b16 %v520
          %v1424 = vunpack.c.l.b16 %v521
          %v1425 = vunpack.c.l.b16 %v522
          %v1426 = vunpack.c.l.b16 %v523
          %v1427 = vunpack.c.l.b16 %v524
          %v1428 = vunpack.c.l.b16 %v525
          %v1429 = vunpack.c.l.b16 %v526
          %v1430 = vunpack.c.l.b16 %v527
          %v1431 = vunpack.c.l.b16 %v528
          %v1432 = vunpack.c.l.b16 %v529
          %v1433 = vunpack.c.l.b16 %v530
          %v1434 = vunpack.c.l.b16 %v531
          %v1435 = vunpack.c.l.b16 %v532
          %v1436 = vunpack.c.l.b16 %v533
          %v1437 = vunpack.c.l.b16 %v534
          %v1438 = vunpack.c.l.b16 %v535
          %v1439 = vunpack.c.l.b16 %v536
          %v1440 = vunpack.c.l.b16 %v537
          %v1441 = vunpack.c.l.b16 %v538
          %v1442 = vunpack.c.l.b16 %v539
          %v1443 = vunpack.c.l.b16 %v540
          %v1444 = vunpack.c.l.b16 %v541
          %v1445 = vunpack.c.l.b16 %v542
          %v1446 = vunpack.c.l.b16 %v543
          %v1447 = vunpack.c.l.b16 %v544
          %v1448 = vunpack.c.l.b16 %v545
          %v1449 = vunpack.c.l.b16 %v546
          %v1450 = vunpack.c.l.b16 %v547
          %v1451 = vunpack.c.l.b16 %v548
          %v1452 = vunpack.c.l.b16 %v549
          %v1453 = vunpack.c.l.b16 %v550
          %v1454 = vunpack.c.l.b16 %v551
          %v1455 = vunpack.c.l.b16 %v552
          %v1456 = vunpack.c.l.b16 %v553
          %v1457 = vunpack.c.l.b16 %v554
          %v1458 = vunpack.c.l.b16 %v555
          %v1459 = vunpack.c.l.b16 %v556
          %v1460 = vunpack.c.l.b16 %v557
          %v1461 = vunpack.c.l.b16 %v558
          %v1462 = vunpack.c.l.b16 %v559
          %v1463 = vunpack.c.l.b16 %v560
          %v1464 = vunpack.c.l.b16 %v561
          %v1465 = vpack.c.b16 %v1338, %v1337
          %v1466 = vpack.c.b16 %v1340, %v1339
          %v1467 = vpack.c.b16 %v1342, %v1341
          %v1468 = vpack.c.b16 %v1344, %v1343
          %v1469 = vpack.c.b16 %v1346, %v1345
          %v1470 = vpack.c.b16 %v1348, %v1347
          %v1471 = vpack.c.b16 %v1350, %v1349
          %v1472 = vpack.c.b16 %v1352, %v1351
          %v1473 = vpack.c.b16 %v1354, %v1353
          %v1474 = vpack.c.b16 %v1356, %v1355
          %v1475 = vpack.c.b16 %v1358, %v1357
          %v1476 = vpack.c.b16 %v1360, %v1359
          %v1477 = vpack.c.b16 %v1362, %v1361
          %v1478 = vpack.c.b16 %v1364, %v1363
          %v1479 = vpack.c.b16 %v1366, %v1365
          %v1480 = vpack.c.b16 %v1368, %v1367
          %v1481 = vpack.c.b16 %v1370, %v1369
          %v1482 = vpack.c.b16 %v1372, %v1371
          %v1483 = vpack.c.b16 %v1374, %v1373
          %v1484 = vpack.c.b16 %v1376, %v1375
          %v1485 = vpack.c.b16 %v1378, %v1377
          %v1486 = vpack.c.b16 %v1380, %v1379
          %v1487 = vpack.c.b16 %v1382, %v1381
          %v1488 = vpack.c.b16 %v1384, %v1383
          %v1489 = vpack.c.b16 %v1386, %v1385
          %v1490 = vpack.c.b16 %v1388, %v1387
          %v1491 = vpack.c.b16 %v1390, %v1389
          %v1492 = vpack.c.b16 %v1392, %v1391
          %v1493 = vpack.c.b16 %v1394, %v1393
          %v1494 = vpack.c.b16 %v1396, %v1395
          %v1495 = vpack.c.b16 %v1398, %v1397
          %v1496 = vpack.c.b16 %v1400, %v1399
          %v1497 = vpack.c.b16 %v1402, %v1401
          %v1498 = vpack.c.b16 %v1404, %v1403
          %v1499 = vpack.c.b16 %v1406, %v1405
          %v1500 = vpack.c.b16 %v1408, %v1407
          %v1501 = vpack.c.b16 %v1410, %v1409
          %v1502 = vpack.c.b16 %v1412, %v1411
          %v1503 = vpack.c.b16 %v1414, %v1413
          %v1504 = vpack.c.b16 %v1416, %v1415
          %v1505 = vpack.c.b16 %v1418, %v1417
          %v1506 = vpack.c.b16 %v1420, %v1419
          %v1507 = vpack.c.b16 %v1422, %v1421
          %v1508 = vpack.c.b16 %v1424, %v1423
          %v1509 = vpack.c.b16 %v1426, %v1425
          %v1510 = vpack.c.b16 %v1428, %v1427
          %v1511 = vpack.c.b16 %v1430, %v1429
          %v1512 = vpack.c.b16 %v1432, %v1431
          %v1513 = vpack.c.b16 %v1434, %v1433
          %v1514 = vpack.c.b16 %v1436, %v1435
          %v1515 = vpack.c.b16 %v1438, %v1437
          %v1516 = vpack.c.b16 %v1440, %v1439
          %v1517 = vpack.c.b16 %v1442, %v1441
          %v1518 = vpack.c.b16 %v1444, %v1443
          %v1519 = vpack.c.b16 %v1446, %v1445
          %v1520 = vpack.c.b16 %v1448, %v1447
          %v1521 = vpack.c.b16 %v1450, %v1449
          %v1522 = vpack.c.b16 %v1452, %v1451
          %v1523 = vpack.c.b16 %v1454, %v1453
          %v1524 = vpack.c.b16 %v1456, %v1455
          %v1525 = vpack.c.b16 %v1458, %v1457
          %v1526 = vpack.c.b16 %v1460, %v1459
          %v1527 = vpack.c.b16 %v1462, %v1461
          %v1528 = vpack.c.b16 %v1464, %v1463
          %1593 = vmatprep.subr.bf16.mxu0 0
          %1594 = vmatpush1.bf16.msra.mxu0 %v1472
          %1595 = vmatprep.subr.bf16.mxu0 0
          %1596 = vmatpush1.bf16.msra.mxu0 %v1471
          %1597 = vmatprep.subr.bf16.mxu0 0
          %1598 = vmatpush1.bf16.msra.mxu0 %v1470
          %1599 = vmatprep.subr.bf16.mxu0 0
          %1600 = vmatpush1.bf16.msra.mxu0 %v1469
          %1601 = vmatprep.subr.bf16.mxu0 0
          %1602 = vmatpush1.bf16.msra.mxu0 %v1468
          %1603 = vmatprep.subr.bf16.mxu0 0
          %1604 = vmatpush1.bf16.msra.mxu0 %v1467
          %1605 = vmatprep.subr.bf16.mxu0 0
          %1606 = vmatpush1.bf16.msra.mxu0 %v1466
          %1607 = vmatprep.subr.bf16.mxu0 0
          %1608 = vmatpush1.bf16.msra.mxu0 %v1465
          %1609 = vmatprep.subr.bf16.mxu0 0
          %1610 = vmatpush2.bf16.msra.mxu0 %v1480
          %1611 = vmatprep.subr.bf16.mxu0 0
          %1612 = vmatpush2.bf16.msra.mxu0 %v1479
          %1613 = vmatprep.subr.bf16.mxu0 0
          %1614 = vmatpush2.bf16.msra.mxu0 %v1478
          %1615 = vmatprep.subr.bf16.mxu0 0
          %1616 = vmatpush2.bf16.msra.mxu0 %v1477
          %1617 = vmatprep.subr.bf16.mxu0 0
          %1618 = vmatpush2.bf16.msra.mxu0 %v1476
          %1619 = vmatprep.subr.bf16.mxu0 0
          %1620 = vmatpush2.bf16.msra.mxu0 %v1475
          %1621 = vmatprep.subr.bf16.mxu0 0
          %1622 = vmatpush2.bf16.msra.mxu0 %v1474
          %1623 = vmatprep.subr.bf16.mxu0 0
          %1624 = vmatpush2.bf16.msra.mxu0 %v1473
          %1625 = vmatprep.mubr.bf16.mxu0 %v954
          %1626 = vmatmul.mubr.bf16.gmra.mxu0 %v953
          %v1627 = vpop.f32.mrf.mxu0
          %v1628 = vadd.f32 %v567, %v1627
          %v1629 = vpop.f32.mrf.mxu0
          %v1630 = vpop.f32.mrf.mxu0
          %v1631 = vadd.f32 %v567, %v1630
          %v1632 = vpop.f32.mrf.mxu0
          %1633 = vmatprep.mubr.bf16.mxu0 %v962
          %1634 = vmatmul.mubr.bf16.gmra.mxu0 %v961
          %v1635 = vpop.f32.mrf.mxu0
          %v1636 = vadd.f32 %v567, %v1635
          %v1637 = vpop.f32.mrf.mxu0
          %v1638 = vpop.f32.mrf.mxu0
          %v1639 = vadd.f32 %v567, %v1638
          %v1640 = vpop.f32.mrf.mxu0
          %1641 = vmatprep.mubr.bf16.mxu0 %v970
          %1642 = vmatmul.mubr.bf16.gmra.mxu0 %v969
          %v1643 = vpop.f32.mrf.mxu0
          %v1644 = vadd.f32 %v567, %v1643
          %v1645 = vpop.f32.mrf.mxu0
          %v1646 = vpop.f32.mrf.mxu0
          %v1647 = vadd.f32 %v567, %v1646
          %v1648 = vpop.f32.mrf.mxu0
          %1649 = vmatprep.mubr.bf16.mxu0 %v978
          %1650 = vmatmul.mubr.bf16.gmra.mxu0 %v977
          %v1651 = vpop.f32.mrf.mxu0
          %v1652 = vadd.f32 %v567, %v1651
          %v1653 = vpop.f32.mrf.mxu0
          %v1654 = vpop.f32.mrf.mxu0
          %v1655 = vadd.f32 %v567, %v1654
          %v1656 = vpop.f32.mrf.mxu0
          %1657 = vmatprep.mubr.bf16.mxu0 %v986
          %1658 = vmatmul.mubr.bf16.gmra.mxu0 %v985
          %v1659 = vpop.f32.mrf.mxu0
          %v1660 = vadd.f32 %v567, %v1659
          %v1661 = vpop.f32.mrf.mxu0
          %v1662 = vpop.f32.mrf.mxu0
          %v1663 = vadd.f32 %v567, %v1662
          %v1664 = vpop.f32.mrf.mxu0
          %1665 = vmatprep.mubr.bf16.mxu0 %v994
          %1666 = vmatmul.mubr.bf16.gmra.mxu0 %v993
          %v1667 = vpop.f32.mrf.mxu0
          %v1668 = vadd.f32 %v567, %v1667
          %v1669 = vpop.f32.mrf.mxu0
          %v1670 = vpop.f32.mrf.mxu0
          %v1671 = vadd.f32 %v567, %v1670
          %v1672 = vpop.f32.mrf.mxu0
          %1673 = vmatprep.mubr.bf16.mxu0 %v1002
          %1674 = vmatmul.mubr.bf16.gmra.mxu0 %v1001
          %v1675 = vpop.f32.mrf.mxu0
          %v1676 = vadd.f32 %v567, %v1675
          %v1677 = vpop.f32.mrf.mxu0
          %v1678 = vpop.f32.mrf.mxu0
          %v1679 = vadd.f32 %v567, %v1678
          %v1680 = vpop.f32.mrf.mxu0
          %1681 = vmatprep.mubr.bf16.mxu0 %v1010
          %1682 = vmatmul.mubr.bf16.gmra.mxu0 %v1009
          %v1683 = vpop.f32.mrf.mxu0
          %v1684 = vadd.f32 %v567, %v1683
          %v1685 = vpop.f32.mrf.mxu0
          %v1686 = vpop.f32.mrf.mxu0
          %v1687 = vadd.f32 %v567, %v1686
          %v1688 = vpop.f32.mrf.mxu0
          %1689 = vmatprep.mubr.bf16.mxu0 %v1018
          %1690 = vmatmul.mubr.bf16.gmra.mxu0 %v1017
          %v1691 = vpop.f32.mrf.mxu0
          %v1692 = vadd.f32 %v567, %v1691
          %v1693 = vpop.f32.mrf.mxu0
          %v1694 = vpop.f32.mrf.mxu0
          %v1695 = vadd.f32 %v567, %v1694
          %v1696 = vpop.f32.mrf.mxu0
          %1697 = vmatprep.mubr.bf16.mxu0 %v1026
          %1698 = vmatmul.mubr.bf16.gmra.mxu0 %v1025
          %v1699 = vpop.f32.mrf.mxu0
          %v1700 = vadd.f32 %v567, %v1699
          %v1701 = vpop.f32.mrf.mxu0
          %v1702 = vpop.f32.mrf.mxu0
          %v1703 = vadd.f32 %v567, %v1702
          %v1704 = vpop.f32.mrf.mxu0
          %1705 = vmatprep.mubr.bf16.mxu0 %v1034
          %1706 = vmatmul.mubr.bf16.gmra.mxu0 %v1033
          %v1707 = vpop.f32.mrf.mxu0
          %v1708 = vadd.f32 %v567, %v1707
          %v1709 = vpop.f32.mrf.mxu0
          %v1710 = vpop.f32.mrf.mxu0
          %v1711 = vadd.f32 %v567, %v1710
          %v1712 = vpop.f32.mrf.mxu0
          %1713 = vmatprep.mubr.bf16.mxu0 %v1042
          %1714 = vmatmul.mubr.bf16.gmra.mxu0 %v1041
          %v1715 = vpop.f32.mrf.mxu0
          %v1716 = vadd.f32 %v567, %v1715
          %v1717 = vpop.f32.mrf.mxu0
          %v1718 = vpop.f32.mrf.mxu0
          %v1719 = vadd.f32 %v567, %v1718
          %v1720 = vpop.f32.mrf.mxu0
          %1721 = vmatprep.mubr.bf16.mxu0 %v1050
          %1722 = vmatmul.mubr.bf16.gmra.mxu0 %v1049
          %v1723 = vpop.f32.mrf.mxu0
          %v1724 = vadd.f32 %v567, %v1723
          %v1725 = vpop.f32.mrf.mxu0
          %v1726 = vpop.f32.mrf.mxu0
          %v1727 = vadd.f32 %v567, %v1726
          %v1728 = vpop.f32.mrf.mxu0
          %1729 = vmatprep.mubr.bf16.mxu0 %v1058
          %1730 = vmatmul.mubr.bf16.gmra.mxu0 %v1057
          %v1731 = vpop.f32.mrf.mxu0
          %v1732 = vadd.f32 %v567, %v1731
          %v1733 = vpop.f32.mrf.mxu0
          %v1734 = vpop.f32.mrf.mxu0
          %v1735 = vadd.f32 %v567, %v1734
          %v1736 = vpop.f32.mrf.mxu0
          %1737 = vmatprep.mubr.bf16.mxu0 %v1066
          %1738 = vmatmul.mubr.bf16.gmra.mxu0 %v1065
          %v1739 = vpop.f32.mrf.mxu0
          %v1740 = vadd.f32 %v567, %v1739
          %v1741 = vpop.f32.mrf.mxu0
          %v1742 = vpop.f32.mrf.mxu0
          %v1743 = vadd.f32 %v567, %v1742
          %v1744 = vpop.f32.mrf.mxu0
          %1745 = vmatprep.mubr.bf16.mxu0 %v1074
          %1746 = vmatmul.mubr.bf16.gmra.mxu0 %v1073
          %v1747 = vpop.f32.mrf.mxu0
          %v1748 = vadd.f32 %v567, %v1747
          %v1749 = vpop.f32.mrf.mxu0
          %v1750 = vpop.f32.mrf.mxu0
          %v1751 = vadd.f32 %v567, %v1750
          %v1752 = vpop.f32.mrf.mxu0
          %1753 = vdwg.mxu0
          %1754 = vmatprep.subr.bf16.mxu0 0
          %1755 = vmatpush1.bf16.msra.mxu0 %v1488
          %1756 = vmatprep.subr.bf16.mxu0 0
          %1757 = vmatpush1.bf16.msra.mxu0 %v1487
          %1758 = vmatprep.subr.bf16.mxu0 0
          %1759 = vmatpush1.bf16.msra.mxu0 %v1486
          %1760 = vmatprep.subr.bf16.mxu0 0
          %1761 = vmatpush1.bf16.msra.mxu0 %v1485
          %1762 = vmatprep.subr.bf16.mxu0 0
          %1763 = vmatpush1.bf16.msra.mxu0 %v1484
          %1764 = vmatprep.subr.bf16.mxu0 0
          %1765 = vmatpush1.bf16.msra.mxu0 %v1483
          %1766 = vmatprep.subr.bf16.mxu0 0
          %1767 = vmatpush1.bf16.msra.mxu0 %v1482
          %1768 = vmatprep.subr.bf16.mxu0 0
          %1769 = vmatpush1.bf16.msra.mxu0 %v1481
          %1770 = vmatprep.subr.bf16.mxu0 0
          %1771 = vmatpush2.bf16.msra.mxu0 %v1496
          %1772 = vmatprep.subr.bf16.mxu0 0
          %1773 = vmatpush2.bf16.msra.mxu0 %v1495
          %1774 = vmatprep.subr.bf16.mxu0 0
          %1775 = vmatpush2.bf16.msra.mxu0 %v1494
          %1776 = vmatprep.subr.bf16.mxu0 0
          %1777 = vmatpush2.bf16.msra.mxu0 %v1493
          %1778 = vmatprep.subr.bf16.mxu0 0
          %1779 = vmatpush2.bf16.msra.mxu0 %v1492
          %1780 = vmatprep.subr.bf16.mxu0 0
          %1781 = vmatpush2.bf16.msra.mxu0 %v1491
          %1782 = vmatprep.subr.bf16.mxu0 0
          %1783 = vmatpush2.bf16.msra.mxu0 %v1490
          %1784 = vmatprep.subr.bf16.mxu0 0
          %1785 = vmatpush2.bf16.msra.mxu0 %v1489
          %1786 = vmatprep.mubr.bf16.mxu0 %v956
          %1787 = vmatmul.mubr.bf16.gmra.mxu0 %v955
          %v1788 = vpop.f32.mrf.mxu0
          %v1789 = vadd.f32 %v1628, %v1788
          %v1790 = vpop.f32.mrf.mxu0
          %v1791 = vpop.f32.mrf.mxu0
          %v1792 = vadd.f32 %v1631, %v1791
          %v1793 = vpop.f32.mrf.mxu0
          %1794 = vmatprep.mubr.bf16.mxu0 %v964
          %1795 = vmatmul.mubr.bf16.gmra.mxu0 %v963
          %v1796 = vpop.f32.mrf.mxu0
          %v1797 = vadd.f32 %v1636, %v1796
          %v1798 = vpop.f32.mrf.mxu0
          %v1799 = vpop.f32.mrf.mxu0
          %v1800 = vadd.f32 %v1639, %v1799
          %v1801 = vpop.f32.mrf.mxu0
          %1802 = vmatprep.mubr.bf16.mxu0 %v972
          %1803 = vmatmul.mubr.bf16.gmra.mxu0 %v971
          %v1804 = vpop.f32.mrf.mxu0
          %v1805 = vadd.f32 %v1644, %v1804
          %v1806 = vpop.f32.mrf.mxu0
          %v1807 = vpop.f32.mrf.mxu0
          %v1808 = vadd.f32 %v1647, %v1807
          %v1809 = vpop.f32.mrf.mxu0
          %1810 = vmatprep.mubr.bf16.mxu0 %v980
          %1811 = vmatmul.mubr.bf16.gmra.mxu0 %v979
          %v1812 = vpop.f32.mrf.mxu0
          %v1813 = vadd.f32 %v1652, %v1812
          %v1814 = vpop.f32.mrf.mxu0
          %v1815 = vpop.f32.mrf.mxu0
          %v1816 = vadd.f32 %v1655, %v1815
          %v1817 = vpop.f32.mrf.mxu0
          %1818 = vmatprep.mubr.bf16.mxu0 %v988
          %1819 = vmatmul.mubr.bf16.gmra.mxu0 %v987
          %v1820 = vpop.f32.mrf.mxu0
          %v1821 = vadd.f32 %v1660, %v1820
          %v1822 = vpop.f32.mrf.mxu0
          %v1823 = vpop.f32.mrf.mxu0
          %v1824 = vadd.f32 %v1663, %v1823
          %v1825 = vpop.f32.mrf.mxu0
          %1826 = vmatprep.mubr.bf16.mxu0 %v996
          %1827 = vmatmul.mubr.bf16.gmra.mxu0 %v995
          %v1828 = vpop.f32.mrf.mxu0
          %v1829 = vadd.f32 %v1668, %v1828
          %v1830 = vpop.f32.mrf.mxu0
          %v1831 = vpop.f32.mrf.mxu0
          %v1832 = vadd.f32 %v1671, %v1831
          %v1833 = vpop.f32.mrf.mxu0
          %1834 = vmatprep.mubr.bf16.mxu0 %v1004
          %1835 = vmatmul.mubr.bf16.gmra.mxu0 %v1003
          %v1836 = vpop.f32.mrf.mxu0
          %v1837 = vadd.f32 %v1676, %v1836
          %v1838 = vpop.f32.mrf.mxu0
          %v1839 = vpop.f32.mrf.mxu0
          %v1840 = vadd.f32 %v1679, %v1839
          %v1841 = vpop.f32.mrf.mxu0
          %1842 = vmatprep.mubr.bf16.mxu0 %v1012
          %1843 = vmatmul.mubr.bf16.gmra.mxu0 %v1011
          %v1844 = vpop.f32.mrf.mxu0
          %v1845 = vadd.f32 %v1684, %v1844
          %v1846 = vpop.f32.mrf.mxu0
          %v1847 = vpop.f32.mrf.mxu0
          %v1848 = vadd.f32 %v1687, %v1847
          %v1849 = vpop.f32.mrf.mxu0
          %1850 = vmatprep.mubr.bf16.mxu0 %v1020
          %1851 = vmatmul.mubr.bf16.gmra.mxu0 %v1019
          %v1852 = vpop.f32.mrf.mxu0
          %v1853 = vadd.f32 %v1692, %v1852
          %v1854 = vpop.f32.mrf.mxu0
          %v1855 = vpop.f32.mrf.mxu0
          %v1856 = vadd.f32 %v1695, %v1855
          %v1857 = vpop.f32.mrf.mxu0
          %1858 = vmatprep.mubr.bf16.mxu0 %v1028
          %1859 = vmatmul.mubr.bf16.gmra.mxu0 %v1027
          %v1860 = vpop.f32.mrf.mxu0
          %v1861 = vadd.f32 %v1700, %v1860
          %v1862 = vpop.f32.mrf.mxu0
          %v1863 = vpop.f32.mrf.mxu0
          %v1864 = vadd.f32 %v1703, %v1863
          %v1865 = vpop.f32.mrf.mxu0
          %1866 = vmatprep.mubr.bf16.mxu0 %v1036
          %1867 = vmatmul.mubr.bf16.gmra.mxu0 %v1035
          %v1868 = vpop.f32.mrf.mxu0
          %v1869 = vadd.f32 %v1708, %v1868
          %v1870 = vpop.f32.mrf.mxu0
          %v1871 = vpop.f32.mrf.mxu0
          %v1872 = vadd.f32 %v1711, %v1871
          %v1873 = vpop.f32.mrf.mxu0
          %1874 = vmatprep.mubr.bf16.mxu0 %v1044
          %1875 = vmatmul.mubr.bf16.gmra.mxu0 %v1043
          %v1876 = vpop.f32.mrf.mxu0
          %v1877 = vadd.f32 %v1716, %v1876
          %v1878 = vpop.f32.mrf.mxu0
          %v1879 = vpop.f32.mrf.mxu0
          %v1880 = vadd.f32 %v1719, %v1879
          %v1881 = vpop.f32.mrf.mxu0
          %1882 = vmatprep.mubr.bf16.mxu0 %v1052
          %1883 = vmatmul.mubr.bf16.gmra.mxu0 %v1051
          %v1884 = vpop.f32.mrf.mxu0
          %v1885 = vadd.f32 %v1724, %v1884
          %v1886 = vpop.f32.mrf.mxu0
          %v1887 = vpop.f32.mrf.mxu0
          %v1888 = vadd.f32 %v1727, %v1887
          %v1889 = vpop.f32.mrf.mxu0
          %1890 = vmatprep.mubr.bf16.mxu0 %v1060
          %1891 = vmatmul.mubr.bf16.gmra.mxu0 %v1059
          %v1892 = vpop.f32.mrf.mxu0
          %v1893 = vadd.f32 %v1732, %v1892
          %v1894 = vpop.f32.mrf.mxu0
          %v1895 = vpop.f32.mrf.mxu0
          %v1896 = vadd.f32 %v1735, %v1895
          %v1897 = vpop.f32.mrf.mxu0
          %1898 = vmatprep.mubr.bf16.mxu0 %v1068
          %1899 = vmatmul.mubr.bf16.gmra.mxu0 %v1067
          %v1900 = vpop.f32.mrf.mxu0
          %v1901 = vadd.f32 %v1740, %v1900
          %v1902 = vpop.f32.mrf.mxu0
          %v1903 = vpop.f32.mrf.mxu0
          %v1904 = vadd.f32 %v1743, %v1903
          %v1905 = vpop.f32.mrf.mxu0
          %1906 = vmatprep.mubr.bf16.mxu0 %v1076
          %1907 = vmatmul.mubr.bf16.gmra.mxu0 %v1075
          %v1908 = vpop.f32.mrf.mxu0
          %v1909 = vadd.f32 %v1748, %v1908
          %v1910 = vpop.f32.mrf.mxu0
          %v1911 = vpop.f32.mrf.mxu0
          %v1912 = vadd.f32 %v1751, %v1911
          %v1913 = vpop.f32.mrf.mxu0
          %1914 = vdwg.mxu0
          %1915 = vmatprep.subr.bf16.mxu0 0
          %1916 = vmatpush1.bf16.msra.mxu0 %v1504
          %1917 = vmatprep.subr.bf16.mxu0 0
          %1918 = vmatpush1.bf16.msra.mxu0 %v1503
          %1919 = vmatprep.subr.bf16.mxu0 0
          %1920 = vmatpush1.bf16.msra.mxu0 %v1502
          %1921 = vmatprep.subr.bf16.mxu0 0
          %1922 = vmatpush1.bf16.msra.mxu0 %v1501
          %1923 = vmatprep.subr.bf16.mxu0 0
          %1924 = vmatpush1.bf16.msra.mxu0 %v1500
          %1925 = vmatprep.subr.bf16.mxu0 0
          %1926 = vmatpush1.bf16.msra.mxu0 %v1499
          %1927 = vmatprep.subr.bf16.mxu0 0
          %1928 = vmatpush1.bf16.msra.mxu0 %v1498
          %1929 = vmatprep.subr.bf16.mxu0 0
          %1930 = vmatpush1.bf16.msra.mxu0 %v1497
          %1931 = vmatprep.subr.bf16.mxu0 0
          %1932 = vmatpush2.bf16.msra.mxu0 %v1512
          %1933 = vmatprep.subr.bf16.mxu0 0
          %1934 = vmatpush2.bf16.msra.mxu0 %v1511
          %1935 = vmatprep.subr.bf16.mxu0 0
          %1936 = vmatpush2.bf16.msra.mxu0 %v1510
          %1937 = vmatprep.subr.bf16.mxu0 0
          %1938 = vmatpush2.bf16.msra.mxu0 %v1509
          %1939 = vmatprep.subr.bf16.mxu0 0
          %1940 = vmatpush2.bf16.msra.mxu0 %v1508
          %1941 = vmatprep.subr.bf16.mxu0 0
          %1942 = vmatpush2.bf16.msra.mxu0 %v1507
          %1943 = vmatprep.subr.bf16.mxu0 0
          %1944 = vmatpush2.bf16.msra.mxu0 %v1506
          %1945 = vmatprep.subr.bf16.mxu0 0
          %1946 = vmatpush2.bf16.msra.mxu0 %v1505
          %1947 = vmatprep.mubr.bf16.mxu0 %v958
          %1948 = vmatmul.mubr.bf16.gmra.mxu0 %v957
          %v1949 = vpop.f32.mrf.mxu0
          %v1950 = vadd.f32 %v1789, %v1949
          %v1951 = vpop.f32.mrf.mxu0
          %v1952 = vpop.f32.mrf.mxu0
          %v1953 = vadd.f32 %v1792, %v1952
          %v1954 = vpop.f32.mrf.mxu0
          %1955 = vmatprep.mubr.bf16.mxu0 %v966
          %1956 = vmatmul.mubr.bf16.gmra.mxu0 %v965
          %v1957 = vpop.f32.mrf.mxu0
          %v1958 = vadd.f32 %v1797, %v1957
          %v1959 = vpop.f32.mrf.mxu0
          %v1960 = vpop.f32.mrf.mxu0
          %v1961 = vadd.f32 %v1800, %v1960
          %v1962 = vpop.f32.mrf.mxu0
          %1963 = vmatprep.mubr.bf16.mxu0 %v974
          %1964 = vmatmul.mubr.bf16.gmra.mxu0 %v973
          %v1965 = vpop.f32.mrf.mxu0
          %v1966 = vadd.f32 %v1805, %v1965
          %v1967 = vpop.f32.mrf.mxu0
          %v1968 = vpop.f32.mrf.mxu0
          %v1969 = vadd.f32 %v1808, %v1968
          %v1970 = vpop.f32.mrf.mxu0
          %1971 = vmatprep.mubr.bf16.mxu0 %v982
          %1972 = vmatmul.mubr.bf16.gmra.mxu0 %v981
          %v1973 = vpop.f32.mrf.mxu0
          %v1974 = vadd.f32 %v1813, %v1973
          %v1975 = vpop.f32.mrf.mxu0
          %v1976 = vpop.f32.mrf.mxu0
          %v1977 = vadd.f32 %v1816, %v1976
          %v1978 = vpop.f32.mrf.mxu0
          %1979 = vmatprep.mubr.bf16.mxu0 %v990
          %1980 = vmatmul.mubr.bf16.gmra.mxu0 %v989
          %v1981 = vpop.f32.mrf.mxu0
          %v1982 = vadd.f32 %v1821, %v1981
          %v1983 = vpop.f32.mrf.mxu0
          %v1984 = vpop.f32.mrf.mxu0
          %v1985 = vadd.f32 %v1824, %v1984
          %v1986 = vpop.f32.mrf.mxu0
          %1987 = vmatprep.mubr.bf16.mxu0 %v998
          %1988 = vmatmul.mubr.bf16.gmra.mxu0 %v997
          %v1989 = vpop.f32.mrf.mxu0
          %v1990 = vadd.f32 %v1829, %v1989
          %v1991 = vpop.f32.mrf.mxu0
          %v1992 = vpop.f32.mrf.mxu0
          %v1993 = vadd.f32 %v1832, %v1992
          %v1994 = vpop.f32.mrf.mxu0
          %1995 = vmatprep.mubr.bf16.mxu0 %v1006
          %1996 = vmatmul.mubr.bf16.gmra.mxu0 %v1005
          %v1997 = vpop.f32.mrf.mxu0
          %v1998 = vadd.f32 %v1837, %v1997
          %v1999 = vpop.f32.mrf.mxu0
          %v2000 = vpop.f32.mrf.mxu0
          %v2001 = vadd.f32 %v1840, %v2000
          %v2002 = vpop.f32.mrf.mxu0
          %2003 = vmatprep.mubr.bf16.mxu0 %v1014
          %2004 = vmatmul.mubr.bf16.gmra.mxu0 %v1013
          %v2005 = vpop.f32.mrf.mxu0
          %v2006 = vadd.f32 %v1845, %v2005
          %v2007 = vpop.f32.mrf.mxu0
          %v2008 = vpop.f32.mrf.mxu0
          %v2009 = vadd.f32 %v1848, %v2008
          %v2010 = vpop.f32.mrf.mxu0
          %2011 = vmatprep.mubr.bf16.mxu0 %v1022
          %2012 = vmatmul.mubr.bf16.gmra.mxu0 %v1021
          %v2013 = vpop.f32.mrf.mxu0
          %v2014 = vadd.f32 %v1853, %v2013
          %v2015 = vpop.f32.mrf.mxu0
          %v2016 = vpop.f32.mrf.mxu0
          %v2017 = vadd.f32 %v1856, %v2016
          %v2018 = vpop.f32.mrf.mxu0
          %2019 = vmatprep.mubr.bf16.mxu0 %v1030
          %2020 = vmatmul.mubr.bf16.gmra.mxu0 %v1029
          %v2021 = vpop.f32.mrf.mxu0
          %v2022 = vadd.f32 %v1861, %v2021
          %v2023 = vpop.f32.mrf.mxu0
          %v2024 = vpop.f32.mrf.mxu0
          %v2025 = vadd.f32 %v1864, %v2024
          %v2026 = vpop.f32.mrf.mxu0
          %2027 = vmatprep.mubr.bf16.mxu0 %v1038
          %2028 = vmatmul.mubr.bf16.gmra.mxu0 %v1037
          %v2029 = vpop.f32.mrf.mxu0
          %v2030 = vadd.f32 %v1869, %v2029
          %v2031 = vpop.f32.mrf.mxu0
          %v2032 = vpop.f32.mrf.mxu0
          %v2033 = vadd.f32 %v1872, %v2032
          %v2034 = vpop.f32.mrf.mxu0
          %2035 = vmatprep.mubr.bf16.mxu0 %v1046
          %2036 = vmatmul.mubr.bf16.gmra.mxu0 %v1045
          %v2037 = vpop.f32.mrf.mxu0
          %v2038 = vadd.f32 %v1877, %v2037
          %v2039 = vpop.f32.mrf.mxu0
          %v2040 = vpop.f32.mrf.mxu0
          %v2041 = vadd.f32 %v1880, %v2040
          %v2042 = vpop.f32.mrf.mxu0
          %2043 = vmatprep.mubr.bf16.mxu0 %v1054
          %2044 = vmatmul.mubr.bf16.gmra.mxu0 %v1053
          %v2045 = vpop.f32.mrf.mxu0
          %v2046 = vadd.f32 %v1885, %v2045
          %v2047 = vpop.f32.mrf.mxu0
          %v2048 = vpop.f32.mrf.mxu0
          %v2049 = vadd.f32 %v1888, %v2048
          %v2050 = vpop.f32.mrf.mxu0
          %2051 = vmatprep.mubr.bf16.mxu0 %v1062
          %2052 = vmatmul.mubr.bf16.gmra.mxu0 %v1061
          %v2053 = vpop.f32.mrf.mxu0
          %v2054 = vadd.f32 %v1893, %v2053
          %v2055 = vpop.f32.mrf.mxu0
          %v2056 = vpop.f32.mrf.mxu0
          %v2057 = vadd.f32 %v1896, %v2056
          %v2058 = vpop.f32.mrf.mxu0
          %2059 = vmatprep.mubr.bf16.mxu0 %v1070
          %2060 = vmatmul.mubr.bf16.gmra.mxu0 %v1069
          %v2061 = vpop.f32.mrf.mxu0
          %v2062 = vadd.f32 %v1901, %v2061
          %v2063 = vpop.f32.mrf.mxu0
          %v2064 = vpop.f32.mrf.mxu0
          %v2065 = vadd.f32 %v1904, %v2064
          %v2066 = vpop.f32.mrf.mxu0
          %2067 = vmatprep.mubr.bf16.mxu0 %v1078
          %2068 = vmatmul.mubr.bf16.gmra.mxu0 %v1077
          %v2069 = vpop.f32.mrf.mxu0
          %v2070 = vadd.f32 %v1909, %v2069
          %v2071 = vpop.f32.mrf.mxu0
          %v2072 = vpop.f32.mrf.mxu0
          %v2073 = vadd.f32 %v1912, %v2072
          %v2074 = vpop.f32.mrf.mxu0
          %2075 = vdwg.mxu0
          %2076 = vmatprep.subr.bf16.mxu0 0
          %2077 = vmatpush1.bf16.msra.mxu0 %v1520
          %2078 = vmatprep.subr.bf16.mxu0 0
          %2079 = vmatpush1.bf16.msra.mxu0 %v1519
          %2080 = vmatprep.subr.bf16.mxu0 0
          %2081 = vmatpush1.bf16.msra.mxu0 %v1518
          %2082 = vmatprep.subr.bf16.mxu0 0
          %2083 = vmatpush1.bf16.msra.mxu0 %v1517
          %2084 = vmatprep.subr.bf16.mxu0 0
          %2085 = vmatpush1.bf16.msra.mxu0 %v1516
          %2086 = vmatprep.subr.bf16.mxu0 0
          %2087 = vmatpush1.bf16.msra.mxu0 %v1515
          %2088 = vmatprep.subr.bf16.mxu0 0
          %2089 = vmatpush1.bf16.msra.mxu0 %v1514
          %2090 = vmatprep.subr.bf16.mxu0 0
          %2091 = vmatpush1.bf16.msra.mxu0 %v1513
          %2092 = vmatprep.subr.bf16.mxu0 0
          %2093 = vmatpush2.bf16.msra.mxu0 %v1528
          %2094 = vmatprep.subr.bf16.mxu0 0
          %2095 = vmatpush2.bf16.msra.mxu0 %v1527
          %2096 = vmatprep.subr.bf16.mxu0 0
          %2097 = vmatpush2.bf16.msra.mxu0 %v1526
          %2098 = vmatprep.subr.bf16.mxu0 0
          %2099 = vmatpush2.bf16.msra.mxu0 %v1525
          %2100 = vmatprep.subr.bf16.mxu0 0
          %2101 = vmatpush2.bf16.msra.mxu0 %v1524
          %2102 = vmatprep.subr.bf16.mxu0 0
          %2103 = vmatpush2.bf16.msra.mxu0 %v1523
          %2104 = vmatprep.subr.bf16.mxu0 0
          %2105 = vmatpush2.bf16.msra.mxu0 %v1522
          %2106 = vmatprep.subr.bf16.mxu0 0
          %2107 = vmatpush2.bf16.msra.mxu0 %v1521
          %2108 = vmatprep.mubr.bf16.mxu0 %v960
          %2109 = vmatmul.mubr.bf16.gmra.mxu0 %v959
          %v2110 = vpop.f32.mrf.mxu0
          %v2111 = vadd.f32 %v1950, %v2110
          %v2112 = vpop.f32.mrf.mxu0
          %v2113 = vpop.f32.mrf.mxu0
          %v2114 = vadd.f32 %v1953, %v2113
          %v2115 = vpop.f32.mrf.mxu0
          %2116 = vmatprep.mubr.bf16.mxu0 %v968
          %2117 = vmatmul.mubr.bf16.gmra.mxu0 %v967
          %v2118 = vpop.f32.mrf.mxu0
          %v2119 = vadd.f32 %v1958, %v2118
          %v2120 = vpop.f32.mrf.mxu0
          %v2121 = vpop.f32.mrf.mxu0
          %v2122 = vadd.f32 %v1961, %v2121
          %v2123 = vpop.f32.mrf.mxu0
          %2124 = vmatprep.mubr.bf16.mxu0 %v976
          %2125 = vmatmul.mubr.bf16.gmra.mxu0 %v975
          %v2126 = vpop.f32.mrf.mxu0
          %v2127 = vadd.f32 %v1966, %v2126
          %v2128 = vpop.f32.mrf.mxu0
          %v2129 = vpop.f32.mrf.mxu0
          %v2130 = vadd.f32 %v1969, %v2129
          %v2131 = vpop.f32.mrf.mxu0
          %2132 = vmatprep.mubr.bf16.mxu0 %v984
          %2133 = vmatmul.mubr.bf16.gmra.mxu0 %v983
          %v2134 = vpop.f32.mrf.mxu0
          %v2135 = vadd.f32 %v1974, %v2134
          %v2136 = vpop.f32.mrf.mxu0
          %v2137 = vpop.f32.mrf.mxu0
          %v2138 = vadd.f32 %v1977, %v2137
          %v2139 = vpop.f32.mrf.mxu0
          %2140 = vmatprep.mubr.bf16.mxu0 %v992
          %2141 = vmatmul.mubr.bf16.gmra.mxu0 %v991
          %v2142 = vpop.f32.mrf.mxu0
          %v2143 = vadd.f32 %v1982, %v2142
          %v2144 = vpop.f32.mrf.mxu0
          %v2145 = vpop.f32.mrf.mxu0
          %v2146 = vadd.f32 %v1985, %v2145
          %v2147 = vpop.f32.mrf.mxu0
          %2148 = vmatprep.mubr.bf16.mxu0 %v1000
          %2149 = vmatmul.mubr.bf16.gmra.mxu0 %v999
          %v2150 = vpop.f32.mrf.mxu0
          %v2151 = vadd.f32 %v1990, %v2150
          %v2152 = vpop.f32.mrf.mxu0
          %v2153 = vpop.f32.mrf.mxu0
          %v2154 = vadd.f32 %v1993, %v2153
          %v2155 = vpop.f32.mrf.mxu0
          %2156 = vmatprep.mubr.bf16.mxu0 %v1008
          %2157 = vmatmul.mubr.bf16.gmra.mxu0 %v1007
          %v2158 = vpop.f32.mrf.mxu0
          %v2159 = vadd.f32 %v1998, %v2158
          %v2160 = vpop.f32.mrf.mxu0
          %v2161 = vpop.f32.mrf.mxu0
          %v2162 = vadd.f32 %v2001, %v2161
          %v2163 = vpop.f32.mrf.mxu0
          %2164 = vmatprep.mubr.bf16.mxu0 %v1016
          %2165 = vmatmul.mubr.bf16.gmra.mxu0 %v1015
          %v2166 = vpop.f32.mrf.mxu0
          %v2167 = vadd.f32 %v2006, %v2166
          %v2168 = vpop.f32.mrf.mxu0
          %v2169 = vpop.f32.mrf.mxu0
          %v2170 = vadd.f32 %v2009, %v2169
          %v2171 = vpop.f32.mrf.mxu0
          %2172 = vmatprep.mubr.bf16.mxu0 %v1024
          %2173 = vmatmul.mubr.bf16.gmra.mxu0 %v1023
          %v2174 = vpop.f32.mrf.mxu0
          %v2175 = vadd.f32 %v2014, %v2174
          %v2176 = vpop.f32.mrf.mxu0
          %v2177 = vpop.f32.mrf.mxu0
          %v2178 = vadd.f32 %v2017, %v2177
          %v2179 = vpop.f32.mrf.mxu0
          %2180 = vmatprep.mubr.bf16.mxu0 %v1032
          %2181 = vmatmul.mubr.bf16.gmra.mxu0 %v1031
          %v2182 = vpop.f32.mrf.mxu0
          %v2183 = vadd.f32 %v2022, %v2182
          %v2184 = vpop.f32.mrf.mxu0
          %v2185 = vpop.f32.mrf.mxu0
          %v2186 = vadd.f32 %v2025, %v2185
          %v2187 = vpop.f32.mrf.mxu0
          %2188 = vmatprep.mubr.bf16.mxu0 %v1040
          %2189 = vmatmul.mubr.bf16.gmra.mxu0 %v1039
          %v2190 = vpop.f32.mrf.mxu0
          %v2191 = vadd.f32 %v2030, %v2190
          %v2192 = vpop.f32.mrf.mxu0
          %v2193 = vpop.f32.mrf.mxu0
          %v2194 = vadd.f32 %v2033, %v2193
          %v2195 = vpop.f32.mrf.mxu0
          %2196 = vmatprep.mubr.bf16.mxu0 %v1048
          %2197 = vmatmul.mubr.bf16.gmra.mxu0 %v1047
          %v2198 = vpop.f32.mrf.mxu0
          %v2199 = vadd.f32 %v2038, %v2198
          %v2200 = vpop.f32.mrf.mxu0
          %v2201 = vpop.f32.mrf.mxu0
          %v2202 = vadd.f32 %v2041, %v2201
          %v2203 = vpop.f32.mrf.mxu0
          %2204 = vmatprep.mubr.bf16.mxu0 %v1056
          %2205 = vmatmul.mubr.bf16.gmra.mxu0 %v1055
          %v2206 = vpop.f32.mrf.mxu0
          %v2207 = vadd.f32 %v2046, %v2206
          %v2208 = vpop.f32.mrf.mxu0
          %v2209 = vpop.f32.mrf.mxu0
          %v2210 = vadd.f32 %v2049, %v2209
          %v2211 = vpop.f32.mrf.mxu0
          %2212 = vmatprep.mubr.bf16.mxu0 %v1064
          %2213 = vmatmul.mubr.bf16.gmra.mxu0 %v1063
          %v2214 = vpop.f32.mrf.mxu0
          %v2215 = vadd.f32 %v2054, %v2214
          %v2216 = vpop.f32.mrf.mxu0
          %v2217 = vpop.f32.mrf.mxu0
          %v2218 = vadd.f32 %v2057, %v2217
          %v2219 = vpop.f32.mrf.mxu0
          %2220 = vmatprep.mubr.bf16.mxu0 %v1072
          %2221 = vmatmul.mubr.bf16.gmra.mxu0 %v1071
          %v2222 = vpop.f32.mrf.mxu0
          %v2223 = vadd.f32 %v2062, %v2222
          %v2224 = vpop.f32.mrf.mxu0
          %v2225 = vpop.f32.mrf.mxu0
          %v2226 = vadd.f32 %v2065, %v2225
          %v2227 = vpop.f32.mrf.mxu0
          %2228 = vmatprep.mubr.bf16.mxu0 %v1080
          %2229 = vmatmul.mubr.bf16.gmra.mxu0 %v1079
          %v2230 = vpop.f32.mrf.mxu0
          %v2231 = vadd.f32 %v2070, %v2230
          %v2232 = vpop.f32.mrf.mxu0
          %v2233 = vpop.f32.mrf.mxu0
          %v2234 = vadd.f32 %v2073, %v2233
          %v2235 = vpop.f32.mrf.mxu0
          %2236 = vdwg.mxu0
          %v2237 = vmax.f32 %v2111, 0.0
          %v2238 = vmax.f32 %v2114, 0.0
          %v2239 = vmax.f32 %v2119, 0.0
          %v2240 = vmax.f32 %v2122, 0.0
          %v2241 = vmax.f32 %v2127, 0.0
          %v2242 = vmax.f32 %v2130, 0.0
          %v2243 = vmax.f32 %v2135, 0.0
          %v2244 = vmax.f32 %v2138, 0.0
          %v2245 = vmax.f32 %v2143, 0.0
          %v2246 = vmax.f32 %v2146, 0.0
          %v2247 = vmax.f32 %v2151, 0.0
          %v2248 = vmax.f32 %v2154, 0.0
          %v2249 = vmax.f32 %v2159, 0.0
          %v2250 = vmax.f32 %v2162, 0.0
          %v2251 = vmax.f32 %v2167, 0.0
          %v2252 = vmax.f32 %v2170, 0.0
          %v2253 = vmax.f32 %v2175, 0.0
          %v2254 = vmax.f32 %v2178, 0.0
          %v2255 = vmax.f32 %v2183, 0.0
          %v2256 = vmax.f32 %v2186, 0.0
          %v2257 = vmax.f32 %v2191, 0.0
          %v2258 = vmax.f32 %v2194, 0.0
          %v2259 = vmax.f32 %v2199, 0.0
          %v2260 = vmax.f32 %v2202, 0.0
          %v2261 = vmax.f32 %v2207, 0.0
          %v2262 = vmax.f32 %v2210, 0.0
          %v2263 = vmax.f32 %v2215, 0.0
          %v2264 = vmax.f32 %v2218, 0.0
          %v2265 = vmax.f32 %v2223, 0.0
          %v2266 = vmax.f32 %v2226, 0.0
          %v2267 = vmax.f32 %v2231, 0.0
          %v2268 = vmax.f32 %v2234, 0.0
          %v2269 = vpack.c.bf16 %v2238, %v2237
          %v2270 = vpack.c.bf16 %v2240, %v2239
          %v2271 = vpack.c.bf16 %v2242, %v2241
          %v2272 = vpack.c.bf16 %v2244, %v2243
          %v2273 = vpack.c.bf16 %v2246, %v2245
          %v2274 = vpack.c.bf16 %v2248, %v2247
          %v2275 = vpack.c.bf16 %v2250, %v2249
          %v2276 = vpack.c.bf16 %v2252, %v2251
          %v2277 = vpack.c.bf16 %v2254, %v2253
          %v2278 = vpack.c.bf16 %v2256, %v2255
          %v2279 = vpack.c.bf16 %v2258, %v2257
          %v2280 = vpack.c.bf16 %v2260, %v2259
          %v2281 = vpack.c.bf16 %v2262, %v2261
          %v2282 = vpack.c.bf16 %v2264, %v2263
          %v2283 = vpack.c.bf16 %v2266, %v2265
          %v2284 = vpack.c.bf16 %v2268, %v2267
          %v2285 = vld [vmem:[#allocation8] sm:$0xf]
          %v2286 = vld [vmem:[#allocation8 + $0x4] sm:$0xf]
          %v2287 = vld [vmem:[#allocation8 + $0x8] sm:$0xf]
          %v2288 = vld [vmem:[#allocation8 + $0xc] sm:$0xf]
          %v2289 = vld [vmem:[#allocation8 + $0x10] sm:$0xf]
          %v2290 = vld [vmem:[#allocation8 + $0x14] sm:$0xf]
          %v2291 = vld [vmem:[#allocation8 + $0x18] sm:$0xf]
          %v2292 = vld [vmem:[#allocation8 + $0x1c] sm:$0xf]
          %v2301 = vunpack.c.l.b16 %v2285
          %v2302 = vunpack.c.l.b16 %v2286
          %v2303 = vunpack.c.l.b16 %v2287
          %v2304 = vunpack.c.l.b16 %v2288
          %v2305 = vunpack.c.l.b16 %v2289
          %v2306 = vunpack.c.l.b16 %v2290
          %v2307 = vunpack.c.l.b16 %v2291
          %v2308 = vunpack.c.l.b16 %v2292
          %v2309 = vpack.c.b16 %v2302, %v2301
          %v2310 = vpack.c.b16 %v2304, %v2303
          %v2311 = vpack.c.b16 %v2306, %v2305
          %v2312 = vpack.c.b16 %v2308, %v2307
          %vm2317 = vcmask 523264
          %v2319 = vsel %vm2317, %v2269, 0
          %v2322 = vsel %vm2317, %v2270, 0
          %v2325 = vsel %vm2317, %v2271, 0
          %v2328 = vsel %vm2317, %v2272, 0
          %v2331 = vsel %vm2317, %v2273, 0
          %v2334 = vsel %vm2317, %v2274, 0
          %v2337 = vsel %vm2317, %v2275, 0
          %v2340 = vsel %vm2317, %v2276, 0
          %v2343 = vsel %vm2317, %v2277, 0
          %v2346 = vsel %vm2317, %v2278, 0
          %v2349 = vsel %vm2317, %v2279, 0
          %v2352 = vsel %vm2317, %v2280, 0
          %v2355 = vsel %vm2317, %v2281, 0
          %v2358 = vsel %vm2317, %v2282, 0
          %v2361 = vsel %vm2317, %v2283, 0
          %v2364 = vsel %vm2317, %v2284, 0
          %2366 = vmatprep.subr.bf16.mxu0 0
          %2367 = vmatpush1.bf16.msra.mxu0 0
          %2368 = vmatprep.subr.bf16.mxu0 0
          %2369 = vmatpush1.bf16.msra.mxu0 0
          %2370 = vmatprep.subr.bf16.mxu0 0
          %2371 = vmatpush1.bf16.msra.mxu0 0
          %2372 = vmatprep.subr.bf16.mxu0 0
          %2373 = vmatpush1.bf16.msra.mxu0 0
          %2374 = vmatprep.subr.bf16.mxu0 0
          %2375 = vmatpush1.bf16.msra.mxu0 %v2312
          %2376 = vmatprep.subr.bf16.mxu0 0
          %2377 = vmatpush1.bf16.msra.mxu0 %v2311
          %2378 = vmatprep.subr.bf16.mxu0 0
          %2379 = vmatpush1.bf16.msra.mxu0 %v2310
          %2380 = vmatprep.subr.bf16.mxu0 0
          %2381 = vmatpush1.bf16.msra.mxu0 %v2309
          %2382 = vmatprep.subr.bf16.mxu0 0
          %2383 = vmatpush2.bf16.msra.mxu0 0
          %2384 = vmatprep.subr.bf16.mxu0 0
          %2385 = vmatpush2.bf16.msra.mxu0 0
          %2386 = vmatprep.subr.bf16.mxu0 0
          %2387 = vmatpush2.bf16.msra.mxu0 0
          %2388 = vmatprep.subr.bf16.mxu0 0
          %2389 = vmatpush2.bf16.msra.mxu0 0
          %2390 = vmatprep.subr.bf16.mxu0 0
          %2391 = vmatpush2.bf16.msra.mxu0 0
          %2392 = vmatprep.subr.bf16.mxu0 0
          %2393 = vmatpush2.bf16.msra.mxu0 0
          %2394 = vmatprep.subr.bf16.mxu0 0
          %2395 = vmatpush2.bf16.msra.mxu0 0
          %2396 = vmatprep.subr.bf16.mxu0 0
          %2397 = vmatpush2.bf16.msra.mxu0 0
          %2398 = vmatprep.mubr.bf16.mxu0 0
          %2399 = vmatmul.mubr.bf16.gmra.mxu0 %v2319
          %v2400 = vpop.f32.mrf.mxu0
          %v2401 = vadd.f32 0.0, %v2400
          %v2402 = vpop.f32.mrf.mxu0
          %v2403 = vpop.f32.mrf.mxu0
          %v2404 = vadd.f32 0.0, %v2403
          %v2405 = vpop.f32.mrf.mxu0
          %2406 = vmatprep.mubr.bf16.mxu0 0
          %2407 = vmatmul.mubr.bf16.gmra.mxu0 %v2322
          %v2408 = vpop.f32.mrf.mxu0
          %v2409 = vadd.f32 0.0, %v2408
          %v2410 = vpop.f32.mrf.mxu0
          %v2411 = vpop.f32.mrf.mxu0
          %v2412 = vadd.f32 0.0, %v2411
          %v2413 = vpop.f32.mrf.mxu0
          %2414 = vmatprep.mubr.bf16.mxu0 0
          %2415 = vmatmul.mubr.bf16.gmra.mxu0 %v2325
          %v2416 = vpop.f32.mrf.mxu0
          %v2417 = vadd.f32 0.0, %v2416
          %v2418 = vpop.f32.mrf.mxu0
          %v2419 = vpop.f32.mrf.mxu0
          %v2420 = vadd.f32 0.0, %v2419
          %v2421 = vpop.f32.mrf.mxu0
          %2422 = vmatprep.mubr.bf16.mxu0 0
          %2423 = vmatmul.mubr.bf16.gmra.mxu0 %v2328
          %v2424 = vpop.f32.mrf.mxu0
          %v2425 = vadd.f32 0.0, %v2424
          %v2426 = vpop.f32.mrf.mxu0
          %v2427 = vpop.f32.mrf.mxu0
          %v2428 = vadd.f32 0.0, %v2427
          %v2429 = vpop.f32.mrf.mxu0
          %2430 = vmatprep.mubr.bf16.mxu0 0
          %2431 = vmatmul.mubr.bf16.gmra.mxu0 %v2331
          %v2432 = vpop.f32.mrf.mxu0
          %v2433 = vadd.f32 0.0, %v2432
          %v2434 = vpop.f32.mrf.mxu0
          %v2435 = vpop.f32.mrf.mxu0
          %v2436 = vadd.f32 0.0, %v2435
          %v2437 = vpop.f32.mrf.mxu0
          %2438 = vmatprep.mubr.bf16.mxu0 0
          %2439 = vmatmul.mubr.bf16.gmra.mxu0 %v2334
          %v2440 = vpop.f32.mrf.mxu0
          %v2441 = vadd.f32 0.0, %v2440
          %v2442 = vpop.f32.mrf.mxu0
          %v2443 = vpop.f32.mrf.mxu0
          %v2444 = vadd.f32 0.0, %v2443
          %v2445 = vpop.f32.mrf.mxu0
          %2446 = vmatprep.mubr.bf16.mxu0 0
          %2447 = vmatmul.mubr.bf16.gmra.mxu0 %v2337
          %v2448 = vpop.f32.mrf.mxu0
          %v2449 = vadd.f32 0.0, %v2448
          %v2450 = vpop.f32.mrf.mxu0
          %v2451 = vpop.f32.mrf.mxu0
          %v2452 = vadd.f32 0.0, %v2451
          %v2453 = vpop.f32.mrf.mxu0
          %2454 = vmatprep.mubr.bf16.mxu0 0
          %2455 = vmatmul.mubr.bf16.gmra.mxu0 %v2340
          %v2456 = vpop.f32.mrf.mxu0
          %v2457 = vadd.f32 0.0, %v2456
          %v2458 = vpop.f32.mrf.mxu0
          %v2459 = vpop.f32.mrf.mxu0
          %v2460 = vadd.f32 0.0, %v2459
          %v2461 = vpop.f32.mrf.mxu0
          %2462 = vmatprep.mubr.bf16.mxu0 0
          %2463 = vmatmul.mubr.bf16.gmra.mxu0 %v2343
          %v2464 = vpop.f32.mrf.mxu0
          %v2465 = vadd.f32 0.0, %v2464
          %v2466 = vpop.f32.mrf.mxu0
          %v2467 = vpop.f32.mrf.mxu0
          %v2468 = vadd.f32 0.0, %v2467
          %v2469 = vpop.f32.mrf.mxu0
          %2470 = vmatprep.mubr.bf16.mxu0 0
          %2471 = vmatmul.mubr.bf16.gmra.mxu0 %v2346
          %v2472 = vpop.f32.mrf.mxu0
          %v2473 = vadd.f32 0.0, %v2472
          %v2474 = vpop.f32.mrf.mxu0
          %v2475 = vpop.f32.mrf.mxu0
          %v2476 = vadd.f32 0.0, %v2475
          %v2477 = vpop.f32.mrf.mxu0
          %2478 = vmatprep.mubr.bf16.mxu0 0
          %2479 = vmatmul.mubr.bf16.gmra.mxu0 %v2349
          %v2480 = vpop.f32.mrf.mxu0
          %v2481 = vadd.f32 0.0, %v2480
          %v2482 = vpop.f32.mrf.mxu0
          %v2483 = vpop.f32.mrf.mxu0
          %v2484 = vadd.f32 0.0, %v2483
          %v2485 = vpop.f32.mrf.mxu0
          %2486 = vmatprep.mubr.bf16.mxu0 0
          %2487 = vmatmul.mubr.bf16.gmra.mxu0 %v2352
          %v2488 = vpop.f32.mrf.mxu0
          %v2489 = vadd.f32 0.0, %v2488
          %v2490 = vpop.f32.mrf.mxu0
          %v2491 = vpop.f32.mrf.mxu0
          %v2492 = vadd.f32 0.0, %v2491
          %v2493 = vpop.f32.mrf.mxu0
          %2494 = vmatprep.mubr.bf16.mxu0 0
          %2495 = vmatmul.mubr.bf16.gmra.mxu0 %v2355
          %v2496 = vpop.f32.mrf.mxu0
          %v2497 = vadd.f32 0.0, %v2496
          %v2498 = vpop.f32.mrf.mxu0
          %v2499 = vpop.f32.mrf.mxu0
          %v2500 = vadd.f32 0.0, %v2499
          %v2501 = vpop.f32.mrf.mxu0
          %2502 = vmatprep.mubr.bf16.mxu0 0
          %2503 = vmatmul.mubr.bf16.gmra.mxu0 %v2358
          %v2504 = vpop.f32.mrf.mxu0
          %v2505 = vadd.f32 0.0, %v2504
          %v2506 = vpop.f32.mrf.mxu0
          %v2507 = vpop.f32.mrf.mxu0
          %v2508 = vadd.f32 0.0, %v2507
          %v2509 = vpop.f32.mrf.mxu0
          %2510 = vmatprep.mubr.bf16.mxu0 0
          %2511 = vmatmul.mubr.bf16.gmra.mxu0 %v2361
          %v2512 = vpop.f32.mrf.mxu0
          %v2513 = vadd.f32 0.0, %v2512
          %v2514 = vpop.f32.mrf.mxu0
          %v2515 = vpop.f32.mrf.mxu0
          %v2516 = vadd.f32 0.0, %v2515
          %v2517 = vpop.f32.mrf.mxu0
          %2518 = vmatprep.mubr.bf16.mxu0 0
          %2519 = vmatmul.mubr.bf16.gmra.mxu0 %v2364
          %v2520 = vpop.f32.mrf.mxu0
          %v2521 = vadd.f32 0.0, %v2520
          %v2522 = vpop.f32.mrf.mxu0
          %v2523 = vpop.f32.mrf.mxu0
          %v2524 = vadd.f32 0.0, %v2523
          %v2525 = vpop.f32.mrf.mxu0
          %2526 = vdwg.mxu0
          %s2527 = smul.u32 %s29, 256
          %v2528 = vpack.c.bf16 %v2404, %v2401
          %v2529 = vpack.c.bf16 %v2412, %v2409
          %v2530 = vpack.c.bf16 %v2420, %v2417
          %v2531 = vpack.c.bf16 %v2428, %v2425
          %v2532 = vpack.c.bf16 %v2436, %v2433
          %v2533 = vpack.c.bf16 %v2444, %v2441
          %v2534 = vpack.c.bf16 %v2452, %v2449
          %v2535 = vpack.c.bf16 %v2460, %v2457
          %v2536 = vpack.c.bf16 %v2468, %v2465
          %v2537 = vpack.c.bf16 %v2476, %v2473
          %v2538 = vpack.c.bf16 %v2484, %v2481
          %v2539 = vpack.c.bf16 %v2492, %v2489
          %v2540 = vpack.c.bf16 %v2500, %v2497
          %v2541 = vpack.c.bf16 %v2508, %v2505
          %v2542 = vpack.c.bf16 %v2516, %v2513
          %v2543 = vpack.c.bf16 %v2524, %v2521
          %v2560 = vunpack.c.l.b16 %v2528
          %v2561 = vunpack.c.h.b16 %v2528
          %v2562 = vunpack.c.l.b16 %v2529
          %v2563 = vunpack.c.h.b16 %v2529
          %v2564 = vunpack.c.l.b16 %v2530
          %v2565 = vunpack.c.h.b16 %v2530
          %v2566 = vunpack.c.l.b16 %v2531
          %v2567 = vunpack.c.h.b16 %v2531
          %v2568 = vunpack.c.l.b16 %v2532
          %v2569 = vunpack.c.h.b16 %v2532
          %v2570 = vunpack.c.l.b16 %v2533
          %v2571 = vunpack.c.h.b16 %v2533
          %v2572 = vunpack.c.l.b16 %v2534
          %v2573 = vunpack.c.h.b16 %v2534
          %v2574 = vunpack.c.l.b16 %v2535
          %v2575 = vunpack.c.h.b16 %v2535
          %v2576 = vunpack.c.l.b16 %v2536
          %v2577 = vunpack.c.h.b16 %v2536
          %v2578 = vunpack.c.l.b16 %v2537
          %v2579 = vunpack.c.h.b16 %v2537
          %v2580 = vunpack.c.l.b16 %v2538
          %v2581 = vunpack.c.h.b16 %v2538
          %v2582 = vunpack.c.l.b16 %v2539
          %v2583 = vunpack.c.h.b16 %v2539
          %v2584 = vunpack.c.l.b16 %v2540
          %v2585 = vunpack.c.h.b16 %v2540
          %v2586 = vunpack.c.l.b16 %v2541
          %v2587 = vunpack.c.h.b16 %v2541
          %v2588 = vunpack.c.l.b16 %v2542
          %v2589 = vunpack.c.h.b16 %v2542
          %v2590 = vunpack.c.l.b16 %v2543
          %v2591 = vunpack.c.h.b16 %v2543
          %v2592 = vpack.c.b16 %v2560, %v2560
          %v2593 = vpack.c.b16 %v2561, %v2561
          %v2594 = vpack.c.b16 %v2562, %v2562
          %v2595 = vpack.c.b16 %v2563, %v2563
          %v2596 = vpack.c.b16 %v2564, %v2564
          %v2597 = vpack.c.b16 %v2565, %v2565
          %v2598 = vpack.c.b16 %v2566, %v2566
          %v2599 = vpack.c.b16 %v2567, %v2567
          %v2600 = vpack.c.b16 %v2568, %v2568
          %v2601 = vpack.c.b16 %v2569, %v2569
          %v2602 = vpack.c.b16 %v2570, %v2570
          %v2603 = vpack.c.b16 %v2571, %v2571
          %v2604 = vpack.c.b16 %v2572, %v2572
          %v2605 = vpack.c.b16 %v2573, %v2573
          %v2606 = vpack.c.b16 %v2574, %v2574
          %v2607 = vpack.c.b16 %v2575, %v2575
          %v2608 = vpack.c.b16 %v2576, %v2576
          %v2609 = vpack.c.b16 %v2577, %v2577
          %v2610 = vpack.c.b16 %v2578, %v2578
          %v2611 = vpack.c.b16 %v2579, %v2579
          %v2612 = vpack.c.b16 %v2580, %v2580
          %v2613 = vpack.c.b16 %v2581, %v2581
          %v2614 = vpack.c.b16 %v2582, %v2582
          %v2615 = vpack.c.b16 %v2583, %v2583
          %v2616 = vpack.c.b16 %v2584, %v2584
          %v2617 = vpack.c.b16 %v2585, %v2585
          %v2618 = vpack.c.b16 %v2586, %v2586
          %v2619 = vpack.c.b16 %v2587, %v2587
          %v2620 = vpack.c.b16 %v2588, %v2588
          %v2621 = vpack.c.b16 %v2589, %v2589
          %v2622 = vpack.c.b16 %v2590, %v2590
          %v2623 = vpack.c.b16 %v2591, %v2591
          %s2656 = sshra.s32 %s2527, 3
          %s2657 = sand.u32 %s2527, 7
          %s2658 = smul.addr %s2656, 4
          %s2659 = scalar_lea.vmem [#allocation2], %s2658
          %2660 = vst [vmem:[%s2659] sm:$0xf] %v2592
          %2661 = vst [vmem:[%s2659 + $0x4] sm:$0xf] %v2593
          %2662 = vst [vmem:[%s2659 + $0x8] sm:$0xf] %v2594
          %2663 = vst [vmem:[%s2659 + $0xc] sm:$0xf] %v2595
          %2664 = vst [vmem:[%s2659 + $0x10] sm:$0xf] %v2596
          %2665 = vst [vmem:[%s2659 + $0x14] sm:$0xf] %v2597
          %2666 = vst [vmem:[%s2659 + $0x18] sm:$0xf] %v2598
          %2667 = vst [vmem:[%s2659 + $0x1c] sm:$0xf] %v2599
          %2668 = vst [vmem:[%s2659 + $0x20] sm:$0xf] %v2600
          %2669 = vst [vmem:[%s2659 + $0x24] sm:$0xf] %v2601
          %2670 = vst [vmem:[%s2659 + $0x28] sm:$0xf] %v2602
          %2671 = vst [vmem:[%s2659 + $0x2c] sm:$0xf] %v2603
          %2672 = vst [vmem:[%s2659 + $0x30] sm:$0xf] %v2604
          %2673 = vst [vmem:[%s2659 + $0x34] sm:$0xf] %v2605
          %2674 = vst [vmem:[%s2659 + $0x38] sm:$0xf] %v2606
          %2675 = vst [vmem:[%s2659 + $0x3c] sm:$0xf] %v2607
          %2676 = vst [vmem:[%s2659 + $0x40] sm:$0xf] %v2608
          %2677 = vst [vmem:[%s2659 + $0x44] sm:$0xf] %v2609
          %2678 = vst [vmem:[%s2659 + $0x48] sm:$0xf] %v2610
          %2679 = vst [vmem:[%s2659 + $0x4c] sm:$0xf] %v2611
          %2680 = vst [vmem:[%s2659 + $0x50] sm:$0xf] %v2612
          %2681 = vst [vmem:[%s2659 + $0x54] sm:$0xf] %v2613
          %2682 = vst [vmem:[%s2659 + $0x58] sm:$0xf] %v2614
          %2683 = vst [vmem:[%s2659 + $0x5c] sm:$0xf] %v2615
          %2684 = vst [vmem:[%s2659 + $0x60] sm:$0xf] %v2616
          %2685 = vst [vmem:[%s2659 + $0x64] sm:$0xf] %v2617
          %2686 = vst [vmem:[%s2659 + $0x68] sm:$0xf] %v2618
          %2687 = vst [vmem:[%s2659 + $0x6c] sm:$0xf] %v2619
          %2688 = vst [vmem:[%s2659 + $0x70] sm:$0xf] %v2620
          %2689 = vst [vmem:[%s2659 + $0x74] sm:$0xf] %v2621
          %2690 = vst [vmem:[%s2659 + $0x78] sm:$0xf] %v2622
          %2691 = vst [vmem:[%s2659 + $0x7c] sm:$0xf] %v2623
        $region60: #{tpu_custom_call.1} parent=39 // pred_fallthru
          _
        %p2692 = scmp.eq.s32.totalorder %s28, 1
        // Predicated region
        $region61: #{tpu_custom_call.1} parent=39 // pred_check
          %p2693 = pneg %p2692
        $region62: #{tpu_custom_call.1} parent=39 // pred_check_branch
          %2695 = sbr.rel (%p2693) target = $region64
        $region63: #{tpu_custom_call.1} parent=39 // pred_region
          %v2696 = vld [vmem:[%s259] sm:$0xff]
          %v2697 = vld [vmem:[%s259 + $0x8] sm:$0xff]
          %v2698 = vld [vmem:[%s259 + $0x10] sm:$0xff]
          %v2699 = vld [vmem:[%s259 + $0x18] sm:$0xff]
          %v2700 = vld [vmem:[%s259 + $0x20] sm:$0xff]
          %v2701 = vld [vmem:[%s259 + $0x28] sm:$0xff]
          %v2702 = vld [vmem:[%s259 + $0x30] sm:$0xff]
          %v2703 = vld [vmem:[%s259 + $0x38] sm:$0xff]
          %v2704 = vld [vmem:[%s259 + $0x40] sm:$0xff]
          %v2705 = vld [vmem:[%s259 + $0x48] sm:$0xff]
          %v2706 = vld [vmem:[%s259 + $0x50] sm:$0xff]
          %v2707 = vld [vmem:[%s259 + $0x58] sm:$0xff]
          %v2708 = vld [vmem:[%s259 + $0x60] sm:$0xff]
          %v2709 = vld [vmem:[%s259 + $0x68] sm:$0xff]
          %v2710 = vld [vmem:[%s259 + $0x70] sm:$0xff]
          %v2711 = vld [vmem:[%s259 + $0x78] sm:$0xff]
          %v2712 = vld [vmem:[%s259 + $0x80] sm:$0xff]
          %v2713 = vld [vmem:[%s259 + $0x88] sm:$0xff]
          %v2714 = vld [vmem:[%s259 + $0x90] sm:$0xff]
          %v2715 = vld [vmem:[%s259 + $0x98] sm:$0xff]
          %v2716 = vld [vmem:[%s259 + $0xa0] sm:$0xff]
          %v2717 = vld [vmem:[%s259 + $0xa8] sm:$0xff]
          %v2718 = vld [vmem:[%s259 + $0xb0] sm:$0xff]
          %v2719 = vld [vmem:[%s259 + $0xb8] sm:$0xff]
          %v2720 = vld [vmem:[%s259 + $0xc0] sm:$0xff]
          %v2721 = vld [vmem:[%s259 + $0xc8] sm:$0xff]
          %v2722 = vld [vmem:[%s259 + $0xd0] sm:$0xff]
          %v2723 = vld [vmem:[%s259 + $0xd8] sm:$0xff]
          %v2724 = vld [vmem:[%s259 + $0xe0] sm:$0xff]
          %v2725 = vld [vmem:[%s259 + $0xe8] sm:$0xff]
          %v2726 = vld [vmem:[%s259 + $0xf0] sm:$0xff]
          %v2727 = vld [vmem:[%s259 + $0xf8] sm:$0xff]
          %v2728 = vld [vmem:[%s259 + $0x100] sm:$0xff]
          %v2729 = vld [vmem:[%s259 + $0x108] sm:$0xff]
          %v2730 = vld [vmem:[%s259 + $0x110] sm:$0xff]
          %v2731 = vld [vmem:[%s259 + $0x118] sm:$0xff]
          %v2732 = vld [vmem:[%s259 + $0x120] sm:$0xff]
          %v2733 = vld [vmem:[%s259 + $0x128] sm:$0xff]
          %v2734 = vld [vmem:[%s259 + $0x130] sm:$0xff]
          %v2735 = vld [vmem:[%s259 + $0x138] sm:$0xff]
          %v2736 = vld [vmem:[%s259 + $0x140] sm:$0xff]
          %v2737 = vld [vmem:[%s259 + $0x148] sm:$0xff]
          %v2738 = vld [vmem:[%s259 + $0x150] sm:$0xff]
          %v2739 = vld [vmem:[%s259 + $0x158] sm:$0xff]
          %v2740 = vld [vmem:[%s259 + $0x160] sm:$0xff]
          %v2741 = vld [vmem:[%s259 + $0x168] sm:$0xff]
          %v2742 = vld [vmem:[%s259 + $0x170] sm:$0xff]
          %v2743 = vld [vmem:[%s259 + $0x178] sm:$0xff]
          %v2744 = vld [vmem:[%s259 + $0x180] sm:$0xff]
          %v2745 = vld [vmem:[%s259 + $0x188] sm:$0xff]
          %v2746 = vld [vmem:[%s259 + $0x190] sm:$0xff]
          %v2747 = vld [vmem:[%s259 + $0x198] sm:$0xff]
          %v2748 = vld [vmem:[%s259 + $0x1a0] sm:$0xff]
          %v2749 = vld [vmem:[%s259 + $0x1a8] sm:$0xff]
          %v2750 = vld [vmem:[%s259 + $0x1b0] sm:$0xff]
          %v2751 = vld [vmem:[%s259 + $0x1b8] sm:$0xff]
          %v2752 = vld [vmem:[%s259 + $0x1c0] sm:$0xff]
          %v2753 = vld [vmem:[%s259 + $0x1c8] sm:$0xff]
          %v2754 = vld [vmem:[%s259 + $0x1d0] sm:$0xff]
          %v2755 = vld [vmem:[%s259 + $0x1d8] sm:$0xff]
          %v2756 = vld [vmem:[%s259 + $0x1e0] sm:$0xff]
          %v2757 = vld [vmem:[%s259 + $0x1e8] sm:$0xff]
          %v2758 = vld [vmem:[%s259 + $0x1f0] sm:$0xff]
          %v2759 = vld [vmem:[%s259 + $0x1f8] sm:$0xff]
          %v2760 = vld [vmem:[%s259 + $0x200] sm:$0xff]
          %v2761 = vld [vmem:[%s259 + $0x208] sm:$0xff]
          %v2762 = vld [vmem:[%s259 + $0x210] sm:$0xff]
          %v2763 = vld [vmem:[%s259 + $0x218] sm:$0xff]
          %v2764 = vld [vmem:[%s259 + $0x220] sm:$0xff]
          %v2765 = vld [vmem:[%s259 + $0x228] sm:$0xff]
          %v2766 = vld [vmem:[%s259 + $0x230] sm:$0xff]
          %v2767 = vld [vmem:[%s259 + $0x238] sm:$0xff]
          %v2768 = vld [vmem:[%s259 + $0x240] sm:$0xff]
          %v2769 = vld [vmem:[%s259 + $0x248] sm:$0xff]
          %v2770 = vld [vmem:[%s259 + $0x250] sm:$0xff]
          %v2771 = vld [vmem:[%s259 + $0x258] sm:$0xff]
          %v2772 = vld [vmem:[%s259 + $0x260] sm:$0xff]
          %v2773 = vld [vmem:[%s259 + $0x268] sm:$0xff]
          %v2774 = vld [vmem:[%s259 + $0x270] sm:$0xff]
          %v2775 = vld [vmem:[%s259 + $0x278] sm:$0xff]
          %v2776 = vld [vmem:[%s259 + $0x280] sm:$0xff]
          %v2777 = vld [vmem:[%s259 + $0x288] sm:$0xff]
          %v2778 = vld [vmem:[%s259 + $0x290] sm:$0xff]
          %v2779 = vld [vmem:[%s259 + $0x298] sm:$0xff]
          %v2780 = vld [vmem:[%s259 + $0x2a0] sm:$0xff]
          %v2781 = vld [vmem:[%s259 + $0x2a8] sm:$0xff]
          %v2782 = vld [vmem:[%s259 + $0x2b0] sm:$0xff]
          %v2783 = vld [vmem:[%s259 + $0x2b8] sm:$0xff]
          %v2784 = vld [vmem:[%s259 + $0x2c0] sm:$0xff]
          %v2785 = vld [vmem:[%s259 + $0x2c8] sm:$0xff]
          %v2786 = vld [vmem:[%s259 + $0x2d0] sm:$0xff]
          %v2787 = vld [vmem:[%s259 + $0x2d8] sm:$0xff]
          %v2788 = vld [vmem:[%s259 + $0x2e0] sm:$0xff]
          %v2789 = vld [vmem:[%s259 + $0x2e8] sm:$0xff]
          %v2790 = vld [vmem:[%s259 + $0x2f0] sm:$0xff]
          %v2791 = vld [vmem:[%s259 + $0x2f8] sm:$0xff]
          %v2792 = vld [vmem:[%s259 + $0x300] sm:$0xff]
          %v2793 = vld [vmem:[%s259 + $0x308] sm:$0xff]
          %v2794 = vld [vmem:[%s259 + $0x310] sm:$0xff]
          %v2795 = vld [vmem:[%s259 + $0x318] sm:$0xff]
          %v2796 = vld [vmem:[%s259 + $0x320] sm:$0xff]
          %v2797 = vld [vmem:[%s259 + $0x328] sm:$0xff]
          %v2798 = vld [vmem:[%s259 + $0x330] sm:$0xff]
          %v2799 = vld [vmem:[%s259 + $0x338] sm:$0xff]
          %v2800 = vld [vmem:[%s259 + $0x340] sm:$0xff]
          %v2801 = vld [vmem:[%s259 + $0x348] sm:$0xff]
          %v2802 = vld [vmem:[%s259 + $0x350] sm:$0xff]
          %v2803 = vld [vmem:[%s259 + $0x358] sm:$0xff]
          %v2804 = vld [vmem:[%s259 + $0x360] sm:$0xff]
          %v2805 = vld [vmem:[%s259 + $0x368] sm:$0xff]
          %v2806 = vld [vmem:[%s259 + $0x370] sm:$0xff]
          %v2807 = vld [vmem:[%s259 + $0x378] sm:$0xff]
          %v2808 = vld [vmem:[%s259 + $0x380] sm:$0xff]
          %v2809 = vld [vmem:[%s259 + $0x388] sm:$0xff]
          %v2810 = vld [vmem:[%s259 + $0x390] sm:$0xff]
          %v2811 = vld [vmem:[%s259 + $0x398] sm:$0xff]
          %v2812 = vld [vmem:[%s259 + $0x3a0] sm:$0xff]
          %v2813 = vld [vmem:[%s259 + $0x3a8] sm:$0xff]
          %v2814 = vld [vmem:[%s259 + $0x3b0] sm:$0xff]
          %v2815 = vld [vmem:[%s259 + $0x3b8] sm:$0xff]
          %v2816 = vld [vmem:[%s259 + $0x3c0] sm:$0xff]
          %v2817 = vld [vmem:[%s259 + $0x3c8] sm:$0xff]
          %v2818 = vld [vmem:[%s259 + $0x3d0] sm:$0xff]
          %v2819 = vld [vmem:[%s259 + $0x3d8] sm:$0xff]
          %v2820 = vld [vmem:[%s259 + $0x3e0] sm:$0xff]
          %v2821 = vld [vmem:[%s259 + $0x3e8] sm:$0xff]
          %v2822 = vld [vmem:[%s259 + $0x3f0] sm:$0xff]
          %v2823 = vld [vmem:[%s259 + $0x3f8] sm:$0xff]
          %v2824 = vld [vmem:[#allocation2] sm:$0xf]
          %v2825 = vld [vmem:[#allocation2 + $0x4] sm:$0xf]
          %v2826 = vld [vmem:[#allocation2 + $0x8] sm:$0xf]
          %v2827 = vld [vmem:[#allocation2 + $0xc] sm:$0xf]
          %v2828 = vld [vmem:[#allocation2 + $0x10] sm:$0xf]
          %v2829 = vld [vmem:[#allocation2 + $0x14] sm:$0xf]
          %v2830 = vld [vmem:[#allocation2 + $0x18] sm:$0xf]
          %v2831 = vld [vmem:[#allocation2 + $0x1c] sm:$0xf]
          %v2832 = vld [vmem:[#allocation2 + $0x20] sm:$0xf]
          %v2833 = vld [vmem:[#allocation2 + $0x24] sm:$0xf]
          %v2834 = vld [vmem:[#allocation2 + $0x28] sm:$0xf]
          %v2835 = vld [vmem:[#allocation2 + $0x2c] sm:$0xf]
          %v2836 = vld [vmem:[#allocation2 + $0x30] sm:$0xf]
          %v2837 = vld [vmem:[#allocation2 + $0x34] sm:$0xf]
          %v2838 = vld [vmem:[#allocation2 + $0x38] sm:$0xf]
          %v2839 = vld [vmem:[#allocation2 + $0x3c] sm:$0xf]
          %v2840 = vld [vmem:[#allocation2 + $0x40] sm:$0xf]
          %v2841 = vld [vmem:[#allocation2 + $0x44] sm:$0xf]
          %v2842 = vld [vmem:[#allocation2 + $0x48] sm:$0xf]
          %v2843 = vld [vmem:[#allocation2 + $0x4c] sm:$0xf]
          %v2844 = vld [vmem:[#allocation2 + $0x50] sm:$0xf]
          %v2845 = vld [vmem:[#allocation2 + $0x54] sm:$0xf]
          %v2846 = vld [vmem:[#allocation2 + $0x58] sm:$0xf]
          %v2847 = vld [vmem:[#allocation2 + $0x5c] sm:$0xf]
          %v2848 = vld [vmem:[#allocation2 + $0x60] sm:$0xf]
          %v2849 = vld [vmem:[#allocation2 + $0x64] sm:$0xf]
          %v2850 = vld [vmem:[#allocation2 + $0x68] sm:$0xf]
          %v2851 = vld [vmem:[#allocation2 + $0x6c] sm:$0xf]
          %v2852 = vld [vmem:[#allocation2 + $0x70] sm:$0xf]
          %v2853 = vld [vmem:[#allocation2 + $0x74] sm:$0xf]
          %v2854 = vld [vmem:[#allocation2 + $0x78] sm:$0xf]
          %v2855 = vld [vmem:[#allocation2 + $0x7c] sm:$0xf]
          %v2856 = vld [vmem:[#allocation2 + $0x80] sm:$0xf]
          %v2857 = vld [vmem:[#allocation2 + $0x84] sm:$0xf]
          %v2858 = vld [vmem:[#allocation2 + $0x88] sm:$0xf]
          %v2859 = vld [vmem:[#allocation2 + $0x8c] sm:$0xf]
          %v2860 = vld [vmem:[#allocation2 + $0x90] sm:$0xf]
          %v2861 = vld [vmem:[#allocation2 + $0x94] sm:$0xf]
          %v2862 = vld [vmem:[#allocation2 + $0x98] sm:$0xf]
          %v2863 = vld [vmem:[#allocation2 + $0x9c] sm:$0xf]
          %v2864 = vld [vmem:[#allocation2 + $0xa0] sm:$0xf]
          %v2865 = vld [vmem:[#allocation2 + $0xa4] sm:$0xf]
          %v2866 = vld [vmem:[#allocation2 + $0xa8] sm:$0xf]
          %v2867 = vld [vmem:[#allocation2 + $0xac] sm:$0xf]
          %v2868 = vld [vmem:[#allocation2 + $0xb0] sm:$0xf]
          %v2869 = vld [vmem:[#allocation2 + $0xb4] sm:$0xf]
          %v2870 = vld [vmem:[#allocation2 + $0xb8] sm:$0xf]
          %v2871 = vld [vmem:[#allocation2 + $0xbc] sm:$0xf]
          %v2872 = vld [vmem:[#allocation2 + $0xc0] sm:$0xf]
          %v2873 = vld [vmem:[#allocation2 + $0xc4] sm:$0xf]
          %v2874 = vld [vmem:[#allocation2 + $0xc8] sm:$0xf]
          %v2875 = vld [vmem:[#allocation2 + $0xcc] sm:$0xf]
          %v2876 = vld [vmem:[#allocation2 + $0xd0] sm:$0xf]
          %v2877 = vld [vmem:[#allocation2 + $0xd4] sm:$0xf]
          %v2878 = vld [vmem:[#allocation2 + $0xd8] sm:$0xf]
          %v2879 = vld [vmem:[#allocation2 + $0xdc] sm:$0xf]
          %v2880 = vld [vmem:[#allocation2 + $0xe0] sm:$0xf]
          %v2881 = vld [vmem:[#allocation2 + $0xe4] sm:$0xf]
          %v2882 = vld [vmem:[#allocation2 + $0xe8] sm:$0xf]
          %v2883 = vld [vmem:[#allocation2 + $0xec] sm:$0xf]
          %v2884 = vld [vmem:[#allocation2 + $0xf0] sm:$0xf]
          %v2885 = vld [vmem:[#allocation2 + $0xf4] sm:$0xf]
          %v2886 = vld [vmem:[#allocation2 + $0xf8] sm:$0xf]
          %v2887 = vld [vmem:[#allocation2 + $0xfc] sm:$0xf]
          %v2888 = vld [vmem:[#allocation2 + $0x100] sm:$0xf]
          %v2889 = vld [vmem:[#allocation2 + $0x104] sm:$0xf]
          %v2890 = vld [vmem:[#allocation2 + $0x108] sm:$0xf]
          %v2891 = vld [vmem:[#allocation2 + $0x10c] sm:$0xf]
          %v2892 = vld [vmem:[#allocation2 + $0x110] sm:$0xf]
          %v2893 = vld [vmem:[#allocation2 + $0x114] sm:$0xf]
          %v2894 = vld [vmem:[#allocation2 + $0x118] sm:$0xf]
          %v2895 = vld [vmem:[#allocation2 + $0x11c] sm:$0xf]
          %v2896 = vld [vmem:[#allocation2 + $0x120] sm:$0xf]
          %v2897 = vld [vmem:[#allocation2 + $0x124] sm:$0xf]
          %v2898 = vld [vmem:[#allocation2 + $0x128] sm:$0xf]
          %v2899 = vld [vmem:[#allocation2 + $0x12c] sm:$0xf]
          %v2900 = vld [vmem:[#allocation2 + $0x130] sm:$0xf]
          %v2901 = vld [vmem:[#allocation2 + $0x134] sm:$0xf]
          %v2902 = vld [vmem:[#allocation2 + $0x138] sm:$0xf]
          %v2903 = vld [vmem:[#allocation2 + $0x13c] sm:$0xf]
          %v2904 = vld [vmem:[#allocation2 + $0x140] sm:$0xf]
          %v2905 = vld [vmem:[#allocation2 + $0x144] sm:$0xf]
          %v2906 = vld [vmem:[#allocation2 + $0x148] sm:$0xf]
          %v2907 = vld [vmem:[#allocation2 + $0x14c] sm:$0xf]
          %v2908 = vld [vmem:[#allocation2 + $0x150] sm:$0xf]
          %v2909 = vld [vmem:[#allocation2 + $0x154] sm:$0xf]
          %v2910 = vld [vmem:[#allocation2 + $0x158] sm:$0xf]
          %v2911 = vld [vmem:[#allocation2 + $0x15c] sm:$0xf]
          %v2912 = vld [vmem:[#allocation2 + $0x160] sm:$0xf]
          %v2913 = vld [vmem:[#allocation2 + $0x164] sm:$0xf]
          %v2914 = vld [vmem:[#allocation2 + $0x168] sm:$0xf]
          %v2915 = vld [vmem:[#allocation2 + $0x16c] sm:$0xf]
          %v2916 = vld [vmem:[#allocation2 + $0x170] sm:$0xf]
          %v2917 = vld [vmem:[#allocation2 + $0x174] sm:$0xf]
          %v2918 = vld [vmem:[#allocation2 + $0x178] sm:$0xf]
          %v2919 = vld [vmem:[#allocation2 + $0x17c] sm:$0xf]
          %v2920 = vld [vmem:[#allocation2 + $0x180] sm:$0xf]
          %v2921 = vld [vmem:[#allocation2 + $0x184] sm:$0xf]
          %v2922 = vld [vmem:[#allocation2 + $0x188] sm:$0xf]
          %v2923 = vld [vmem:[#allocation2 + $0x18c] sm:$0xf]
          %v2924 = vld [vmem:[#allocation2 + $0x190] sm:$0xf]
          %v2925 = vld [vmem:[#allocation2 + $0x194] sm:$0xf]
          %v2926 = vld [vmem:[#allocation2 + $0x198] sm:$0xf]
          %v2927 = vld [vmem:[#allocation2 + $0x19c] sm:$0xf]
          %v2928 = vld [vmem:[#allocation2 + $0x1a0] sm:$0xf]
          %v2929 = vld [vmem:[#allocation2 + $0x1a4] sm:$0xf]
          %v2930 = vld [vmem:[#allocation2 + $0x1a8] sm:$0xf]
          %v2931 = vld [vmem:[#allocation2 + $0x1ac] sm:$0xf]
          %v2932 = vld [vmem:[#allocation2 + $0x1b0] sm:$0xf]
          %v2933 = vld [vmem:[#allocation2 + $0x1b4] sm:$0xf]
          %v2934 = vld [vmem:[#allocation2 + $0x1b8] sm:$0xf]
          %v2935 = vld [vmem:[#allocation2 + $0x1bc] sm:$0xf]
          %v2936 = vld [vmem:[#allocation2 + $0x1c0] sm:$0xf]
          %v2937 = vld [vmem:[#allocation2 + $0x1c4] sm:$0xf]
          %v2938 = vld [vmem:[#allocation2 + $0x1c8] sm:$0xf]
          %v2939 = vld [vmem:[#allocation2 + $0x1cc] sm:$0xf]
          %v2940 = vld [vmem:[#allocation2 + $0x1d0] sm:$0xf]
          %v2941 = vld [vmem:[#allocation2 + $0x1d4] sm:$0xf]
          %v2942 = vld [vmem:[#allocation2 + $0x1d8] sm:$0xf]
          %v2943 = vld [vmem:[#allocation2 + $0x1dc] sm:$0xf]
          %v2944 = vld [vmem:[#allocation2 + $0x1e0] sm:$0xf]
          %v2945 = vld [vmem:[#allocation2 + $0x1e4] sm:$0xf]
          %v2946 = vld [vmem:[#allocation2 + $0x1e8] sm:$0xf]
          %v2947 = vld [vmem:[#allocation2 + $0x1ec] sm:$0xf]
          %v2948 = vld [vmem:[#allocation2 + $0x1f0] sm:$0xf]
          %v2949 = vld [vmem:[#allocation2 + $0x1f4] sm:$0xf]
          %v2950 = vld [vmem:[#allocation2 + $0x1f8] sm:$0xf]
          %v2951 = vld [vmem:[#allocation2 + $0x1fc] sm:$0xf]
          %v2952 = vld [vmem:[#allocation9] sm:$0x1]
          %v2954 = vlaneseq
          %v2955 = vshrl.u32 %v2954, 7
          %v2956 = vsub.s32 0, %v2955
          %v2957 = vrot.slane %v2952, %v2956
          %v3087 = vunpack.c.l.b16 %v2696
          %v3088 = vunpack.c.h.b16 %v2696
          %v3089 = vunpack.c.l.b16 %v2697
          %v3090 = vunpack.c.h.b16 %v2697
          %v3091 = vunpack.c.l.b16 %v2698
          %v3092 = vunpack.c.h.b16 %v2698
          %v3093 = vunpack.c.l.b16 %v2699
          %v3094 = vunpack.c.h.b16 %v2699
          %v3095 = vunpack.c.l.b16 %v2700
          %v3096 = vunpack.c.h.b16 %v2700
          %v3097 = vunpack.c.l.b16 %v2701
          %v3098 = vunpack.c.h.b16 %v2701
          %v3099 = vunpack.c.l.b16 %v2702
          %v3100 = vunpack.c.h.b16 %v2702
          %v3101 = vunpack.c.l.b16 %v2703
          %v3102 = vunpack.c.h.b16 %v2703
          %v3103 = vunpack.c.l.b16 %v2704
          %v3104 = vunpack.c.h.b16 %v2704
          %v3105 = vunpack.c.l.b16 %v2705
          %v3106 = vunpack.c.h.b16 %v2705
          %v3107 = vunpack.c.l.b16 %v2706
          %v3108 = vunpack.c.h.b16 %v2706
          %v3109 = vunpack.c.l.b16 %v2707
          %v3110 = vunpack.c.h.b16 %v2707
          %v3111 = vunpack.c.l.b16 %v2708
          %v3112 = vunpack.c.h.b16 %v2708
          %v3113 = vunpack.c.l.b16 %v2709
          %v3114 = vunpack.c.h.b16 %v2709
          %v3115 = vunpack.c.l.b16 %v2710
          %v3116 = vunpack.c.h.b16 %v2710
          %v3117 = vunpack.c.l.b16 %v2711
          %v3118 = vunpack.c.h.b16 %v2711
          %v3119 = vunpack.c.l.b16 %v2712
          %v3120 = vunpack.c.h.b16 %v2712
          %v3121 = vunpack.c.l.b16 %v2713
          %v3122 = vunpack.c.h.b16 %v2713
          %v3123 = vunpack.c.l.b16 %v2714
          %v3124 = vunpack.c.h.b16 %v2714
          %v3125 = vunpack.c.l.b16 %v2715
          %v3126 = vunpack.c.h.b16 %v2715
          %v3127 = vunpack.c.l.b16 %v2716
          %v3128 = vunpack.c.h.b16 %v2716
          %v3129 = vunpack.c.l.b16 %v2717
          %v3130 = vunpack.c.h.b16 %v2717
          %v3131 = vunpack.c.l.b16 %v2718
          %v3132 = vunpack.c.h.b16 %v2718
          %v3133 = vunpack.c.l.b16 %v2719
          %v3134 = vunpack.c.h.b16 %v2719
          %v3135 = vunpack.c.l.b16 %v2720
          %v3136 = vunpack.c.h.b16 %v2720
          %v3137 = vunpack.c.l.b16 %v2721
          %v3138 = vunpack.c.h.b16 %v2721
          %v3139 = vunpack.c.l.b16 %v2722
          %v3140 = vunpack.c.h.b16 %v2722
          %v3141 = vunpack.c.l.b16 %v2723
          %v3142 = vunpack.c.h.b16 %v2723
          %v3143 = vunpack.c.l.b16 %v2724
          %v3144 = vunpack.c.h.b16 %v2724
          %v3145 = vunpack.c.l.b16 %v2725
          %v3146 = vunpack.c.h.b16 %v2725
          %v3147 = vunpack.c.l.b16 %v2726
          %v3148 = vunpack.c.h.b16 %v2726
          %v3149 = vunpack.c.l.b16 %v2727
          %v3150 = vunpack.c.h.b16 %v2727
          %v3151 = vunpack.c.l.b16 %v2728
          %v3152 = vunpack.c.h.b16 %v2728
          %v3153 = vunpack.c.l.b16 %v2729
          %v3154 = vunpack.c.h.b16 %v2729
          %v3155 = vunpack.c.l.b16 %v2730
          %v3156 = vunpack.c.h.b16 %v2730
          %v3157 = vunpack.c.l.b16 %v2731
          %v3158 = vunpack.c.h.b16 %v2731
          %v3159 = vunpack.c.l.b16 %v2732
          %v3160 = vunpack.c.h.b16 %v2732
          %v3161 = vunpack.c.l.b16 %v2733
          %v3162 = vunpack.c.h.b16 %v2733
          %v3163 = vunpack.c.l.b16 %v2734
          %v3164 = vunpack.c.h.b16 %v2734
          %v3165 = vunpack.c.l.b16 %v2735
          %v3166 = vunpack.c.h.b16 %v2735
          %v3167 = vunpack.c.l.b16 %v2736
          %v3168 = vunpack.c.h.b16 %v2736
          %v3169 = vunpack.c.l.b16 %v2737
          %v3170 = vunpack.c.h.b16 %v2737
          %v3171 = vunpack.c.l.b16 %v2738
          %v3172 = vunpack.c.h.b16 %v2738
          %v3173 = vunpack.c.l.b16 %v2739
          %v3174 = vunpack.c.h.b16 %v2739
          %v3175 = vunpack.c.l.b16 %v2740
          %v3176 = vunpack.c.h.b16 %v2740
          %v3177 = vunpack.c.l.b16 %v2741
          %v3178 = vunpack.c.h.b16 %v2741
          %v3179 = vunpack.c.l.b16 %v2742
          %v3180 = vunpack.c.h.b16 %v2742
          %v3181 = vunpack.c.l.b16 %v2743
          %v3182 = vunpack.c.h.b16 %v2743
          %v3183 = vunpack.c.l.b16 %v2744
          %v3184 = vunpack.c.h.b16 %v2744
          %v3185 = vunpack.c.l.b16 %v2745
          %v3186 = vunpack.c.h.b16 %v2745
          %v3187 = vunpack.c.l.b16 %v2746
          %v3188 = vunpack.c.h.b16 %v2746
          %v3189 = vunpack.c.l.b16 %v2747
          %v3190 = vunpack.c.h.b16 %v2747
          %v3191 = vunpack.c.l.b16 %v2748
          %v3192 = vunpack.c.h.b16 %v2748
          %v3193 = vunpack.c.l.b16 %v2749
          %v3194 = vunpack.c.h.b16 %v2749
          %v3195 = vunpack.c.l.b16 %v2750
          %v3196 = vunpack.c.h.b16 %v2750
          %v3197 = vunpack.c.l.b16 %v2751
          %v3198 = vunpack.c.h.b16 %v2751
          %v3199 = vunpack.c.l.b16 %v2752
          %v3200 = vunpack.c.h.b16 %v2752
          %v3201 = vunpack.c.l.b16 %v2753
          %v3202 = vunpack.c.h.b16 %v2753
          %v3203 = vunpack.c.l.b16 %v2754
          %v3204 = vunpack.c.h.b16 %v2754
          %v3205 = vunpack.c.l.b16 %v2755
          %v3206 = vunpack.c.h.b16 %v2755
          %v3207 = vunpack.c.l.b16 %v2756
          %v3208 = vunpack.c.h.b16 %v2756
          %v3209 = vunpack.c.l.b16 %v2757
          %v3210 = vunpack.c.h.b16 %v2757
          %v3211 = vunpack.c.l.b16 %v2758
          %v3212 = vunpack.c.h.b16 %v2758
          %v3213 = vunpack.c.l.b16 %v2759
          %v3214 = vunpack.c.h.b16 %v2759
          %v3215 = vunpack.c.l.b16 %v2760
          %v3216 = vunpack.c.h.b16 %v2760
          %v3217 = vunpack.c.l.b16 %v2761
          %v3218 = vunpack.c.h.b16 %v2761
          %v3219 = vunpack.c.l.b16 %v2762
          %v3220 = vunpack.c.h.b16 %v2762
          %v3221 = vunpack.c.l.b16 %v2763
          %v3222 = vunpack.c.h.b16 %v2763
          %v3223 = vunpack.c.l.b16 %v2764
          %v3224 = vunpack.c.h.b16 %v2764
          %v3225 = vunpack.c.l.b16 %v2765
          %v3226 = vunpack.c.h.b16 %v2765
          %v3227 = vunpack.c.l.b16 %v2766
          %v3228 = vunpack.c.h.b16 %v2766
          %v3229 = vunpack.c.l.b16 %v2767
          %v3230 = vunpack.c.h.b16 %v2767
          %v3231 = vunpack.c.l.b16 %v2768
          %v3232 = vunpack.c.h.b16 %v2768
          %v3233 = vunpack.c.l.b16 %v2769
          %v3234 = vunpack.c.h.b16 %v2769
          %v3235 = vunpack.c.l.b16 %v2770
          %v3236 = vunpack.c.h.b16 %v2770
          %v3237 = vunpack.c.l.b16 %v2771
          %v3238 = vunpack.c.h.b16 %v2771
          %v3239 = vunpack.c.l.b16 %v2772
          %v3240 = vunpack.c.h.b16 %v2772
          %v3241 = vunpack.c.l.b16 %v2773
          %v3242 = vunpack.c.h.b16 %v2773
          %v3243 = vunpack.c.l.b16 %v2774
          %v3244 = vunpack.c.h.b16 %v2774
          %v3245 = vunpack.c.l.b16 %v2775
          %v3246 = vunpack.c.h.b16 %v2775
          %v3247 = vunpack.c.l.b16 %v2776
          %v3248 = vunpack.c.h.b16 %v2776
          %v3249 = vunpack.c.l.b16 %v2777
          %v3250 = vunpack.c.h.b16 %v2777
          %v3251 = vunpack.c.l.b16 %v2778
          %v3252 = vunpack.c.h.b16 %v2778
          %v3253 = vunpack.c.l.b16 %v2779
          %v3254 = vunpack.c.h.b16 %v2779
          %v3255 = vunpack.c.l.b16 %v2780
          %v3256 = vunpack.c.h.b16 %v2780
          %v3257 = vunpack.c.l.b16 %v2781
          %v3258 = vunpack.c.h.b16 %v2781
          %v3259 = vunpack.c.l.b16 %v2782
          %v3260 = vunpack.c.h.b16 %v2782
          %v3261 = vunpack.c.l.b16 %v2783
          %v3262 = vunpack.c.h.b16 %v2783
          %v3263 = vunpack.c.l.b16 %v2784
          %v3264 = vunpack.c.h.b16 %v2784
          %v3265 = vunpack.c.l.b16 %v2785
          %v3266 = vunpack.c.h.b16 %v2785
          %v3267 = vunpack.c.l.b16 %v2786
          %v3268 = vunpack.c.h.b16 %v2786
          %v3269 = vunpack.c.l.b16 %v2787
          %v3270 = vunpack.c.h.b16 %v2787
          %v3271 = vunpack.c.l.b16 %v2788
          %v3272 = vunpack.c.h.b16 %v2788
          %v3273 = vunpack.c.l.b16 %v2789
          %v3274 = vunpack.c.h.b16 %v2789
          %v3275 = vunpack.c.l.b16 %v2790
          %v3276 = vunpack.c.h.b16 %v2790
          %v3277 = vunpack.c.l.b16 %v2791
          %v3278 = vunpack.c.h.b16 %v2791
          %v3279 = vunpack.c.l.b16 %v2792
          %v3280 = vunpack.c.h.b16 %v2792
          %v3281 = vunpack.c.l.b16 %v2793
          %v3282 = vunpack.c.h.b16 %v2793
          %v3283 = vunpack.c.l.b16 %v2794
          %v3284 = vunpack.c.h.b16 %v2794
          %v3285 = vunpack.c.l.b16 %v2795
          %v3286 = vunpack.c.h.b16 %v2795
          %v3287 = vunpack.c.l.b16 %v2796
          %v3288 = vunpack.c.h.b16 %v2796
          %v3289 = vunpack.c.l.b16 %v2797
          %v3290 = vunpack.c.h.b16 %v2797
          %v3291 = vunpack.c.l.b16 %v2798
          %v3292 = vunpack.c.h.b16 %v2798
          %v3293 = vunpack.c.l.b16 %v2799
          %v3294 = vunpack.c.h.b16 %v2799
          %v3295 = vunpack.c.l.b16 %v2800
          %v3296 = vunpack.c.h.b16 %v2800
          %v3297 = vunpack.c.l.b16 %v2801
          %v3298 = vunpack.c.h.b16 %v2801
          %v3299 = vunpack.c.l.b16 %v2802
          %v3300 = vunpack.c.h.b16 %v2802
          %v3301 = vunpack.c.l.b16 %v2803
          %v3302 = vunpack.c.h.b16 %v2803
          %v3303 = vunpack.c.l.b16 %v2804
          %v3304 = vunpack.c.h.b16 %v2804
          %v3305 = vunpack.c.l.b16 %v2805
          %v3306 = vunpack.c.h.b16 %v2805
          %v3307 = vunpack.c.l.b16 %v2806
          %v3308 = vunpack.c.h.b16 %v2806
          %v3309 = vunpack.c.l.b16 %v2807
          %v3310 = vunpack.c.h.b16 %v2807
          %v3311 = vunpack.c.l.b16 %v2808
          %v3312 = vunpack.c.h.b16 %v2808
          %v3313 = vunpack.c.l.b16 %v2809
          %v3314 = vunpack.c.h.b16 %v2809
          %v3315 = vunpack.c.l.b16 %v2810
          %v3316 = vunpack.c.h.b16 %v2810
          %v3317 = vunpack.c.l.b16 %v2811
          %v3318 = vunpack.c.h.b16 %v2811
          %v3319 = vunpack.c.l.b16 %v2812
          %v3320 = vunpack.c.h.b16 %v2812
          %v3321 = vunpack.c.l.b16 %v2813
          %v3322 = vunpack.c.h.b16 %v2813
          %v3323 = vunpack.c.l.b16 %v2814
          %v3324 = vunpack.c.h.b16 %v2814
          %v3325 = vunpack.c.l.b16 %v2815
          %v3326 = vunpack.c.h.b16 %v2815
          %v3327 = vunpack.c.l.b16 %v2816
          %v3328 = vunpack.c.h.b16 %v2816
          %v3329 = vunpack.c.l.b16 %v2817
          %v3330 = vunpack.c.h.b16 %v2817
          %v3331 = vunpack.c.l.b16 %v2818
          %v3332 = vunpack.c.h.b16 %v2818
          %v3333 = vunpack.c.l.b16 %v2819
          %v3334 = vunpack.c.h.b16 %v2819
          %v3335 = vunpack.c.l.b16 %v2820
          %v3336 = vunpack.c.h.b16 %v2820
          %v3337 = vunpack.c.l.b16 %v2821
          %v3338 = vunpack.c.h.b16 %v2821
          %v3339 = vunpack.c.l.b16 %v2822
          %v3340 = vunpack.c.h.b16 %v2822
          %v3341 = vunpack.c.l.b16 %v2823
          %v3342 = vunpack.c.h.b16 %v2823
          %v3343 = vpack.c.b16 %v3095, %v3087
          %v3344 = vpack.c.b16 %v3096, %v3088
          %v3345 = vpack.c.b16 %v3097, %v3089
          %v3346 = vpack.c.b16 %v3098, %v3090
          %v3347 = vpack.c.b16 %v3099, %v3091
          %v3348 = vpack.c.b16 %v3100, %v3092
          %v3349 = vpack.c.b16 %v3101, %v3093
          %v3350 = vpack.c.b16 %v3102, %v3094
          %v3351 = vpack.c.b16 %v3111, %v3103
          %v3352 = vpack.c.b16 %v3112, %v3104
          %v3353 = vpack.c.b16 %v3113, %v3105
          %v3354 = vpack.c.b16 %v3114, %v3106
          %v3355 = vpack.c.b16 %v3115, %v3107
          %v3356 = vpack.c.b16 %v3116, %v3108
          %v3357 = vpack.c.b16 %v3117, %v3109
          %v3358 = vpack.c.b16 %v3118, %v3110
          %v3359 = vpack.c.b16 %v3127, %v3119
          %v3360 = vpack.c.b16 %v3128, %v3120
          %v3361 = vpack.c.b16 %v3129, %v3121
          %v3362 = vpack.c.b16 %v3130, %v3122
          %v3363 = vpack.c.b16 %v3131, %v3123
          %v3364 = vpack.c.b16 %v3132, %v3124
          %v3365 = vpack.c.b16 %v3133, %v3125
          %v3366 = vpack.c.b16 %v3134, %v3126
          %v3367 = vpack.c.b16 %v3143, %v3135
          %v3368 = vpack.c.b16 %v3144, %v3136
          %v3369 = vpack.c.b16 %v3145, %v3137
          %v3370 = vpack.c.b16 %v3146, %v3138
          %v3371 = vpack.c.b16 %v3147, %v3139
          %v3372 = vpack.c.b16 %v3148, %v3140
          %v3373 = vpack.c.b16 %v3149, %v3141
          %v3374 = vpack.c.b16 %v3150, %v3142
          %v3375 = vpack.c.b16 %v3159, %v3151
          %v3376 = vpack.c.b16 %v3160, %v3152
          %v3377 = vpack.c.b16 %v3161, %v3153
          %v3378 = vpack.c.b16 %v3162, %v3154
          %v3379 = vpack.c.b16 %v3163, %v3155
          %v3380 = vpack.c.b16 %v3164, %v3156
          %v3381 = vpack.c.b16 %v3165, %v3157
          %v3382 = vpack.c.b16 %v3166, %v3158
          %v3383 = vpack.c.b16 %v3175, %v3167
          %v3384 = vpack.c.b16 %v3176, %v3168
          %v3385 = vpack.c.b16 %v3177, %v3169
          %v3386 = vpack.c.b16 %v3178, %v3170
          %v3387 = vpack.c.b16 %v3179, %v3171
          %v3388 = vpack.c.b16 %v3180, %v3172
          %v3389 = vpack.c.b16 %v3181, %v3173
          %v3390 = vpack.c.b16 %v3182, %v3174
          %v3391 = vpack.c.b16 %v3191, %v3183
          %v3392 = vpack.c.b16 %v3192, %v3184
          %v3393 = vpack.c.b16 %v3193, %v3185
          %v3394 = vpack.c.b16 %v3194, %v3186
          %v3395 = vpack.c.b16 %v3195, %v3187
          %v3396 = vpack.c.b16 %v3196, %v3188
          %v3397 = vpack.c.b16 %v3197, %v3189
          %v3398 = vpack.c.b16 %v3198, %v3190
          %v3399 = vpack.c.b16 %v3207, %v3199
          %v3400 = vpack.c.b16 %v3208, %v3200
          %v3401 = vpack.c.b16 %v3209, %v3201
          %v3402 = vpack.c.b16 %v3210, %v3202
          %v3403 = vpack.c.b16 %v3211, %v3203
          %v3404 = vpack.c.b16 %v3212, %v3204
          %v3405 = vpack.c.b16 %v3213, %v3205
          %v3406 = vpack.c.b16 %v3214, %v3206
          %v3407 = vpack.c.b16 %v3223, %v3215
          %v3408 = vpack.c.b16 %v3224, %v3216
          %v3409 = vpack.c.b16 %v3225, %v3217
          %v3410 = vpack.c.b16 %v3226, %v3218
          %v3411 = vpack.c.b16 %v3227, %v3219
          %v3412 = vpack.c.b16 %v3228, %v3220
          %v3413 = vpack.c.b16 %v3229, %v3221
          %v3414 = vpack.c.b16 %v3230, %v3222
          %v3415 = vpack.c.b16 %v3239, %v3231
          %v3416 = vpack.c.b16 %v3240, %v3232
          %v3417 = vpack.c.b16 %v3241, %v3233
          %v3418 = vpack.c.b16 %v3242, %v3234
          %v3419 = vpack.c.b16 %v3243, %v3235
          %v3420 = vpack.c.b16 %v3244, %v3236
          %v3421 = vpack.c.b16 %v3245, %v3237
          %v3422 = vpack.c.b16 %v3246, %v3238
          %v3423 = vpack.c.b16 %v3255, %v3247
          %v3424 = vpack.c.b16 %v3256, %v3248
          %v3425 = vpack.c.b16 %v3257, %v3249
          %v3426 = vpack.c.b16 %v3258, %v3250
          %v3427 = vpack.c.b16 %v3259, %v3251
          %v3428 = vpack.c.b16 %v3260, %v3252
          %v3429 = vpack.c.b16 %v3261, %v3253
          %v3430 = vpack.c.b16 %v3262, %v3254
          %v3431 = vpack.c.b16 %v3271, %v3263
          %v3432 = vpack.c.b16 %v3272, %v3264
          %v3433 = vpack.c.b16 %v3273, %v3265
          %v3434 = vpack.c.b16 %v3274, %v3266
          %v3435 = vpack.c.b16 %v3275, %v3267
          %v3436 = vpack.c.b16 %v3276, %v3268
          %v3437 = vpack.c.b16 %v3277, %v3269
          %v3438 = vpack.c.b16 %v3278, %v3270
          %v3439 = vpack.c.b16 %v3287, %v3279
          %v3440 = vpack.c.b16 %v3288, %v3280
          %v3441 = vpack.c.b16 %v3289, %v3281
          %v3442 = vpack.c.b16 %v3290, %v3282
          %v3443 = vpack.c.b16 %v3291, %v3283
          %v3444 = vpack.c.b16 %v3292, %v3284
          %v3445 = vpack.c.b16 %v3293, %v3285
          %v3446 = vpack.c.b16 %v3294, %v3286
          %v3447 = vpack.c.b16 %v3303, %v3295
          %v3448 = vpack.c.b16 %v3304, %v3296
          %v3449 = vpack.c.b16 %v3305, %v3297
          %v3450 = vpack.c.b16 %v3306, %v3298
          %v3451 = vpack.c.b16 %v3307, %v3299
          %v3452 = vpack.c.b16 %v3308, %v3300
          %v3453 = vpack.c.b16 %v3309, %v3301
          %v3454 = vpack.c.b16 %v3310, %v3302
          %v3455 = vpack.c.b16 %v3319, %v3311
          %v3456 = vpack.c.b16 %v3320, %v3312
          %v3457 = vpack.c.b16 %v3321, %v3313
          %v3458 = vpack.c.b16 %v3322, %v3314
          %v3459 = vpack.c.b16 %v3323, %v3315
          %v3460 = vpack.c.b16 %v3324, %v3316
          %v3461 = vpack.c.b16 %v3325, %v3317
          %v3462 = vpack.c.b16 %v3326, %v3318
          %v3463 = vpack.c.b16 %v3335, %v3327
          %v3464 = vpack.c.b16 %v3336, %v3328
          %v3465 = vpack.c.b16 %v3337, %v3329
          %v3466 = vpack.c.b16 %v3338, %v3330
          %v3467 = vpack.c.b16 %v3339, %v3331
          %v3468 = vpack.c.b16 %v3340, %v3332
          %v3469 = vpack.c.b16 %v3341, %v3333
          %v3470 = vpack.c.b16 %v3342, %v3334
          %v3727 = vunpack.c.l.b16 %v2824
          %v3728 = vunpack.c.l.b16 %v2825
          %v3729 = vunpack.c.l.b16 %v2826
          %v3730 = vunpack.c.l.b16 %v2827
          %v3731 = vunpack.c.l.b16 %v2828
          %v3732 = vunpack.c.l.b16 %v2829
          %v3733 = vunpack.c.l.b16 %v2830
          %v3734 = vunpack.c.l.b16 %v2831
          %v3735 = vunpack.c.l.b16 %v2832
          %v3736 = vunpack.c.l.b16 %v2833
          %v3737 = vunpack.c.l.b16 %v2834
          %v3738 = vunpack.c.l.b16 %v2835
          %v3739 = vunpack.c.l.b16 %v2836
          %v3740 = vunpack.c.l.b16 %v2837
          %v3741 = vunpack.c.l.b16 %v2838
          %v3742 = vunpack.c.l.b16 %v2839
          %v3743 = vunpack.c.l.b16 %v2840
          %v3744 = vunpack.c.l.b16 %v2841
          %v3745 = vunpack.c.l.b16 %v2842
          %v3746 = vunpack.c.l.b16 %v2843
          %v3747 = vunpack.c.l.b16 %v2844
          %v3748 = vunpack.c.l.b16 %v2845
          %v3749 = vunpack.c.l.b16 %v2846
          %v3750 = vunpack.c.l.b16 %v2847
          %v3751 = vunpack.c.l.b16 %v2848
          %v3752 = vunpack.c.l.b16 %v2849
          %v3753 = vunpack.c.l.b16 %v2850
          %v3754 = vunpack.c.l.b16 %v2851
          %v3755 = vunpack.c.l.b16 %v2852
          %v3756 = vunpack.c.l.b16 %v2853
          %v3757 = vunpack.c.l.b16 %v2854
          %v3758 = vunpack.c.l.b16 %v2855
          %v3759 = vunpack.c.l.b16 %v2856
          %v3760 = vunpack.c.l.b16 %v2857
          %v3761 = vunpack.c.l.b16 %v2858
          %v3762 = vunpack.c.l.b16 %v2859
          %v3763 = vunpack.c.l.b16 %v2860
          %v3764 = vunpack.c.l.b16 %v2861
          %v3765 = vunpack.c.l.b16 %v2862
          %v3766 = vunpack.c.l.b16 %v2863
          %v3767 = vunpack.c.l.b16 %v2864
          %v3768 = vunpack.c.l.b16 %v2865
          %v3769 = vunpack.c.l.b16 %v2866
          %v3770 = vunpack.c.l.b16 %v2867
          %v3771 = vunpack.c.l.b16 %v2868
          %v3772 = vunpack.c.l.b16 %v2869
          %v3773 = vunpack.c.l.b16 %v2870
          %v3774 = vunpack.c.l.b16 %v2871
          %v3775 = vunpack.c.l.b16 %v2872
          %v3776 = vunpack.c.l.b16 %v2873
          %v3777 = vunpack.c.l.b16 %v2874
          %v3778 = vunpack.c.l.b16 %v2875
          %v3779 = vunpack.c.l.b16 %v2876
          %v3780 = vunpack.c.l.b16 %v2877
          %v3781 = vunpack.c.l.b16 %v2878
          %v3782 = vunpack.c.l.b16 %v2879
          %v3783 = vunpack.c.l.b16 %v2880
          %v3784 = vunpack.c.l.b16 %v2881
          %v3785 = vunpack.c.l.b16 %v2882
          %v3786 = vunpack.c.l.b16 %v2883
          %v3787 = vunpack.c.l.b16 %v2884
          %v3788 = vunpack.c.l.b16 %v2885
          %v3789 = vunpack.c.l.b16 %v2886
          %v3790 = vunpack.c.l.b16 %v2887
          %v3791 = vunpack.c.l.b16 %v2888
          %v3792 = vunpack.c.l.b16 %v2889
          %v3793 = vunpack.c.l.b16 %v2890
          %v3794 = vunpack.c.l.b16 %v2891
          %v3795 = vunpack.c.l.b16 %v2892
          %v3796 = vunpack.c.l.b16 %v2893
          %v3797 = vunpack.c.l.b16 %v2894
          %v3798 = vunpack.c.l.b16 %v2895
          %v3799 = vunpack.c.l.b16 %v2896
          %v3800 = vunpack.c.l.b16 %v2897
          %v3801 = vunpack.c.l.b16 %v2898
          %v3802 = vunpack.c.l.b16 %v2899
          %v3803 = vunpack.c.l.b16 %v2900
          %v3804 = vunpack.c.l.b16 %v2901
          %v3805 = vunpack.c.l.b16 %v2902
          %v3806 = vunpack.c.l.b16 %v2903
          %v3807 = vunpack.c.l.b16 %v2904
          %v3808 = vunpack.c.l.b16 %v2905
          %v3809 = vunpack.c.l.b16 %v2906
          %v3810 = vunpack.c.l.b16 %v2907
          %v3811 = vunpack.c.l.b16 %v2908
          %v3812 = vunpack.c.l.b16 %v2909
          %v3813 = vunpack.c.l.b16 %v2910
          %v3814 = vunpack.c.l.b16 %v2911
          %v3815 = vunpack.c.l.b16 %v2912
          %v3816 = vunpack.c.l.b16 %v2913
          %v3817 = vunpack.c.l.b16 %v2914
          %v3818 = vunpack.c.l.b16 %v2915
          %v3819 = vunpack.c.l.b16 %v2916
          %v3820 = vunpack.c.l.b16 %v2917
          %v3821 = vunpack.c.l.b16 %v2918
          %v3822 = vunpack.c.l.b16 %v2919
          %v3823 = vunpack.c.l.b16 %v2920
          %v3824 = vunpack.c.l.b16 %v2921
          %v3825 = vunpack.c.l.b16 %v2922
          %v3826 = vunpack.c.l.b16 %v2923
          %v3827 = vunpack.c.l.b16 %v2924
          %v3828 = vunpack.c.l.b16 %v2925
          %v3829 = vunpack.c.l.b16 %v2926
          %v3830 = vunpack.c.l.b16 %v2927
          %v3831 = vunpack.c.l.b16 %v2928
          %v3832 = vunpack.c.l.b16 %v2929
          %v3833 = vunpack.c.l.b16 %v2930
          %v3834 = vunpack.c.l.b16 %v2931
          %v3835 = vunpack.c.l.b16 %v2932
          %v3836 = vunpack.c.l.b16 %v2933
          %v3837 = vunpack.c.l.b16 %v2934
          %v3838 = vunpack.c.l.b16 %v2935
          %v3839 = vunpack.c.l.b16 %v2936
          %v3840 = vunpack.c.l.b16 %v2937
          %v3841 = vunpack.c.l.b16 %v2938
          %v3842 = vunpack.c.l.b16 %v2939
          %v3843 = vunpack.c.l.b16 %v2940
          %v3844 = vunpack.c.l.b16 %v2941
          %v3845 = vunpack.c.l.b16 %v2942
          %v3846 = vunpack.c.l.b16 %v2943
          %v3847 = vunpack.c.l.b16 %v2944
          %v3848 = vunpack.c.l.b16 %v2945
          %v3849 = vunpack.c.l.b16 %v2946
          %v3850 = vunpack.c.l.b16 %v2947
          %v3851 = vunpack.c.l.b16 %v2948
          %v3852 = vunpack.c.l.b16 %v2949
          %v3853 = vunpack.c.l.b16 %v2950
          %v3854 = vunpack.c.l.b16 %v2951
          %v3855 = vpack.c.b16 %v3728, %v3727
          %v3856 = vpack.c.b16 %v3730, %v3729
          %v3857 = vpack.c.b16 %v3732, %v3731
          %v3858 = vpack.c.b16 %v3734, %v3733
          %v3859 = vpack.c.b16 %v3736, %v3735
          %v3860 = vpack.c.b16 %v3738, %v3737
          %v3861 = vpack.c.b16 %v3740, %v3739
          %v3862 = vpack.c.b16 %v3742, %v3741
          %v3863 = vpack.c.b16 %v3744, %v3743
          %v3864 = vpack.c.b16 %v3746, %v3745
          %v3865 = vpack.c.b16 %v3748, %v3747
          %v3866 = vpack.c.b16 %v3750, %v3749
          %v3867 = vpack.c.b16 %v3752, %v3751
          %v3868 = vpack.c.b16 %v3754, %v3753
          %v3869 = vpack.c.b16 %v3756, %v3755
          %v3870 = vpack.c.b16 %v3758, %v3757
          %v3871 = vpack.c.b16 %v3760, %v3759
          %v3872 = vpack.c.b16 %v3762, %v3761
          %v3873 = vpack.c.b16 %v3764, %v3763
          %v3874 = vpack.c.b16 %v3766, %v3765
          %v3875 = vpack.c.b16 %v3768, %v3767
          %v3876 = vpack.c.b16 %v3770, %v3769
          %v3877 = vpack.c.b16 %v3772, %v3771
          %v3878 = vpack.c.b16 %v3774, %v3773
          %v3879 = vpack.c.b16 %v3776, %v3775
          %v3880 = vpack.c.b16 %v3778, %v3777
          %v3881 = vpack.c.b16 %v3780, %v3779
          %v3882 = vpack.c.b16 %v3782, %v3781
          %v3883 = vpack.c.b16 %v3784, %v3783
          %v3884 = vpack.c.b16 %v3786, %v3785
          %v3885 = vpack.c.b16 %v3788, %v3787
          %v3886 = vpack.c.b16 %v3790, %v3789
          %v3887 = vpack.c.b16 %v3792, %v3791
          %v3888 = vpack.c.b16 %v3794, %v3793
          %v3889 = vpack.c.b16 %v3796, %v3795
          %v3890 = vpack.c.b16 %v3798, %v3797
          %v3891 = vpack.c.b16 %v3800, %v3799
          %v3892 = vpack.c.b16 %v3802, %v3801
          %v3893 = vpack.c.b16 %v3804, %v3803
          %v3894 = vpack.c.b16 %v3806, %v3805
          %v3895 = vpack.c.b16 %v3808, %v3807
          %v3896 = vpack.c.b16 %v3810, %v3809
          %v3897 = vpack.c.b16 %v3812, %v3811
          %v3898 = vpack.c.b16 %v3814, %v3813
          %v3899 = vpack.c.b16 %v3816, %v3815
          %v3900 = vpack.c.b16 %v3818, %v3817
          %v3901 = vpack.c.b16 %v3820, %v3819
          %v3902 = vpack.c.b16 %v3822, %v3821
          %v3903 = vpack.c.b16 %v3824, %v3823
          %v3904 = vpack.c.b16 %v3826, %v3825
          %v3905 = vpack.c.b16 %v3828, %v3827
          %v3906 = vpack.c.b16 %v3830, %v3829
          %v3907 = vpack.c.b16 %v3832, %v3831
          %v3908 = vpack.c.b16 %v3834, %v3833
          %v3909 = vpack.c.b16 %v3836, %v3835
          %v3910 = vpack.c.b16 %v3838, %v3837
          %v3911 = vpack.c.b16 %v3840, %v3839
          %v3912 = vpack.c.b16 %v3842, %v3841
          %v3913 = vpack.c.b16 %v3844, %v3843
          %v3914 = vpack.c.b16 %v3846, %v3845
          %v3915 = vpack.c.b16 %v3848, %v3847
          %v3916 = vpack.c.b16 %v3850, %v3849
          %v3917 = vpack.c.b16 %v3852, %v3851
          %v3918 = vpack.c.b16 %v3854, %v3853
          %3983 = vmatprep.subr.bf16.mxu0 0
          %3984 = vmatpush1.bf16.msra.mxu0 %v3862
          %3985 = vmatprep.subr.bf16.mxu0 0
          %3986 = vmatpush1.bf16.msra.mxu0 %v3861
          %3987 = vmatprep.subr.bf16.mxu0 0
          %3988 = vmatpush1.bf16.msra.mxu0 %v3860
          %3989 = vmatprep.subr.bf16.mxu0 0
          %3990 = vmatpush1.bf16.msra.mxu0 %v3859
          %3991 = vmatprep.subr.bf16.mxu0 0
          %3992 = vmatpush1.bf16.msra.mxu0 %v3858
          %3993 = vmatprep.subr.bf16.mxu0 0
          %3994 = vmatpush1.bf16.msra.mxu0 %v3857
          %3995 = vmatprep.subr.bf16.mxu0 0
          %3996 = vmatpush1.bf16.msra.mxu0 %v3856
          %3997 = vmatprep.subr.bf16.mxu0 0
          %3998 = vmatpush1.bf16.msra.mxu0 %v3855
          %3999 = vmatprep.subr.bf16.mxu0 0
          %4000 = vmatpush2.bf16.msra.mxu0 %v3870
          %4001 = vmatprep.subr.bf16.mxu0 0
          %4002 = vmatpush2.bf16.msra.mxu0 %v3869
          %4003 = vmatprep.subr.bf16.mxu0 0
          %4004 = vmatpush2.bf16.msra.mxu0 %v3868
          %4005 = vmatprep.subr.bf16.mxu0 0
          %4006 = vmatpush2.bf16.msra.mxu0 %v3867
          %4007 = vmatprep.subr.bf16.mxu0 0
          %4008 = vmatpush2.bf16.msra.mxu0 %v3866
          %4009 = vmatprep.subr.bf16.mxu0 0
          %4010 = vmatpush2.bf16.msra.mxu0 %v3865
          %4011 = vmatprep.subr.bf16.mxu0 0
          %4012 = vmatpush2.bf16.msra.mxu0 %v3864
          %4013 = vmatprep.subr.bf16.mxu0 0
          %4014 = vmatpush2.bf16.msra.mxu0 %v3863
          %4015 = vmatprep.mubr.bf16.mxu0 %v3344
          %4016 = vmatmul.mubr.bf16.gmra.mxu0 %v3343
          %v4017 = vpop.f32.mrf.mxu0
          %v4018 = vadd.f32 %v2957, %v4017
          %v4019 = vpop.f32.mrf.mxu0
          %v4020 = vpop.f32.mrf.mxu0
          %v4021 = vadd.f32 %v2957, %v4020
          %v4022 = vpop.f32.mrf.mxu0
          %4023 = vmatprep.mubr.bf16.mxu0 %v3352
          %4024 = vmatmul.mubr.bf16.gmra.mxu0 %v3351
          %v4025 = vpop.f32.mrf.mxu0
          %v4026 = vadd.f32 %v2957, %v4025
          %v4027 = vpop.f32.mrf.mxu0
          %v4028 = vpop.f32.mrf.mxu0
          %v4029 = vadd.f32 %v2957, %v4028
          %v4030 = vpop.f32.mrf.mxu0
          %4031 = vmatprep.mubr.bf16.mxu0 %v3360
          %4032 = vmatmul.mubr.bf16.gmra.mxu0 %v3359
          %v4033 = vpop.f32.mrf.mxu0
          %v4034 = vadd.f32 %v2957, %v4033
          %v4035 = vpop.f32.mrf.mxu0
          %v4036 = vpop.f32.mrf.mxu0
          %v4037 = vadd.f32 %v2957, %v4036
          %v4038 = vpop.f32.mrf.mxu0
          %4039 = vmatprep.mubr.bf16.mxu0 %v3368
          %4040 = vmatmul.mubr.bf16.gmra.mxu0 %v3367
          %v4041 = vpop.f32.mrf.mxu0
          %v4042 = vadd.f32 %v2957, %v4041
          %v4043 = vpop.f32.mrf.mxu0
          %v4044 = vpop.f32.mrf.mxu0
          %v4045 = vadd.f32 %v2957, %v4044
          %v4046 = vpop.f32.mrf.mxu0
          %4047 = vmatprep.mubr.bf16.mxu0 %v3376
          %4048 = vmatmul.mubr.bf16.gmra.mxu0 %v3375
          %v4049 = vpop.f32.mrf.mxu0
          %v4050 = vadd.f32 %v2957, %v4049
          %v4051 = vpop.f32.mrf.mxu0
          %v4052 = vpop.f32.mrf.mxu0
          %v4053 = vadd.f32 %v2957, %v4052
          %v4054 = vpop.f32.mrf.mxu0
          %4055 = vmatprep.mubr.bf16.mxu0 %v3384
          %4056 = vmatmul.mubr.bf16.gmra.mxu0 %v3383
          %v4057 = vpop.f32.mrf.mxu0
          %v4058 = vadd.f32 %v2957, %v4057
          %v4059 = vpop.f32.mrf.mxu0
          %v4060 = vpop.f32.mrf.mxu0
          %v4061 = vadd.f32 %v2957, %v4060
          %v4062 = vpop.f32.mrf.mxu0
          %4063 = vmatprep.mubr.bf16.mxu0 %v3392
          %4064 = vmatmul.mubr.bf16.gmra.mxu0 %v3391
          %v4065 = vpop.f32.mrf.mxu0
          %v4066 = vadd.f32 %v2957, %v4065
          %v4067 = vpop.f32.mrf.mxu0
          %v4068 = vpop.f32.mrf.mxu0
          %v4069 = vadd.f32 %v2957, %v4068
          %v4070 = vpop.f32.mrf.mxu0
          %4071 = vmatprep.mubr.bf16.mxu0 %v3400
          %4072 = vmatmul.mubr.bf16.gmra.mxu0 %v3399
          %v4073 = vpop.f32.mrf.mxu0
          %v4074 = vadd.f32 %v2957, %v4073
          %v4075 = vpop.f32.mrf.mxu0
          %v4076 = vpop.f32.mrf.mxu0
          %v4077 = vadd.f32 %v2957, %v4076
          %v4078 = vpop.f32.mrf.mxu0
          %4079 = vmatprep.mubr.bf16.mxu0 %v3408
          %4080 = vmatmul.mubr.bf16.gmra.mxu0 %v3407
          %v4081 = vpop.f32.mrf.mxu0
          %v4082 = vadd.f32 %v2957, %v4081
          %v4083 = vpop.f32.mrf.mxu0
          %v4084 = vpop.f32.mrf.mxu0
          %v4085 = vadd.f32 %v2957, %v4084
          %v4086 = vpop.f32.mrf.mxu0
          %4087 = vmatprep.mubr.bf16.mxu0 %v3416
          %4088 = vmatmul.mubr.bf16.gmra.mxu0 %v3415
          %v4089 = vpop.f32.mrf.mxu0
          %v4090 = vadd.f32 %v2957, %v4089
          %v4091 = vpop.f32.mrf.mxu0
          %v4092 = vpop.f32.mrf.mxu0
          %v4093 = vadd.f32 %v2957, %v4092
          %v4094 = vpop.f32.mrf.mxu0
          %4095 = vmatprep.mubr.bf16.mxu0 %v3424
          %4096 = vmatmul.mubr.bf16.gmra.mxu0 %v3423
          %v4097 = vpop.f32.mrf.mxu0
          %v4098 = vadd.f32 %v2957, %v4097
          %v4099 = vpop.f32.mrf.mxu0
          %v4100 = vpop.f32.mrf.mxu0
          %v4101 = vadd.f32 %v2957, %v4100
          %v4102 = vpop.f32.mrf.mxu0
          %4103 = vmatprep.mubr.bf16.mxu0 %v3432
          %4104 = vmatmul.mubr.bf16.gmra.mxu0 %v3431
          %v4105 = vpop.f32.mrf.mxu0
          %v4106 = vadd.f32 %v2957, %v4105
          %v4107 = vpop.f32.mrf.mxu0
          %v4108 = vpop.f32.mrf.mxu0
          %v4109 = vadd.f32 %v2957, %v4108
          %v4110 = vpop.f32.mrf.mxu0
          %4111 = vmatprep.mubr.bf16.mxu0 %v3440
          %4112 = vmatmul.mubr.bf16.gmra.mxu0 %v3439
          %v4113 = vpop.f32.mrf.mxu0
          %v4114 = vadd.f32 %v2957, %v4113
          %v4115 = vpop.f32.mrf.mxu0
          %v4116 = vpop.f32.mrf.mxu0
          %v4117 = vadd.f32 %v2957, %v4116
          %v4118 = vpop.f32.mrf.mxu0
          %4119 = vmatprep.mubr.bf16.mxu0 %v3448
          %4120 = vmatmul.mubr.bf16.gmra.mxu0 %v3447
          %v4121 = vpop.f32.mrf.mxu0
          %v4122 = vadd.f32 %v2957, %v4121
          %v4123 = vpop.f32.mrf.mxu0
          %v4124 = vpop.f32.mrf.mxu0
          %v4125 = vadd.f32 %v2957, %v4124
          %v4126 = vpop.f32.mrf.mxu0
          %4127 = vmatprep.mubr.bf16.mxu0 %v3456
          %4128 = vmatmul.mubr.bf16.gmra.mxu0 %v3455
          %v4129 = vpop.f32.mrf.mxu0
          %v4130 = vadd.f32 %v2957, %v4129
          %v4131 = vpop.f32.mrf.mxu0
          %v4132 = vpop.f32.mrf.mxu0
          %v4133 = vadd.f32 %v2957, %v4132
          %v4134 = vpop.f32.mrf.mxu0
          %4135 = vmatprep.mubr.bf16.mxu0 %v3464
          %4136 = vmatmul.mubr.bf16.gmra.mxu0 %v3463
          %v4137 = vpop.f32.mrf.mxu0
          %v4138 = vadd.f32 %v2957, %v4137
          %v4139 = vpop.f32.mrf.mxu0
          %v4140 = vpop.f32.mrf.mxu0
          %v4141 = vadd.f32 %v2957, %v4140
          %v4142 = vpop.f32.mrf.mxu0
          %4143 = vdwg.mxu0
          %4144 = vmatprep.subr.bf16.mxu0 0
          %4145 = vmatpush1.bf16.msra.mxu0 %v3878
          %4146 = vmatprep.subr.bf16.mxu0 0
          %4147 = vmatpush1.bf16.msra.mxu0 %v3877
          %4148 = vmatprep.subr.bf16.mxu0 0
          %4149 = vmatpush1.bf16.msra.mxu0 %v3876
          %4150 = vmatprep.subr.bf16.mxu0 0
          %4151 = vmatpush1.bf16.msra.mxu0 %v3875
          %4152 = vmatprep.subr.bf16.mxu0 0
          %4153 = vmatpush1.bf16.msra.mxu0 %v3874
          %4154 = vmatprep.subr.bf16.mxu0 0
          %4155 = vmatpush1.bf16.msra.mxu0 %v3873
          %4156 = vmatprep.subr.bf16.mxu0 0
          %4157 = vmatpush1.bf16.msra.mxu0 %v3872
          %4158 = vmatprep.subr.bf16.mxu0 0
          %4159 = vmatpush1.bf16.msra.mxu0 %v3871
          %4160 = vmatprep.subr.bf16.mxu0 0
          %4161 = vmatpush2.bf16.msra.mxu0 %v3886
          %4162 = vmatprep.subr.bf16.mxu0 0
          %4163 = vmatpush2.bf16.msra.mxu0 %v3885
          %4164 = vmatprep.subr.bf16.mxu0 0
          %4165 = vmatpush2.bf16.msra.mxu0 %v3884
          %4166 = vmatprep.subr.bf16.mxu0 0
          %4167 = vmatpush2.bf16.msra.mxu0 %v3883
          %4168 = vmatprep.subr.bf16.mxu0 0
          %4169 = vmatpush2.bf16.msra.mxu0 %v3882
          %4170 = vmatprep.subr.bf16.mxu0 0
          %4171 = vmatpush2.bf16.msra.mxu0 %v3881
          %4172 = vmatprep.subr.bf16.mxu0 0
          %4173 = vmatpush2.bf16.msra.mxu0 %v3880
          %4174 = vmatprep.subr.bf16.mxu0 0
          %4175 = vmatpush2.bf16.msra.mxu0 %v3879
          %4176 = vmatprep.mubr.bf16.mxu0 %v3346
          %4177 = vmatmul.mubr.bf16.gmra.mxu0 %v3345
          %v4178 = vpop.f32.mrf.mxu0
          %v4179 = vadd.f32 %v4018, %v4178
          %v4180 = vpop.f32.mrf.mxu0
          %v4181 = vpop.f32.mrf.mxu0
          %v4182 = vadd.f32 %v4021, %v4181
          %v4183 = vpop.f32.mrf.mxu0
          %4184 = vmatprep.mubr.bf16.mxu0 %v3354
          %4185 = vmatmul.mubr.bf16.gmra.mxu0 %v3353
          %v4186 = vpop.f32.mrf.mxu0
          %v4187 = vadd.f32 %v4026, %v4186
          %v4188 = vpop.f32.mrf.mxu0
          %v4189 = vpop.f32.mrf.mxu0
          %v4190 = vadd.f32 %v4029, %v4189
          %v4191 = vpop.f32.mrf.mxu0
          %4192 = vmatprep.mubr.bf16.mxu0 %v3362
          %4193 = vmatmul.mubr.bf16.gmra.mxu0 %v3361
          %v4194 = vpop.f32.mrf.mxu0
          %v4195 = vadd.f32 %v4034, %v4194
          %v4196 = vpop.f32.mrf.mxu0
          %v4197 = vpop.f32.mrf.mxu0
          %v4198 = vadd.f32 %v4037, %v4197
          %v4199 = vpop.f32.mrf.mxu0
          %4200 = vmatprep.mubr.bf16.mxu0 %v3370
          %4201 = vmatmul.mubr.bf16.gmra.mxu0 %v3369
          %v4202 = vpop.f32.mrf.mxu0
          %v4203 = vadd.f32 %v4042, %v4202
          %v4204 = vpop.f32.mrf.mxu0
          %v4205 = vpop.f32.mrf.mxu0
          %v4206 = vadd.f32 %v4045, %v4205
          %v4207 = vpop.f32.mrf.mxu0
          %4208 = vmatprep.mubr.bf16.mxu0 %v3378
          %4209 = vmatmul.mubr.bf16.gmra.mxu0 %v3377
          %v4210 = vpop.f32.mrf.mxu0
          %v4211 = vadd.f32 %v4050, %v4210
          %v4212 = vpop.f32.mrf.mxu0
          %v4213 = vpop.f32.mrf.mxu0
          %v4214 = vadd.f32 %v4053, %v4213
          %v4215 = vpop.f32.mrf.mxu0
          %4216 = vmatprep.mubr.bf16.mxu0 %v3386
          %4217 = vmatmul.mubr.bf16.gmra.mxu0 %v3385
          %v4218 = vpop.f32.mrf.mxu0
          %v4219 = vadd.f32 %v4058, %v4218
          %v4220 = vpop.f32.mrf.mxu0
          %v4221 = vpop.f32.mrf.mxu0
          %v4222 = vadd.f32 %v4061, %v4221
          %v4223 = vpop.f32.mrf.mxu0
          %4224 = vmatprep.mubr.bf16.mxu0 %v3394
          %4225 = vmatmul.mubr.bf16.gmra.mxu0 %v3393
          %v4226 = vpop.f32.mrf.mxu0
          %v4227 = vadd.f32 %v4066, %v4226
          %v4228 = vpop.f32.mrf.mxu0
          %v4229 = vpop.f32.mrf.mxu0
          %v4230 = vadd.f32 %v4069, %v4229
          %v4231 = vpop.f32.mrf.mxu0
          %4232 = vmatprep.mubr.bf16.mxu0 %v3402
          %4233 = vmatmul.mubr.bf16.gmra.mxu0 %v3401
          %v4234 = vpop.f32.mrf.mxu0
          %v4235 = vadd.f32 %v4074, %v4234
          %v4236 = vpop.f32.mrf.mxu0
          %v4237 = vpop.f32.mrf.mxu0
          %v4238 = vadd.f32 %v4077, %v4237
          %v4239 = vpop.f32.mrf.mxu0
          %4240 = vmatprep.mubr.bf16.mxu0 %v3410
          %4241 = vmatmul.mubr.bf16.gmra.mxu0 %v3409
          %v4242 = vpop.f32.mrf.mxu0
          %v4243 = vadd.f32 %v4082, %v4242
          %v4244 = vpop.f32.mrf.mxu0
          %v4245 = vpop.f32.mrf.mxu0
          %v4246 = vadd.f32 %v4085, %v4245
          %v4247 = vpop.f32.mrf.mxu0
          %4248 = vmatprep.mubr.bf16.mxu0 %v3418
          %4249 = vmatmul.mubr.bf16.gmra.mxu0 %v3417
          %v4250 = vpop.f32.mrf.mxu0
          %v4251 = vadd.f32 %v4090, %v4250
          %v4252 = vpop.f32.mrf.mxu0
          %v4253 = vpop.f32.mrf.mxu0
          %v4254 = vadd.f32 %v4093, %v4253
          %v4255 = vpop.f32.mrf.mxu0
          %4256 = vmatprep.mubr.bf16.mxu0 %v3426
          %4257 = vmatmul.mubr.bf16.gmra.mxu0 %v3425
          %v4258 = vpop.f32.mrf.mxu0
          %v4259 = vadd.f32 %v4098, %v4258
          %v4260 = vpop.f32.mrf.mxu0
          %v4261 = vpop.f32.mrf.mxu0
          %v4262 = vadd.f32 %v4101, %v4261
          %v4263 = vpop.f32.mrf.mxu0
          %4264 = vmatprep.mubr.bf16.mxu0 %v3434
          %4265 = vmatmul.mubr.bf16.gmra.mxu0 %v3433
          %v4266 = vpop.f32.mrf.mxu0
          %v4267 = vadd.f32 %v4106, %v4266
          %v4268 = vpop.f32.mrf.mxu0
          %v4269 = vpop.f32.mrf.mxu0
          %v4270 = vadd.f32 %v4109, %v4269
          %v4271 = vpop.f32.mrf.mxu0
          %4272 = vmatprep.mubr.bf16.mxu0 %v3442
          %4273 = vmatmul.mubr.bf16.gmra.mxu0 %v3441
          %v4274 = vpop.f32.mrf.mxu0
          %v4275 = vadd.f32 %v4114, %v4274
          %v4276 = vpop.f32.mrf.mxu0
          %v4277 = vpop.f32.mrf.mxu0
          %v4278 = vadd.f32 %v4117, %v4277
          %v4279 = vpop.f32.mrf.mxu0
          %4280 = vmatprep.mubr.bf16.mxu0 %v3450
          %4281 = vmatmul.mubr.bf16.gmra.mxu0 %v3449
          %v4282 = vpop.f32.mrf.mxu0
          %v4283 = vadd.f32 %v4122, %v4282
          %v4284 = vpop.f32.mrf.mxu0
          %v4285 = vpop.f32.mrf.mxu0
          %v4286 = vadd.f32 %v4125, %v4285
          %v4287 = vpop.f32.mrf.mxu0
          %4288 = vmatprep.mubr.bf16.mxu0 %v3458
          %4289 = vmatmul.mubr.bf16.gmra.mxu0 %v3457
          %v4290 = vpop.f32.mrf.mxu0
          %v4291 = vadd.f32 %v4130, %v4290
          %v4292 = vpop.f32.mrf.mxu0
          %v4293 = vpop.f32.mrf.mxu0
          %v4294 = vadd.f32 %v4133, %v4293
          %v4295 = vpop.f32.mrf.mxu0
          %4296 = vmatprep.mubr.bf16.mxu0 %v3466
          %4297 = vmatmul.mubr.bf16.gmra.mxu0 %v3465
          %v4298 = vpop.f32.mrf.mxu0
          %v4299 = vadd.f32 %v4138, %v4298
          %v4300 = vpop.f32.mrf.mxu0
          %v4301 = vpop.f32.mrf.mxu0
          %v4302 = vadd.f32 %v4141, %v4301
          %v4303 = vpop.f32.mrf.mxu0
          %4304 = vdwg.mxu0
          %4305 = vmatprep.subr.bf16.mxu0 0
          %4306 = vmatpush1.bf16.msra.mxu0 %v3894
          %4307 = vmatprep.subr.bf16.mxu0 0
          %4308 = vmatpush1.bf16.msra.mxu0 %v3893
          %4309 = vmatprep.subr.bf16.mxu0 0
          %4310 = vmatpush1.bf16.msra.mxu0 %v3892
          %4311 = vmatprep.subr.bf16.mxu0 0
          %4312 = vmatpush1.bf16.msra.mxu0 %v3891
          %4313 = vmatprep.subr.bf16.mxu0 0
          %4314 = vmatpush1.bf16.msra.mxu0 %v3890
          %4315 = vmatprep.subr.bf16.mxu0 0
          %4316 = vmatpush1.bf16.msra.mxu0 %v3889
          %4317 = vmatprep.subr.bf16.mxu0 0
          %4318 = vmatpush1.bf16.msra.mxu0 %v3888
          %4319 = vmatprep.subr.bf16.mxu0 0
          %4320 = vmatpush1.bf16.msra.mxu0 %v3887
          %4321 = vmatprep.subr.bf16.mxu0 0
          %4322 = vmatpush2.bf16.msra.mxu0 %v3902
          %4323 = vmatprep.subr.bf16.mxu0 0
          %4324 = vmatpush2.bf16.msra.mxu0 %v3901
          %4325 = vmatprep.subr.bf16.mxu0 0
          %4326 = vmatpush2.bf16.msra.mxu0 %v3900
          %4327 = vmatprep.subr.bf16.mxu0 0
          %4328 = vmatpush2.bf16.msra.mxu0 %v3899
          %4329 = vmatprep.subr.bf16.mxu0 0
          %4330 = vmatpush2.bf16.msra.mxu0 %v3898
          %4331 = vmatprep.subr.bf16.mxu0 0
          %4332 = vmatpush2.bf16.msra.mxu0 %v3897
          %4333 = vmatprep.subr.bf16.mxu0 0
          %4334 = vmatpush2.bf16.msra.mxu0 %v3896
          %4335 = vmatprep.subr.bf16.mxu0 0
          %4336 = vmatpush2.bf16.msra.mxu0 %v3895
          %4337 = vmatprep.mubr.bf16.mxu0 %v3348
          %4338 = vmatmul.mubr.bf16.gmra.mxu0 %v3347
          %v4339 = vpop.f32.mrf.mxu0
          %v4340 = vadd.f32 %v4179, %v4339
          %v4341 = vpop.f32.mrf.mxu0
          %v4342 = vpop.f32.mrf.mxu0
          %v4343 = vadd.f32 %v4182, %v4342
          %v4344 = vpop.f32.mrf.mxu0
          %4345 = vmatprep.mubr.bf16.mxu0 %v3356
          %4346 = vmatmul.mubr.bf16.gmra.mxu0 %v3355
          %v4347 = vpop.f32.mrf.mxu0
          %v4348 = vadd.f32 %v4187, %v4347
          %v4349 = vpop.f32.mrf.mxu0
          %v4350 = vpop.f32.mrf.mxu0
          %v4351 = vadd.f32 %v4190, %v4350
          %v4352 = vpop.f32.mrf.mxu0
          %4353 = vmatprep.mubr.bf16.mxu0 %v3364
          %4354 = vmatmul.mubr.bf16.gmra.mxu0 %v3363
          %v4355 = vpop.f32.mrf.mxu0
          %v4356 = vadd.f32 %v4195, %v4355
          %v4357 = vpop.f32.mrf.mxu0
          %v4358 = vpop.f32.mrf.mxu0
          %v4359 = vadd.f32 %v4198, %v4358
          %v4360 = vpop.f32.mrf.mxu0
          %4361 = vmatprep.mubr.bf16.mxu0 %v3372
          %4362 = vmatmul.mubr.bf16.gmra.mxu0 %v3371
          %v4363 = vpop.f32.mrf.mxu0
          %v4364 = vadd.f32 %v4203, %v4363
          %v4365 = vpop.f32.mrf.mxu0
          %v4366 = vpop.f32.mrf.mxu0
          %v4367 = vadd.f32 %v4206, %v4366
          %v4368 = vpop.f32.mrf.mxu0
          %4369 = vmatprep.mubr.bf16.mxu0 %v3380
          %4370 = vmatmul.mubr.bf16.gmra.mxu0 %v3379
          %v4371 = vpop.f32.mrf.mxu0
          %v4372 = vadd.f32 %v4211, %v4371
          %v4373 = vpop.f32.mrf.mxu0
          %v4374 = vpop.f32.mrf.mxu0
          %v4375 = vadd.f32 %v4214, %v4374
          %v4376 = vpop.f32.mrf.mxu0
          %4377 = vmatprep.mubr.bf16.mxu0 %v3388
          %4378 = vmatmul.mubr.bf16.gmra.mxu0 %v3387
          %v4379 = vpop.f32.mrf.mxu0
          %v4380 = vadd.f32 %v4219, %v4379
          %v4381 = vpop.f32.mrf.mxu0
          %v4382 = vpop.f32.mrf.mxu0
          %v4383 = vadd.f32 %v4222, %v4382
          %v4384 = vpop.f32.mrf.mxu0
          %4385 = vmatprep.mubr.bf16.mxu0 %v3396
          %4386 = vmatmul.mubr.bf16.gmra.mxu0 %v3395
          %v4387 = vpop.f32.mrf.mxu0
          %v4388 = vadd.f32 %v4227, %v4387
          %v4389 = vpop.f32.mrf.mxu0
          %v4390 = vpop.f32.mrf.mxu0
          %v4391 = vadd.f32 %v4230, %v4390
          %v4392 = vpop.f32.mrf.mxu0
          %4393 = vmatprep.mubr.bf16.mxu0 %v3404
          %4394 = vmatmul.mubr.bf16.gmra.mxu0 %v3403
          %v4395 = vpop.f32.mrf.mxu0
          %v4396 = vadd.f32 %v4235, %v4395
          %v4397 = vpop.f32.mrf.mxu0
          %v4398 = vpop.f32.mrf.mxu0
          %v4399 = vadd.f32 %v4238, %v4398
          %v4400 = vpop.f32.mrf.mxu0
          %4401 = vmatprep.mubr.bf16.mxu0 %v3412
          %4402 = vmatmul.mubr.bf16.gmra.mxu0 %v3411
          %v4403 = vpop.f32.mrf.mxu0
          %v4404 = vadd.f32 %v4243, %v4403
          %v4405 = vpop.f32.mrf.mxu0
          %v4406 = vpop.f32.mrf.mxu0
          %v4407 = vadd.f32 %v4246, %v4406
          %v4408 = vpop.f32.mrf.mxu0
          %4409 = vmatprep.mubr.bf16.mxu0 %v3420
          %4410 = vmatmul.mubr.bf16.gmra.mxu0 %v3419
          %v4411 = vpop.f32.mrf.mxu0
          %v4412 = vadd.f32 %v4251, %v4411
          %v4413 = vpop.f32.mrf.mxu0
          %v4414 = vpop.f32.mrf.mxu0
          %v4415 = vadd.f32 %v4254, %v4414
          %v4416 = vpop.f32.mrf.mxu0
          %4417 = vmatprep.mubr.bf16.mxu0 %v3428
          %4418 = vmatmul.mubr.bf16.gmra.mxu0 %v3427
          %v4419 = vpop.f32.mrf.mxu0
          %v4420 = vadd.f32 %v4259, %v4419
          %v4421 = vpop.f32.mrf.mxu0
          %v4422 = vpop.f32.mrf.mxu0
          %v4423 = vadd.f32 %v4262, %v4422
          %v4424 = vpop.f32.mrf.mxu0
          %4425 = vmatprep.mubr.bf16.mxu0 %v3436
          %4426 = vmatmul.mubr.bf16.gmra.mxu0 %v3435
          %v4427 = vpop.f32.mrf.mxu0
          %v4428 = vadd.f32 %v4267, %v4427
          %v4429 = vpop.f32.mrf.mxu0
          %v4430 = vpop.f32.mrf.mxu0
          %v4431 = vadd.f32 %v4270, %v4430
          %v4432 = vpop.f32.mrf.mxu0
          %4433 = vmatprep.mubr.bf16.mxu0 %v3444
          %4434 = vmatmul.mubr.bf16.gmra.mxu0 %v3443
          %v4435 = vpop.f32.mrf.mxu0
          %v4436 = vadd.f32 %v4275, %v4435
          %v4437 = vpop.f32.mrf.mxu0
          %v4438 = vpop.f32.mrf.mxu0
          %v4439 = vadd.f32 %v4278, %v4438
          %v4440 = vpop.f32.mrf.mxu0
          %4441 = vmatprep.mubr.bf16.mxu0 %v3452
          %4442 = vmatmul.mubr.bf16.gmra.mxu0 %v3451
          %v4443 = vpop.f32.mrf.mxu0
          %v4444 = vadd.f32 %v4283, %v4443
          %v4445 = vpop.f32.mrf.mxu0
          %v4446 = vpop.f32.mrf.mxu0
          %v4447 = vadd.f32 %v4286, %v4446
          %v4448 = vpop.f32.mrf.mxu0
          %4449 = vmatprep.mubr.bf16.mxu0 %v3460
          %4450 = vmatmul.mubr.bf16.gmra.mxu0 %v3459
          %v4451 = vpop.f32.mrf.mxu0
          %v4452 = vadd.f32 %v4291, %v4451
          %v4453 = vpop.f32.mrf.mxu0
          %v4454 = vpop.f32.mrf.mxu0
          %v4455 = vadd.f32 %v4294, %v4454
          %v4456 = vpop.f32.mrf.mxu0
          %4457 = vmatprep.mubr.bf16.mxu0 %v3468
          %4458 = vmatmul.mubr.bf16.gmra.mxu0 %v3467
          %v4459 = vpop.f32.mrf.mxu0
          %v4460 = vadd.f32 %v4299, %v4459
          %v4461 = vpop.f32.mrf.mxu0
          %v4462 = vpop.f32.mrf.mxu0
          %v4463 = vadd.f32 %v4302, %v4462
          %v4464 = vpop.f32.mrf.mxu0
          %4465 = vdwg.mxu0
          %4466 = vmatprep.subr.bf16.mxu0 0
          %4467 = vmatpush1.bf16.msra.mxu0 %v3910
          %4468 = vmatprep.subr.bf16.mxu0 0
          %4469 = vmatpush1.bf16.msra.mxu0 %v3909
          %4470 = vmatprep.subr.bf16.mxu0 0
          %4471 = vmatpush1.bf16.msra.mxu0 %v3908
          %4472 = vmatprep.subr.bf16.mxu0 0
          %4473 = vmatpush1.bf16.msra.mxu0 %v3907
          %4474 = vmatprep.subr.bf16.mxu0 0
          %4475 = vmatpush1.bf16.msra.mxu0 %v3906
          %4476 = vmatprep.subr.bf16.mxu0 0
          %4477 = vmatpush1.bf16.msra.mxu0 %v3905
          %4478 = vmatprep.subr.bf16.mxu0 0
          %4479 = vmatpush1.bf16.msra.mxu0 %v3904
          %4480 = vmatprep.subr.bf16.mxu0 0
          %4481 = vmatpush1.bf16.msra.mxu0 %v3903
          %4482 = vmatprep.subr.bf16.mxu0 0
          %4483 = vmatpush2.bf16.msra.mxu0 %v3918
          %4484 = vmatprep.subr.bf16.mxu0 0
          %4485 = vmatpush2.bf16.msra.mxu0 %v3917
          %4486 = vmatprep.subr.bf16.mxu0 0
          %4487 = vmatpush2.bf16.msra.mxu0 %v3916
          %4488 = vmatprep.subr.bf16.mxu0 0
          %4489 = vmatpush2.bf16.msra.mxu0 %v3915
          %4490 = vmatprep.subr.bf16.mxu0 0
          %4491 = vmatpush2.bf16.msra.mxu0 %v3914
          %4492 = vmatprep.subr.bf16.mxu0 0
          %4493 = vmatpush2.bf16.msra.mxu0 %v3913
          %4494 = vmatprep.subr.bf16.mxu0 0
          %4495 = vmatpush2.bf16.msra.mxu0 %v3912
          %4496 = vmatprep.subr.bf16.mxu0 0
          %4497 = vmatpush2.bf16.msra.mxu0 %v3911
          %4498 = vmatprep.mubr.bf16.mxu0 %v3350
          %4499 = vmatmul.mubr.bf16.gmra.mxu0 %v3349
          %v4500 = vpop.f32.mrf.mxu0
          %v4501 = vadd.f32 %v4340, %v4500
          %v4502 = vpop.f32.mrf.mxu0
          %v4503 = vpop.f32.mrf.mxu0
          %v4504 = vadd.f32 %v4343, %v4503
          %v4505 = vpop.f32.mrf.mxu0
          %4506 = vmatprep.mubr.bf16.mxu0 %v3358
          %4507 = vmatmul.mubr.bf16.gmra.mxu0 %v3357
          %v4508 = vpop.f32.mrf.mxu0
          %v4509 = vadd.f32 %v4348, %v4508
          %v4510 = vpop.f32.mrf.mxu0
          %v4511 = vpop.f32.mrf.mxu0
          %v4512 = vadd.f32 %v4351, %v4511
          %v4513 = vpop.f32.mrf.mxu0
          %4514 = vmatprep.mubr.bf16.mxu0 %v3366
          %4515 = vmatmul.mubr.bf16.gmra.mxu0 %v3365
          %v4516 = vpop.f32.mrf.mxu0
          %v4517 = vadd.f32 %v4356, %v4516
          %v4518 = vpop.f32.mrf.mxu0
          %v4519 = vpop.f32.mrf.mxu0
          %v4520 = vadd.f32 %v4359, %v4519
          %v4521 = vpop.f32.mrf.mxu0
          %4522 = vmatprep.mubr.bf16.mxu0 %v3374
          %4523 = vmatmul.mubr.bf16.gmra.mxu0 %v3373
          %v4524 = vpop.f32.mrf.mxu0
          %v4525 = vadd.f32 %v4364, %v4524
          %v4526 = vpop.f32.mrf.mxu0
          %v4527 = vpop.f32.mrf.mxu0
          %v4528 = vadd.f32 %v4367, %v4527
          %v4529 = vpop.f32.mrf.mxu0
          %4530 = vmatprep.mubr.bf16.mxu0 %v3382
          %4531 = vmatmul.mubr.bf16.gmra.mxu0 %v3381
          %v4532 = vpop.f32.mrf.mxu0
          %v4533 = vadd.f32 %v4372, %v4532
          %v4534 = vpop.f32.mrf.mxu0
          %v4535 = vpop.f32.mrf.mxu0
          %v4536 = vadd.f32 %v4375, %v4535
          %v4537 = vpop.f32.mrf.mxu0
          %4538 = vmatprep.mubr.bf16.mxu0 %v3390
          %4539 = vmatmul.mubr.bf16.gmra.mxu0 %v3389
          %v4540 = vpop.f32.mrf.mxu0
          %v4541 = vadd.f32 %v4380, %v4540
          %v4542 = vpop.f32.mrf.mxu0
          %v4543 = vpop.f32.mrf.mxu0
          %v4544 = vadd.f32 %v4383, %v4543
          %v4545 = vpop.f32.mrf.mxu0
          %4546 = vmatprep.mubr.bf16.mxu0 %v3398
          %4547 = vmatmul.mubr.bf16.gmra.mxu0 %v3397
          %v4548 = vpop.f32.mrf.mxu0
          %v4549 = vadd.f32 %v4388, %v4548
          %v4550 = vpop.f32.mrf.mxu0
          %v4551 = vpop.f32.mrf.mxu0
          %v4552 = vadd.f32 %v4391, %v4551
          %v4553 = vpop.f32.mrf.mxu0
          %4554 = vmatprep.mubr.bf16.mxu0 %v3406
          %4555 = vmatmul.mubr.bf16.gmra.mxu0 %v3405
          %v4556 = vpop.f32.mrf.mxu0
          %v4557 = vadd.f32 %v4396, %v4556
          %v4558 = vpop.f32.mrf.mxu0
          %v4559 = vpop.f32.mrf.mxu0
          %v4560 = vadd.f32 %v4399, %v4559
          %v4561 = vpop.f32.mrf.mxu0
          %4562 = vmatprep.mubr.bf16.mxu0 %v3414
          %4563 = vmatmul.mubr.bf16.gmra.mxu0 %v3413
          %v4564 = vpop.f32.mrf.mxu0
          %v4565 = vadd.f32 %v4404, %v4564
          %v4566 = vpop.f32.mrf.mxu0
          %v4567 = vpop.f32.mrf.mxu0
          %v4568 = vadd.f32 %v4407, %v4567
          %v4569 = vpop.f32.mrf.mxu0
          %4570 = vmatprep.mubr.bf16.mxu0 %v3422
          %4571 = vmatmul.mubr.bf16.gmra.mxu0 %v3421
          %v4572 = vpop.f32.mrf.mxu0
          %v4573 = vadd.f32 %v4412, %v4572
          %v4574 = vpop.f32.mrf.mxu0
          %v4575 = vpop.f32.mrf.mxu0
          %v4576 = vadd.f32 %v4415, %v4575
          %v4577 = vpop.f32.mrf.mxu0
          %4578 = vmatprep.mubr.bf16.mxu0 %v3430
          %4579 = vmatmul.mubr.bf16.gmra.mxu0 %v3429
          %v4580 = vpop.f32.mrf.mxu0
          %v4581 = vadd.f32 %v4420, %v4580
          %v4582 = vpop.f32.mrf.mxu0
          %v4583 = vpop.f32.mrf.mxu0
          %v4584 = vadd.f32 %v4423, %v4583
          %v4585 = vpop.f32.mrf.mxu0
          %4586 = vmatprep.mubr.bf16.mxu0 %v3438
          %4587 = vmatmul.mubr.bf16.gmra.mxu0 %v3437
          %v4588 = vpop.f32.mrf.mxu0
          %v4589 = vadd.f32 %v4428, %v4588
          %v4590 = vpop.f32.mrf.mxu0
          %v4591 = vpop.f32.mrf.mxu0
          %v4592 = vadd.f32 %v4431, %v4591
          %v4593 = vpop.f32.mrf.mxu0
          %4594 = vmatprep.mubr.bf16.mxu0 %v3446
          %4595 = vmatmul.mubr.bf16.gmra.mxu0 %v3445
          %v4596 = vpop.f32.mrf.mxu0
          %v4597 = vadd.f32 %v4436, %v4596
          %v4598 = vpop.f32.mrf.mxu0
          %v4599 = vpop.f32.mrf.mxu0
          %v4600 = vadd.f32 %v4439, %v4599
          %v4601 = vpop.f32.mrf.mxu0
          %4602 = vmatprep.mubr.bf16.mxu0 %v3454
          %4603 = vmatmul.mubr.bf16.gmra.mxu0 %v3453
          %v4604 = vpop.f32.mrf.mxu0
          %v4605 = vadd.f32 %v4444, %v4604
          %v4606 = vpop.f32.mrf.mxu0
          %v4607 = vpop.f32.mrf.mxu0
          %v4608 = vadd.f32 %v4447, %v4607
          %v4609 = vpop.f32.mrf.mxu0
          %4610 = vmatprep.mubr.bf16.mxu0 %v3462
          %4611 = vmatmul.mubr.bf16.gmra.mxu0 %v3461
          %v4612 = vpop.f32.mrf.mxu0
          %v4613 = vadd.f32 %v4452, %v4612
          %v4614 = vpop.f32.mrf.mxu0
          %v4615 = vpop.f32.mrf.mxu0
          %v4616 = vadd.f32 %v4455, %v4615
          %v4617 = vpop.f32.mrf.mxu0
          %4618 = vmatprep.mubr.bf16.mxu0 %v3470
          %4619 = vmatmul.mubr.bf16.gmra.mxu0 %v3469
          %v4620 = vpop.f32.mrf.mxu0
          %v4621 = vadd.f32 %v4460, %v4620
          %v4622 = vpop.f32.mrf.mxu0
          %v4623 = vpop.f32.mrf.mxu0
          %v4624 = vadd.f32 %v4463, %v4623
          %v4625 = vpop.f32.mrf.mxu0
          %4626 = vdwg.mxu0
          %4627 = vst [vmem:[%s297] sm:$0xff] %v4501
          %4628 = vst [vmem:[%s297 + $0x8] sm:$0xff] %v4504
          %4629 = vst [vmem:[%s297 + $0x10] sm:$0xff] %v4509
          %4630 = vst [vmem:[%s297 + $0x18] sm:$0xff] %v4512
          %4631 = vst [vmem:[%s297 + $0x20] sm:$0xff] %v4517
          %4632 = vst [vmem:[%s297 + $0x28] sm:$0xff] %v4520
          %4633 = vst [vmem:[%s297 + $0x30] sm:$0xff] %v4525
          %4634 = vst [vmem:[%s297 + $0x38] sm:$0xff] %v4528
          %4635 = vst [vmem:[%s297 + $0x40] sm:$0xff] %v4533
          %4636 = vst [vmem:[%s297 + $0x48] sm:$0xff] %v4536
          %4637 = vst [vmem:[%s297 + $0x50] sm:$0xff] %v4541
          %4638 = vst [vmem:[%s297 + $0x58] sm:$0xff] %v4544
          %4639 = vst [vmem:[%s297 + $0x60] sm:$0xff] %v4549
          %4640 = vst [vmem:[%s297 + $0x68] sm:$0xff] %v4552
          %4641 = vst [vmem:[%s297 + $0x70] sm:$0xff] %v4557
          %4642 = vst [vmem:[%s297 + $0x78] sm:$0xff] %v4560
          %4643 = vst [vmem:[%s297 + $0x80] sm:$0xff] %v4565
          %4644 = vst [vmem:[%s297 + $0x88] sm:$0xff] %v4568
          %4645 = vst [vmem:[%s297 + $0x90] sm:$0xff] %v4573
          %4646 = vst [vmem:[%s297 + $0x98] sm:$0xff] %v4576
          %4647 = vst [vmem:[%s297 + $0xa0] sm:$0xff] %v4581
          %4648 = vst [vmem:[%s297 + $0xa8] sm:$0xff] %v4584
          %4649 = vst [vmem:[%s297 + $0xb0] sm:$0xff] %v4589
          %4650 = vst [vmem:[%s297 + $0xb8] sm:$0xff] %v4592
          %4651 = vst [vmem:[%s297 + $0xc0] sm:$0xff] %v4597
          %4652 = vst [vmem:[%s297 + $0xc8] sm:$0xff] %v4600
          %4653 = vst [vmem:[%s297 + $0xd0] sm:$0xff] %v4605
          %4654 = vst [vmem:[%s297 + $0xd8] sm:$0xff] %v4608
          %4655 = vst [vmem:[%s297 + $0xe0] sm:$0xff] %v4613
          %4656 = vst [vmem:[%s297 + $0xe8] sm:$0xff] %v4616
          %4657 = vst [vmem:[%s297 + $0xf0] sm:$0xff] %v4621
          %4658 = vst [vmem:[%s297 + $0xf8] sm:$0xff] %v4624
        $region64: #{tpu_custom_call.1} parent=39 // pred_fallthru
          _
        %s4659 = sand.u32 %s156, 1
        %s4660 = scalar_lea.sflag [#allocation5], %s4659
        %s4661 = sand.u32 %s156, 1
        %s4662 = smul.addr %s4661, 256
        %s4663 = scalar_lea.vmem [#allocation11], %s4662
        // Predicated region
        $region65: #{tpu_custom_call.1} parent=39 // pred_check
          %p4664 = pneg %p166
        $region66: #{tpu_custom_call.1} parent=39 // pred_check_branch
          %4666 = sbr.rel (%p4664) target = $region68
        $region67: #{tpu_custom_call.1} parent=39 // pred_region
          %s4667 = smul.u32 %s29, %s28
          %s4668 = smul.u32 32, %s4667
          %s4670 = ssub.s32 4096, 4096
          %4671 = vsyncadd %s4660, %s4670
          %s4672 = smul.addr %s4668, 128
          %s4673 = scalar_lea.hbm %s5, %s4672
          %s4674 = sshll.u32 %s4663, 4
          %s4675 = int_to_ptr.vmem [resolvable:$true] %s4674
          %4680 = dma.vmem_to_hbm [thread:$0]  %s4675, 4096, %s4673, %s4660, 128, 128, 8
        $region68: #{tpu_custom_call.1} parent=39 // pred_fallthru
          _
      $region40: #{tpu_custom_call.1} parent=5 // pred_fallthru
        _
      %p4681 = scmp.le.s32.totalorder 2, %s19
      // Predicated region
      $region69: #{tpu_custom_call.1} parent=5 // pred_check
        %p4682 = pneg %p4681
      $region70: #{tpu_custom_call.1} parent=5 // pred_check_branch
        %4684 = sbr.rel (%p4682) target = $region72
      $region71: #{tpu_custom_call.1} parent=5 // pred_region
        %s4685 = ssub.s32 %s19, 2
        // Predicated region
        $region73: #{tpu_custom_call.1} parent=71 // pred_check
          %p4686 = pneg %p172
        $region74: #{tpu_custom_call.1} parent=71 // pred_check_branch
          %4688 = sbr.rel (%p4686) target = $region76
        $region75: #{tpu_custom_call.1} parent=71 // pred_region
          %s4689 = sand.u32 %s157, 1
          %s4690 = scalar_lea.sflag [#allocation5], %s4689
          %s4691 = sand.u32 %s157, 1
          %s4692 = smul.addr %s4691, 256
          %s4693 = scalar_lea.vmem [#allocation11], %s4692
          %4694 = dma.done %s4690, 4096
        $region76: #{tpu_custom_call.1} parent=71 // pred_fallthru
          _
      $region72: #{tpu_custom_call.1} parent=5 // pred_fallthru
        _
    $region6: #{tpu_custom_call.1} parent=1 // loop_footer
      %s23 = sadd.s32 1, %s19
    $region7: #{tpu_custom_call.1} parent=1 // loop_footer_branch
      %18 = sbr.rel target = $region3
    $region8: #{tpu_custom_call.1} parent=1 // loop_exit
      _
    %4695 = vsyncpa [#allocation4], 1
    %s4696 = scalar_lea.sflag [#allocation4], 1
    %4697 = vsyncpa %s4696, 1
    %4698 = vsyncpa [#allocation7], 1
    %4699 = vsyncpa [#allocation10], 1
    %4700 = vsyncpa [#allocation5], 1
    %s4701 = scalar_lea.sflag [#allocation5], 1
    %4702 = vsyncpa %s4701, 1

</llo_original>
